<compile_context>
chip_gen: v6e
topology: v6e:2x2x1
jax: 0.10.0
libtpu: 0.0.40
codegen_flags: <defaults>
</compile_context>

<pallas_src>
import functools

import jax
import jax.numpy as jnp
from jax.experimental import pallas as pl
from jax.experimental.pallas import tpu as pltpu


def _cdiv(a, b):
    return -(-a // b)


def _round_up(x, m):
    return _cdiv(x, m) * m


def _conv_bn_hs_kernel(x_ref, w_ref, shift_ref, o_ref, acc_ref, *,
                       kh, kw, stride, tile_rows, wo):
    # Grid: (n, row tile r, cout tile j, cin tile c)  -- c innermost (reduction).
    # x_ref:     (Hin, Win, cin_t)        bf16  whole padded image / cin tile
    # w_ref:     (KH*KW, cin_t, tile_n)   bf16  BN-scale-folded weights
    # shift_ref: (1, tile_n)              f32   folded BN shift
    # o_ref:     (tile_rows, Wo, tile_n)  out_dtype
    # acc_ref:   (tile_rows*Wo, tile_n)   f32   VMEM accumulator
    r = pl.program_id(1)
    c = pl.program_id(3)
    nc = pl.num_programs(3)

    @pl.when(c == 0)
    def _():
        acc_ref[...] = jnp.zeros_like(acc_ref)

    row0 = r * (tile_rows * stride)            # first padded-input row of this tile
    row_span = (tile_rows - 1) * stride + 1    # dense rows covering the strided window

    part = jnp.zeros(acc_ref.shape, jnp.float32)
    # In-VMEM im2col: the image block is resident, so the KH*KW taps are plain
    # VMEM slices (no HBM patch matrix).  Fully unrolled static loop (KH*KW small).
    for t in range(kh * kw):
        t_kh, t_kw = divmod(t, kw)
        rows = x_ref[pl.ds(row0 + t_kh, row_span), :, :]       # (row_span, Win, cin_t)
        if stride > 1:
            rows = rows[::stride]                              # (tile_rows, Win, cin_t)
        win = rows[:, t_kw:t_kw + (wo - 1) * stride + 1:stride, :]  # (tile_rows, Wo, cin_t)
        lhs = win.reshape(tile_rows * wo, -1)
        part = part + jnp.dot(lhs, w_ref[t], preferred_element_type=jnp.float32)
    acc_ref[...] += part

    @pl.when(c == nc - 1)
    def _():
        # Folded BatchNorm (scale already in the weights) + Hardswish epilogue.
        y = acc_ref[...] + shift_ref[...]
        y = y * jnp.clip(y + 3.0, 0.0, 6.0) * (1.0 / 6.0)
        o_ref[...] = y.reshape(tile_rows, wo, -1).astype(o_ref.dtype)


def conv_block_forward(x_nchw, weight, bias, gamma, beta, run_mean, run_var, *,
                       stride=1, padding=1, eps=1e-5, tile_rows=None,
                       out_dtype=jnp.float32):
    N, Cin, H, W = x_nchw.shape
    Cout, _, KH, KW = weight.shape
    Ho = (H + 2 * padding - KH) // stride + 1
    Wo = (W + 2 * padding - KW) // stride + 1

    # ---- Cout tiling (output lane dim).  256-wide tiles feed the v6e/v7x MXU;
    # tiny Cout stays a single 128 tile (perfect width on v5e; padding accepted,
    # this regime is DMA-bound).
    if Cout <= 256:
        Cp = _round_up(Cout, 128)
        tile_n = Cp
    else:
        tile_n = 256
        Cp = _round_up(Cout, tile_n)
    n_ct = Cp // tile_n

    # ---- Cin tiling (reduction grid axis).  Small Cin: one full-channel block,
    # no channel padding / extra HBM traffic.  Large Cin: 256-channel tiles so
    # VMEM does not scale with the contraction size.
    if Cin <= 512:
        cin_tile = Cin
        Cin_p = Cin
    else:
        cin_tile = 256
        Cin_p = _round_up(Cin, cin_tile)
    n_cin = Cin_p // cin_tile

    # ---- Output-row tiling: bounds the f32 accumulator (~2 MiB) and guarantees
    # the parallel grid has >=2 steps so both v7x TensorCores are used.
    if tile_rows is None:
        tile_rows = max(1, min(Ho, (2 * 1024 * 1024) // max(1, Wo * tile_n * 4)))
        if N * n_ct * _cdiv(Ho, tile_rows) < 2 and Ho > 1:
            tile_rows = _cdiv(Ho, 2)
    n_rt = _cdiv(Ho, tile_rows)
    Ho_p = n_rt * tile_rows

    # ---- Glue: NCHW -> NHWC in bf16 (single copy) + spatial zero-pad.
    # No patch matrix is materialized; the kernel gathers taps from VMEM.
    x = jnp.transpose(x_nchw.astype(jnp.bfloat16), (0, 2, 3, 1))
    Hin = (Ho_p - 1) * stride + KH
    Win = (Wo - 1) * stride + KW
    pad_b = max(0, Hin - padding - H)
    pad_r = max(0, Win - padding - W)
    xp = jnp.pad(x, ((0, 0), (padding, pad_b), (padding, pad_r), (0, Cin_p - Cin)))
    xp = xp[:, :Hin, :Win, :]

    # ---- Weights: (Cout,Cin,KH,KW) -> (KH*KW, Cin, Cout); fold eval-mode BN scale;
    # pad channels; bf16 operands (f32 accumulation in the kernel).
    w = jnp.transpose(weight, (2, 3, 1, 0)).astype(jnp.float32).reshape(KH * KW, Cin, Cout)
    inv_std = 1.0 / jnp.sqrt(run_var.astype(jnp.float32) + eps)
    scale = gamma.astype(jnp.float32) * inv_std
    shift = (beta.astype(jnp.float32)
             + (bias.astype(jnp.float32) - run_mean.astype(jnp.float32)) * scale)
    w = w * scale[None, None, :]
    w = jnp.pad(w, ((0, 0), (0, Cin_p - Cin), (0, Cp - Cout))).astype(jnp.bfloat16)
    shift = jnp.pad(shift.reshape(1, Cout), ((0, 0), (0, Cp - Cout)))

    # ---- VMEM budget: <=75% of physical per-core VMEM, capped at 100 MiB
    # (v7x has only 64 MiB physical; v5e/v6e have 128 MiB).
    try:
        vmem_cap = pltpu.get_tpu_info().vmem_capacity_bytes
    except Exception:  # pragma: no cover - conservative fallback
        vmem_cap = 64 * 1024 * 1024
    vmem_limit = min(int(vmem_cap) * 3 // 4, 100 * 1024 * 1024)

    kernel = functools.partial(_conv_bn_hs_kernel, kh=KH, kw=KW, stride=stride,
                               tile_rows=tile_rows, wo=Wo)

    out_bytes = N * Ho_p * Wo * Cp * jnp.dtype(out_dtype).itemsize
    cost = pl.CostEstimate(
        flops=2 * N * Ho_p * Wo * KH * KW * Cin_p * Cp,
        transcendentals=0,
        bytes_accessed=xp.size * 2 * n_rt * n_ct + w.size * 2 + shift.size * 4 + out_bytes,
    )

    out = pl.pallas_call(
        kernel,
        out_shape=jax.ShapeDtypeStruct((N, Ho_p, Wo, Cp), out_dtype),
        grid_spec=pltpu.PrefetchScalarGridSpec(
            num_scalar_prefetch=0,
            grid=(N, n_rt, n_ct, n_cin),
            in_specs=[
                # Whole padded image (one cin tile) stays VMEM-resident across the
                # row/cout tiles and the in-kernel (kh, kw) loop -> HBM reads it
                # once per (n, cin tile) when the block index does not change.
                pl.BlockSpec((None, Hin, Win, cin_tile),
                             lambda n, r, j, c: (n, 0, 0, c)),
                # Per-tap weight slabs, indexed by the (cin, cout) tiles.
                pl.BlockSpec((KH * KW, cin_tile, tile_n),
                             lambda n, r, j, c: (0, c, j)),
                pl.BlockSpec((1, tile_n), lambda n, r, j, c: (0, j)),
            ],
            out_specs=pl.BlockSpec((None, tile_rows, Wo, tile_n),
                                   lambda n, r, j, c: (n, r, 0, j)),
            scratch_shapes=[pltpu.VMEM((tile_rows * Wo, tile_n), jnp.float32)],
        ),
        compiler_params=pltpu.CompilerParams(
            dimension_semantics=("parallel", "parallel", "parallel", "arbitrary"),
            vmem_limit_bytes=vmem_limit,
        ),
        cost_estimate=cost,
    )(xp, w, shift)

    out = out[:, :Ho, :, :Cout]
    return jnp.transpose(out, (0, 3, 1, 2))  # back to NCHW


if __name__ == "__main__":
    # conv_block(in=4, out=8, kernel=3, stride=1, padding=1) on a (2,4,16,16) input.
    N, Cin, H, W = 2, 4, 16, 16
    Cout, K, stride, padding = 8, 3, 1, 1

    key = jax.random.PRNGKey(0)
    k_x, k_w, k_b, k_g, k_be, k_m, k_v = jax.random.split(key, 7)

    x = jax.random.normal(k_x, (N, Cin, H, W), dtype=jnp.float32)
    weight = jax.random.normal(k_w, (Cout, Cin, K, K), dtype=jnp.float32) * 0.1
    bias = jax.random.normal(k_b, (Cout,), dtype=jnp.float32) * 0.1
    gamma = jax.random.normal(k_g, (Cout,), dtype=jnp.float32) * 0.1 + 1.0
    beta = jax.random.normal(k_be, (Cout,), dtype=jnp.float32) * 0.1
    run_mean = jax.random.normal(k_m, (Cout,), dtype=jnp.float32) * 0.1
    run_var = jax.random.uniform(k_v, (Cout,), dtype=jnp.float32,
                                 minval=0.5, maxval=1.5)

    y = conv_block_forward(x, weight, bias, gamma, beta, run_mean, run_var,
                           stride=stride, padding=padding)
    y = jax.block_until_ready(y)
    assert y.shape == (N, Cout, H, W), y.shape

    # Pure-JAX reference (eval-mode BN); loose tolerance for the bf16 GEMM operands.
    conv = jax.lax.conv_general_dilated(
        x, weight, window_strides=(stride, stride),
        padding=((padding, padding), (padding, padding)),
        dimension_numbers=("NCHW", "OIHW", "NCHW")) + bias[None, :, None, None]
    bn = ((conv - run_mean[None, :, None, None])
          / jnp.sqrt(run_var[None, :, None, None] + 1e-5)
          * gamma[None, :, None, None] + beta[None, :, None, None])
    ref = bn * jnp.clip(bn + 3.0, 0.0, 6.0) / 6.0
    err = float(jnp.max(jnp.abs(y - ref)))
    assert err < 1e-1, f"max abs error vs reference: {err}"
    print("KERNEL_OK")
</pallas_src>

<mosaic_0001>
module attributes {stable_mosaic.version = 11 : i64} {
  func.func @_conv_bn_hs_kernel(%arg0: i32, %arg1: i32, %arg2: i32, %arg3: i32, %arg4: memref<1x18x18x4xbf16, #tpu.memory_space<vmem>>, %arg5: memref<9x4x128xbf16, #tpu.memory_space<vmem>>, %arg6: memref<1x128xf32, #tpu.memory_space<vmem>>, %arg7: memref<1x16x16x128xf32, #tpu.memory_space<vmem>>, %arg8: memref<256x128xf32, #tpu.memory_space<vmem>>) attributes {dimension_semantics = [#tpu.dimension_semantics<parallel>, #tpu.dimension_semantics<parallel>, #tpu.dimension_semantics<parallel>, #tpu.dimension_semantics<arbitrary>], iteration_bounds = array<i64: 2, 1, 1, 1>, scalar_prefetch = 0 : i64, scratch_operands = 1 : i64, tpu.core_type = #tpu.core_type<tc>, window_params = [{transform_indices = @transform_0, window_bounds = array<i64: 1, 18, 18, 4>}, {transform_indices = @transform_1, window_bounds = array<i64: 9, 4, 128>}, {transform_indices = @transform_2, window_bounds = array<i64: 1, 128>}, {transform_indices = @transform_3, window_bounds = array<i64: 1, 16, 16, 128>}]} {
    %c0_i32 = arith.constant 0 : i32
    %0 = arith.cmpi eq, %arg3, %c0_i32 : i32
    %1 = arith.extui %0 : i1 to i32
    %c0_i32_0 = arith.constant 0 : i32
    %2 = arith.cmpi ne, %1, %c0_i32_0 : i32
    scf.if %2 {
      %cst_68 = arith.constant 0.000000e+00 : f32
      %101 = vector.broadcast %cst_68 : f32 to vector<256x128xf32>
      %c0_69 = arith.constant 0 : index
      %c0_70 = arith.constant 0 : index
      %102 = vector.load %arg8[%c0_69, %c0_70] : memref<256x128xf32, #tpu.memory_space<vmem>>, vector<256x128xf32>
      tpu.vector_store %arg8[%c0_69, %c0_70], %101 {strides = array<i32>} : memref<256x128xf32, #tpu.memory_space<vmem>>, vector<256x128xf32>,
    } else {
    }
    %c16_i32 = arith.constant 16 : i32
    %3 = arith.muli %arg1, %c16_i32 : i32
    %cst = arith.constant 0.000000e+00 : f32
    %4 = vector.broadcast %cst : f32 to vector<256x128xf32>
    %c0_i32_1 = arith.constant 0 : i32
    %5 = arith.addi %3, %c0_i32_1 : i32
    %c0 = arith.constant 0 : index
    %6 = arith.index_cast %5 : i32 to index
    %c0_2 = arith.constant 0 : index
    %c0_3 = arith.constant 0 : index
    %7 = vector.load %arg4[%c0, %6, %c0_2, %c0_3] : memref<1x18x18x4xbf16, #tpu.memory_space<vmem>>, vector<1x16x18x4xbf16>
    %8 = vector.shape_cast %7 : vector<1x16x18x4xbf16> to vector<16x18x4xbf16>
    %9 = vector.extract_strided_slice %8 {offsets = [0, 0, 0], sizes = [16, 16, 4], strides = [1, 1, 1]} : vector<16x18x4xbf16> to vector<16x16x4xbf16>
    %10 = vector.shape_cast %9 : vector<16x16x4xbf16> to vector<256x4xbf16>
    %c0_4 = arith.constant 0 : index
    %c0_5 = arith.constant 0 : index
    %c0_6 = arith.constant 0 : index
    %11 = vector.load %arg5[%c0_4, %c0_5, %c0_6] : memref<9x4x128xbf16, #tpu.memory_space<vmem>>, vector<1x4x128xbf16>
    %12 = vector.shape_cast %11 : vector<1x4x128xbf16> to vector<4x128xbf16>
    %cst_7 = arith.constant dense<0.000000e+00> : vector<256x128xf32>
    %13 = tpu.matmul %10, %12, %cst_7 {dimension_numbers = #tpu.dot_dimension_numbers<[1], [0], [0], [1], [0, 0, 1, 1], [], []>} : vector<256x4xbf16>, vector<4x128xbf16>, vector<256x128xf32> -> vector<256x128xf32>
    %14 = arith.addf %4, %13 : vector<256x128xf32>
    %c0_i32_8 = arith.constant 0 : i32
    %15 = arith.addi %3, %c0_i32_8 : i32
    %c0_9 = arith.constant 0 : index
    %16 = arith.index_cast %15 : i32 to index
    %c0_10 = arith.constant 0 : index
    %c0_11 = arith.constant 0 : index
    %17 = vector.load %arg4[%c0_9, %16, %c0_10, %c0_11] : memref<1x18x18x4xbf16, #tpu.memory_space<vmem>>, vector<1x16x18x4xbf16>
    %18 = vector.shape_cast %17 : vector<1x16x18x4xbf16> to vector<16x18x4xbf16>
    %19 = vector.extract_strided_slice %18 {offsets = [0, 1, 0], sizes = [16, 16, 4], strides = [1, 1, 1]} : vector<16x18x4xbf16> to vector<16x16x4xbf16>
    %20 = vector.shape_cast %19 : vector<16x16x4xbf16> to vector<256x4xbf16>
    %c1 = arith.constant 1 : index
    %c0_12 = arith.constant 0 : index
    %c0_13 = arith.constant 0 : index
    %21 = vector.load %arg5[%c1, %c0_12, %c0_13] : memref<9x4x128xbf16, #tpu.memory_space<vmem>>, vector<1x4x128xbf16>
    %22 = vector.shape_cast %21 : vector<1x4x128xbf16> to vector<4x128xbf16>
    %cst_14 = arith.constant dense<0.000000e+00> : vector<256x128xf32>
    %23 = tpu.matmul %20, %22, %cst_14 {dimension_numbers = #tpu.dot_dimension_numbers<[1], [0], [0], [1], [0, 0, 1, 1], [], []>} : vector<256x4xbf16>, vector<4x128xbf16>, vector<256x128xf32> -> vector<256x128xf32>
    %24 = arith.addf %14, %23 : vector<256x128xf32>
    %c0_i32_15 = arith.constant 0 : i32
    %25 = arith.addi %3, %c0_i32_15 : i32
    %c0_16 = arith.constant 0 : index
    %26 = arith.index_cast %25 : i32 to index
    %c0_17 = arith.constant 0 : index
    %c0_18 = arith.constant 0 : index
    %27 = vector.load %arg4[%c0_16, %26, %c0_17, %c0_18] : memref<1x18x18x4xbf16, #tpu.memory_space<vmem>>, vector<1x16x18x4xbf16>
    %28 = vector.shape_cast %27 : vector<1x16x18x4xbf16> to vector<16x18x4xbf16>
    %29 = vector.extract_strided_slice %28 {offsets = [0, 2, 0], sizes = [16, 16, 4], strides = [1, 1, 1]} : vector<16x18x4xbf16> to vector<16x16x4xbf16>
    %30 = vector.shape_cast %29 : vector<16x16x4xbf16> to vector<256x4xbf16>
    %c2 = arith.constant 2 : index
    %c0_19 = arith.constant 0 : index
    %c0_20 = arith.constant 0 : index
    %31 = vector.load %arg5[%c2, %c0_19, %c0_20] : memref<9x4x128xbf16, #tpu.memory_space<vmem>>, vector<1x4x128xbf16>
    %32 = vector.shape_cast %31 : vector<1x4x128xbf16> to vector<4x128xbf16>
    %cst_21 = arith.constant dense<0.000000e+00> : vector<256x128xf32>
    %33 = tpu.matmul %30, %32, %cst_21 {dimension_numbers = #tpu.dot_dimension_numbers<[1], [0], [0], [1], [0, 0, 1, 1], [], []>} : vector<256x4xbf16>, vector<4x128xbf16>, vector<256x128xf32> -> vector<256x128xf32>
    %34 = arith.addf %24, %33 : vector<256x128xf32>
    %c1_i32 = arith.constant 1 : i32
    %35 = arith.addi %3, %c1_i32 : i32
    %c0_22 = arith.constant 0 : index
    %36 = arith.index_cast %35 : i32 to index
    %c0_23 = arith.constant 0 : index
    %c0_24 = arith.constant 0 : index
    %37 = vector.load %arg4[%c0_22, %36, %c0_23, %c0_24] : memref<1x18x18x4xbf16, #tpu.memory_space<vmem>>, vector<1x16x18x4xbf16>
    %38 = vector.shape_cast %37 : vector<1x16x18x4xbf16> to vector<16x18x4xbf16>
    %39 = vector.extract_strided_slice %38 {offsets = [0, 0, 0], sizes = [16, 16, 4], strides = [1, 1, 1]} : vector<16x18x4xbf16> to vector<16x16x4xbf16>
    %40 = vector.shape_cast %39 : vector<16x16x4xbf16> to vector<256x4xbf16>
    %c3 = arith.constant 3 : index
    %c0_25 = arith.constant 0 : index
    %c0_26 = arith.constant 0 : index
    %41 = vector.load %arg5[%c3, %c0_25, %c0_26] : memref<9x4x128xbf16, #tpu.memory_space<vmem>>, vector<1x4x128xbf16>
    %42 = vector.shape_cast %41 : vector<1x4x128xbf16> to vector<4x128xbf16>
    %cst_27 = arith.constant dense<0.000000e+00> : vector<256x128xf32>
    %43 = tpu.matmul %40, %42, %cst_27 {dimension_numbers = #tpu.dot_dimension_numbers<[1], [0], [0], [1], [0, 0, 1, 1], [], []>} : vector<256x4xbf16>, vector<4x128xbf16>, vector<256x128xf32> -> vector<256x128xf32>
    %44 = arith.addf %34, %43 : vector<256x128xf32>
    %c1_i32_28 = arith.constant 1 : i32
    %45 = arith.addi %3, %c1_i32_28 : i32
    %c0_29 = arith.constant 0 : index
    %46 = arith.index_cast %45 : i32 to index
    %c0_30 = arith.constant 0 : index
    %c0_31 = arith.constant 0 : index
    %47 = vector.load %arg4[%c0_29, %46, %c0_30, %c0_31] : memref<1x18x18x4xbf16, #tpu.memory_space<vmem>>, vector<1x16x18x4xbf16>
    %48 = vector.shape_cast %47 : vector<1x16x18x4xbf16> to vector<16x18x4xbf16>
    %49 = vector.extract_strided_slice %48 {offsets = [0, 1, 0], sizes = [16, 16, 4], strides = [1, 1, 1]} : vector<16x18x4xbf16> to vector<16x16x4xbf16>
    %50 = vector.shape_cast %49 : vector<16x16x4xbf16> to vector<256x4xbf16>
    %c4 = arith.constant 4 : index
    %c0_32 = arith.constant 0 : index
    %c0_33 = arith.constant 0 : index
    %51 = vector.load %arg5[%c4, %c0_32, %c0_33] : memref<9x4x128xbf16, #tpu.memory_space<vmem>>, vector<1x4x128xbf16>
    %52 = vector.shape_cast %51 : vector<1x4x128xbf16> to vector<4x128xbf16>
    %cst_34 = arith.constant dense<0.000000e+00> : vector<256x128xf32>
    %53 = tpu.matmul %50, %52, %cst_34 {dimension_numbers = #tpu.dot_dimension_numbers<[1], [0], [0], [1], [0, 0, 1, 1], [], []>} : vector<256x4xbf16>, vector<4x128xbf16>, vector<256x128xf32> -> vector<256x128xf32>
    %54 = arith.addf %44, %53 : vector<256x128xf32>
    %c1_i32_35 = arith.constant 1 : i32
    %55 = arith.addi %3, %c1_i32_35 : i32
    %c0_36 = arith.constant 0 : index
    %56 = arith.index_cast %55 : i32 to index
    %c0_37 = arith.constant 0 : index
    %c0_38 = arith.constant 0 : index
    %57 = vector.load %arg4[%c0_36, %56, %c0_37, %c0_38] : memref<1x18x18x4xbf16, #tpu.memory_space<vmem>>, vector<1x16x18x4xbf16>
    %58 = vector.shape_cast %57 : vector<1x16x18x4xbf16> to vector<16x18x4xbf16>
    %59 = vector.extract_strided_slice %58 {offsets = [0, 2, 0], sizes = [16, 16, 4], strides = [1, 1, 1]} : vector<16x18x4xbf16> to vector<16x16x4xbf16>
    %60 = vector.shape_cast %59 : vector<16x16x4xbf16> to vector<256x4xbf16>
    %c5 = arith.constant 5 : index
    %c0_39 = arith.constant 0 : index
    %c0_40 = arith.constant 0 : index
    %61 = vector.load %arg5[%c5, %c0_39, %c0_40] : memref<9x4x128xbf16, #tpu.memory_space<vmem>>, vector<1x4x128xbf16>
    %62 = vector.shape_cast %61 : vector<1x4x128xbf16> to vector<4x128xbf16>
    %cst_41 = arith.constant dense<0.000000e+00> : vector<256x128xf32>
    %63 = tpu.matmul %60, %62, %cst_41 {dimension_numbers = #tpu.dot_dimension_numbers<[1], [0], [0], [1], [0, 0, 1, 1], [], []>} : vector<256x4xbf16>, vector<4x128xbf16>, vector<256x128xf32> -> vector<256x128xf32>
    %64 = arith.addf %54, %63 : vector<256x128xf32>
    %c2_i32 = arith.constant 2 : i32
    %65 = arith.addi %3, %c2_i32 : i32
    %c0_42 = arith.constant 0 : index
    %66 = arith.index_cast %65 : i32 to index
    %c0_43 = arith.constant 0 : index
    %c0_44 = arith.constant 0 : index
    %67 = vector.load %arg4[%c0_42, %66, %c0_43, %c0_44] : memref<1x18x18x4xbf16, #tpu.memory_space<vmem>>, vector<1x16x18x4xbf16>
    %68 = vector.shape_cast %67 : vector<1x16x18x4xbf16> to vector<16x18x4xbf16>
    %69 = vector.extract_strided_slice %68 {offsets = [0, 0, 0], sizes = [16, 16, 4], strides = [1, 1, 1]} : vector<16x18x4xbf16> to vector<16x16x4xbf16>
    %70 = vector.shape_cast %69 : vector<16x16x4xbf16> to vector<256x4xbf16>
    %c6 = arith.constant 6 : index
    %c0_45 = arith.constant 0 : index
    %c0_46 = arith.constant 0 : index
    %71 = vector.load %arg5[%c6, %c0_45, %c0_46] : memref<9x4x128xbf16, #tpu.memory_space<vmem>>, vector<1x4x128xbf16>
    %72 = vector.shape_cast %71 : vector<1x4x128xbf16> to vector<4x128xbf16>
    %cst_47 = arith.constant dense<0.000000e+00> : vector<256x128xf32>
    %73 = tpu.matmul %70, %72, %cst_47 {dimension_numbers = #tpu.dot_dimension_numbers<[1], [0], [0], [1], [0, 0, 1, 1], [], []>} : vector<256x4xbf16>, vector<4x128xbf16>, vector<256x128xf32> -> vector<256x128xf32>
    %74 = arith.addf %64, %73 : vector<256x128xf32>
    %c2_i32_48 = arith.constant 2 : i32
    %75 = arith.addi %3, %c2_i32_48 : i32
    %c0_49 = arith.constant 0 : index
    %76 = arith.index_cast %75 : i32 to index
    %c0_50 = arith.constant 0 : index
    %c0_51 = arith.constant 0 : index
    %77 = vector.load %arg4[%c0_49, %76, %c0_50, %c0_51] : memref<1x18x18x4xbf16, #tpu.memory_space<vmem>>, vector<1x16x18x4xbf16>
    %78 = vector.shape_cast %77 : vector<1x16x18x4xbf16> to vector<16x18x4xbf16>
    %79 = vector.extract_strided_slice %78 {offsets = [0, 1, 0], sizes = [16, 16, 4], strides = [1, 1, 1]} : vector<16x18x4xbf16> to vector<16x16x4xbf16>
    %80 = vector.shape_cast %79 : vector<16x16x4xbf16> to vector<256x4xbf16>
    %c7 = arith.constant 7 : index
    %c0_52 = arith.constant 0 : index
    %c0_53 = arith.constant 0 : index
    %81 = vector.load %arg5[%c7, %c0_52, %c0_53] : memref<9x4x128xbf16, #tpu.memory_space<vmem>>, vector<1x4x128xbf16>
    %82 = vector.shape_cast %81 : vector<1x4x128xbf16> to vector<4x128xbf16>
    %cst_54 = arith.constant dense<0.000000e+00> : vector<256x128xf32>
    %83 = tpu.matmul %80, %82, %cst_54 {dimension_numbers = #tpu.dot_dimension_numbers<[1], [0], [0], [1], [0, 0, 1, 1], [], []>} : vector<256x4xbf16>, vector<4x128xbf16>, vector<256x128xf32> -> vector<256x128xf32>
    %84 = arith.addf %74, %83 : vector<256x128xf32>
    %c2_i32_55 = arith.constant 2 : i32
    %85 = arith.addi %3, %c2_i32_55 : i32
    %c0_56 = arith.constant 0 : index
    %86 = arith.index_cast %85 : i32 to index
    %c0_57 = arith.constant 0 : index
    %c0_58 = arith.constant 0 : index
    %87 = vector.load %arg4[%c0_56, %86, %c0_57, %c0_58] : memref<1x18x18x4xbf16, #tpu.memory_space<vmem>>, vector<1x16x18x4xbf16>
    %88 = vector.shape_cast %87 : vector<1x16x18x4xbf16> to vector<16x18x4xbf16>
    %89 = vector.extract_strided_slice %88 {offsets = [0, 2, 0], sizes = [16, 16, 4], strides = [1, 1, 1]} : vector<16x18x4xbf16> to vector<16x16x4xbf16>
    %90 = vector.shape_cast %89 : vector<16x16x4xbf16> to vector<256x4xbf16>
    %c8 = arith.constant 8 : index
    %c0_59 = arith.constant 0 : index
    %c0_60 = arith.constant 0 : index
    %91 = vector.load %arg5[%c8, %c0_59, %c0_60] : memref<9x4x128xbf16, #tpu.memory_space<vmem>>, vector<1x4x128xbf16>
    %92 = vector.shape_cast %91 : vector<1x4x128xbf16> to vector<4x128xbf16>
    %cst_61 = arith.constant dense<0.000000e+00> : vector<256x128xf32>
    %93 = tpu.matmul %90, %92, %cst_61 {dimension_numbers = #tpu.dot_dimension_numbers<[1], [0], [0], [1], [0, 0, 1, 1], [], []>} : vector<256x4xbf16>, vector<4x128xbf16>, vector<256x128xf32> -> vector<256x128xf32>
    %94 = arith.addf %84, %93 : vector<256x128xf32>
    %c0_62 = arith.constant 0 : index
    %c0_63 = arith.constant 0 : index
    %95 = vector.load %arg8[%c0_62, %c0_63] : memref<256x128xf32, #tpu.memory_space<vmem>>, vector<256x128xf32>
    %96 = arith.addf %95, %94 : vector<256x128xf32>
    %c0_64 = arith.constant 0 : index
    %c0_65 = arith.constant 0 : index
    %97 = vector.load %arg8[%c0_64, %c0_65] : memref<256x128xf32, #tpu.memory_space<vmem>>, vector<256x128xf32>
    tpu.vector_store %arg8[%c0_64, %c0_65], %96 {strides = array<i32>} : memref<256x128xf32, #tpu.memory_space<vmem>>, vector<256x128xf32>,
    %c0_i32_66 = arith.constant 0 : i32
    %98 = arith.cmpi eq, %arg3, %c0_i32_66 : i32
    %99 = arith.extui %98 : i1 to i32
    %c0_i32_67 = arith.constant 0 : i32
    %100 = arith.cmpi ne, %99, %c0_i32_67 : i32
    scf.if %100 {
      %c0_68 = arith.constant 0 : index
      %c0_69 = arith.constant 0 : index
      %101 = vector.load %arg8[%c0_68, %c0_69] : memref<256x128xf32, #tpu.memory_space<vmem>>, vector<256x128xf32>
      %c0_70 = arith.constant 0 : index
      %c0_71 = arith.constant 0 : index
      %102 = vector.load %arg6[%c0_70, %c0_71] : memref<1x128xf32, #tpu.memory_space<vmem>>, vector<1x128xf32>
      %103 = vector.broadcast %102 : vector<1x128xf32> to vector<256x128xf32>
      %104 = arith.addf %101, %103 : vector<256x128xf32>
      %cst_72 = arith.constant 3.000000e+00 : f32
      %105 = vector.broadcast %cst_72 : f32 to vector<256x128xf32>
      %106 = arith.addf %104, %105 : vector<256x128xf32>
      %cst_73 = arith.constant 0.000000e+00 : f32
      %cst_74 = arith.constant 6.000000e+00 : f32
      %107 = vector.broadcast %cst_73 : f32 to vector<256x128xf32>
      %108 = arith.maximumf %107, %106 : vector<256x128xf32>
      %109 = vector.broadcast %cst_74 : f32 to vector<256x128xf32>
      %110 = arith.minimumf %109, %108 : vector<256x128xf32>
      %111 = arith.mulf %104, %110 : vector<256x128xf32>
      %cst_75 = arith.constant 0.166666672 : f32
      %112 = vector.broadcast %cst_75 : f32 to vector<256x128xf32>
      %113 = arith.mulf %111, %112 : vector<256x128xf32>
      %114 = vector.shape_cast %113 : vector<256x128xf32> to vector<16x16x128xf32>
      %c0_76 = arith.constant 0 : index
      %c0_77 = arith.constant 0 : index
      %c0_78 = arith.constant 0 : index
      %c0_79 = arith.constant 0 : index
      %115 = vector.load %arg7[%c0_76, %c0_77, %c0_78, %c0_79] : memref<1x16x16x128xf32, #tpu.memory_space<vmem>>, vector<1x16x16x128xf32>
      %116 = vector.shape_cast %115 : vector<1x16x16x128xf32> to vector<16x16x128xf32>
      %117 = vector.shape_cast %114 : vector<16x16x128xf32> to vector<1x16x16x128xf32>
      tpu.vector_store %arg7[%c0_76, %c0_77, %c0_78, %c0_79], %117 {strides = array<i32>} : memref<1x16x16x128xf32, #tpu.memory_space<vmem>>, vector<1x16x16x128xf32>,
    } else {
    }
    return
  }
  func.func @transform_0(%arg0: i32, %arg1: i32, %arg2: i32, %arg3: i32) -> (i32, i32, i32, i32) {
    %c0_i32 = arith.constant 0 : i32
    %c0_i32_0 = arith.constant 0 : i32
    %c0_i32_1 = arith.constant 0 : i32
    return %arg0, %c0_i32, %c0_i32_0, %arg3 : i32, i32, i32, i32
  }
  func.func @transform_1(%arg0: i32, %arg1: i32, %arg2: i32, %arg3: i32) -> (i32, i32, i32) {
    %c0_i32 = arith.constant 0 : i32
    %c0_i32_0 = arith.constant 0 : i32
    return %c0_i32, %arg3, %arg2 : i32, i32, i32
  }
  func.func @transform_2(%arg0: i32, %arg1: i32, %arg2: i32, %arg3: i32) -> (i32, i32) {
    %c0_i32 = arith.constant 0 : i32
    %c0_i32_0 = arith.constant 0 : i32
    return %c0_i32, %arg2 : i32, i32
  }
  func.func @transform_3(%arg0: i32, %arg1: i32, %arg2: i32, %arg3: i32) -> (i32, i32, i32, i32) {
    %c0_i32 = arith.constant 0 : i32
    %c0_i32_0 = arith.constant 0 : i32
    return %arg0, %arg1, %c0_i32, %arg2 : i32, i32, i32, i32
  }
}

</mosaic_0001>

<llo_original>
// kernel: tpu_custom_call.1
$region0: #{tpu_custom_call.1}
  #allocation0 [shape = 'u32[]', space=smem, size = 0x4, offset = 0x4, fixed_abs, tag = 'smem constant byte address 0x4 - core index']
  #allocation1 [shape = 'u32[144,128]{1,0:T(1,128)}', space=vmem, size = 0x12000, scoped, tag = 'internal scratch']
  #allocation2 [shape = 'f32[256,128]{1,0:T(8,128)}', space=vmem, size = 0x20000, scoped, tag = 'scratch operand']
  %s0 = inlined_call_operand.vmem [shape: bf16[2,18,18,4], index: 0, kind: input, shape index: {}]
  %s1 = inlined_call_operand.vmem [shape: bf16[9,4,128], index: 1, kind: input, shape index: {}]
  %s2 = inlined_call_operand.vmem [shape: f32[1,128], index: 2, kind: input, shape index: {}]
  %s3 = inlined_call_operand.hbm [shape: f32[2,16,16,128], index: 3, kind: output, shape index: {}]
  %s4 = sld [smem:[#allocation0]]
  $region53: #{tpu_custom_call.1} parent=0
    _
  %s6 = ssub.s32 1, %s4
  %s7 = scalar_select 0, %s6, %s4
  $region1: #{tpu_custom_call.1} parent=0
    #allocation3 [shape = 'u8[262144]{0}', space=vmem, size = 0x40000, scoped, tag = 'output window, operand 0']
    #allocation4 [shape = 's32[2]{0}', space=sflag, size = 0x8, scoped, tag = 'scoped memory for tpu_custom_call.1']
    %8 = vsyncpa [#allocation4], 0
    %s9 = scalar_lea.sflag [#allocation4], 1
    %10 = vsyncpa %s9, 0
    loop: start=0, step=1, limit=4
    $region2: #{tpu_custom_call.1} parent=1 // loop_pre_header
      _
    $region3: #{tpu_custom_call.1} parent=1 // loop_header
      %s12 = sphi 0, %s16
      %p13 = scmp.ge.s32.totalorder %s12, 4
      %s19 = sphi 0, %s45
      %s20 = sphi 0, %s41
      %s21 = sphi 0, %s37
      %s22 = sphi 0, %s33
      %s23 = sphi 0, %s19
      %s24 = sphi 0, %s20
      %s25 = sphi 0, %s21
      %s26 = sphi 0, %s22
      %s27 = sphi 0, %s23
      %s28 = sphi 0, %s24
      %s29 = sphi 0, %s25
      %s30 = sphi 0, %s26
      %s50 = sphi 0, %s52
      %s53 = sphi 0, %s50
      %s54 = sphi 0, %s53
      %s70 = sphi 0, %s54
      %s78 = sphi 0, %s80
      %s81 = sphi 0, %s78
      %s82 = sphi 0, %s81
      %s98 = sphi 0, %s82
      %s104 = sphi 0, %s106
      %s107 = sphi 0, %s104
      %s108 = sphi 0, %s107
      %s124 = sphi 0, %s108
      %s134 = sphi 0, %s136
      %s137 = sphi 0, %s134
      %s138 = sphi 0, %s137
      %s154 = sphi 0, %s138
    $region4: #{tpu_custom_call.1} parent=1 // loop_header_branch
      %15 = sbr.rel (%p13) target = $region8
    $region5: #{tpu_custom_call.1} parent=1 // loop_body
      %s17 = ssub.s32 %s12, 1
      %s18 = ssub.s32 %s12, 2
      %s31 = sadd.s32 1, %s22
      %p32 = scmp.ge.s32.totalorder %s31, 1
      %s33 = scalar_select %p32, 0, %s31
      %s34 = sadd.s32 1, %s21
      %s35 = scalar_select %p32, %s34, %s21
      %p36 = scmp.ge.s32.totalorder %s35, 1
      %s37 = scalar_select %p36, 0, %s35
      %s38 = sadd.s32 1, %s20
      %s39 = scalar_select %p36, %s38, %s20
      %p40 = scmp.ge.s32.totalorder %s39, 1
      %s41 = scalar_select %p40, 0, %s39
      %s42 = sadd.s32 1, %s19
      %s43 = scalar_select %p40, %s42, %s19
      %p44 = scmp.ge.s32.totalorder %s43, 2
      %s45 = scalar_select %p44, 0, %s43
      %s46 = ssub.s32 %s19, %s45
      %s47 = ssub.s32 %s22, %s33
      %s48 = sor.u32 %s46, %s47
      %p49 = scmp.eq.s32.totalorder %s48, 0
      %s51 = sadd.s32 %s50, 1
      %s52 = scalar_select %p49, %s50, %s51
      %p55 = pneg %p49
      %p56 = scmp.eq.s32.totalorder %s12, 1
      %p57 = por %p55, %p56
      %p58 = scmp.ne.s32.totalorder %s50, %s53
      %p59 = scmp.eq.s32.totalorder %s12, 0
      %p60 = por %p58, %p59
      %p61 = scmp.ne.s32.totalorder %s50, %s53
      %p62 = scmp.eq.s32.totalorder %s17, 1
      %p63 = por %p61, %p62
      %p64 = scmp.ne.s32.totalorder %s53, %s54
      %p65 = scmp.eq.s32.totalorder %s17, 0
      %p66 = por %p64, %p65
      %p67 = scmp.ne.s32.totalorder %s53, %s54
      %p68 = scmp.eq.s32.totalorder %s18, 1
      %p69 = por %p67, %p68
      %p71 = scmp.ne.s32.totalorder %s54, %s70
      %p72 = scmp.eq.s32.totalorder %s18, 0
      %p73 = por %p71, %p72
      %s74 = ssub.s32 %s22, %s33
      %s75 = ssub.s32 %s21, %s37
      %s76 = sor.u32 %s74, %s75
      %p77 = scmp.eq.s32.totalorder %s76, 0
      %s79 = sadd.s32 %s78, 1
      %s80 = scalar_select %p77, %s78, %s79
      %p83 = pneg %p77
      %p84 = scmp.eq.s32.totalorder %s12, 1
      %p85 = por %p83, %p84
      %p86 = scmp.ne.s32.totalorder %s78, %s81
      %p87 = scmp.eq.s32.totalorder %s12, 0
      %p88 = por %p86, %p87
      %p89 = scmp.ne.s32.totalorder %s78, %s81
      %p90 = scmp.eq.s32.totalorder %s17, 1
      %p91 = por %p89, %p90
      %p92 = scmp.ne.s32.totalorder %s81, %s82
      %p93 = scmp.eq.s32.totalorder %s17, 0
      %p94 = por %p92, %p93
      %p95 = scmp.ne.s32.totalorder %s81, %s82
      %p96 = scmp.eq.s32.totalorder %s18, 1
      %p97 = por %p95, %p96
      %p99 = scmp.ne.s32.totalorder %s82, %s98
      %p100 = scmp.eq.s32.totalorder %s18, 0
      %p101 = por %p99, %p100
      %s102 = ssub.s32 %s21, %s37
      %p103 = scmp.eq.s32.totalorder %s102, 0
      %s105 = sadd.s32 %s104, 1
      %s106 = scalar_select %p103, %s104, %s105
      %p109 = pneg %p103
      %p110 = scmp.eq.s32.totalorder %s12, 1
      %p111 = por %p109, %p110
      %p112 = scmp.ne.s32.totalorder %s104, %s107
      %p113 = scmp.eq.s32.totalorder %s12, 0
      %p114 = por %p112, %p113
      %p115 = scmp.ne.s32.totalorder %s104, %s107
      %p116 = scmp.eq.s32.totalorder %s17, 1
      %p117 = por %p115, %p116
      %p118 = scmp.ne.s32.totalorder %s107, %s108
      %p119 = scmp.eq.s32.totalorder %s17, 0
      %p120 = por %p118, %p119
      %p121 = scmp.ne.s32.totalorder %s107, %s108
      %p122 = scmp.eq.s32.totalorder %s18, 1
      %p123 = por %p121, %p122
      %p125 = scmp.ne.s32.totalorder %s108, %s124
      %p126 = scmp.eq.s32.totalorder %s18, 0
      %p127 = por %p125, %p126
      %s128 = ssub.s32 %s19, %s45
      %s129 = ssub.s32 %s20, %s41
      %s130 = sor.u32 %s128, %s129
      %s131 = ssub.s32 %s21, %s37
      %s132 = sor.u32 %s130, %s131
      %p133 = scmp.eq.s32.totalorder %s132, 0
      %s135 = sadd.s32 %s134, 1
      %s136 = scalar_select %p133, %s134, %s135
      %p139 = pneg %p133
      %p140 = scmp.eq.s32.totalorder %s12, 1
      %p141 = por %p139, %p140
      %p142 = scmp.ne.s32.totalorder %s134, %s137
      %p143 = scmp.eq.s32.totalorder %s12, 0
      %p144 = por %p142, %p143
      %p145 = scmp.ne.s32.totalorder %s134, %s137
      %p146 = scmp.eq.s32.totalorder %s17, 1
      %p147 = por %p145, %p146
      %p148 = scmp.ne.s32.totalorder %s137, %s138
      %p149 = scmp.eq.s32.totalorder %s17, 0
      %p150 = por %p148, %p149
      %p151 = scmp.ne.s32.totalorder %s137, %s138
      %p152 = scmp.eq.s32.totalorder %s18, 1
      %p153 = por %p151, %p152
      %p155 = scmp.ne.s32.totalorder %s138, %s154
      %p156 = scmp.eq.s32.totalorder %s18, 0
      %p157 = por %p155, %p156
      %p158 = scmp.le.s32.totalorder 1, %s12
      %p159 = scmp.lt.s32.totalorder %s12, 3
      %p160 = pnand %p158, %p159
      %p161 = pneg %p160
      // Predicated region
      $region9: #{tpu_custom_call.1} parent=5 // pred_check
        _
      $region10: #{tpu_custom_call.1} parent=5 // pred_check_branch
        %163 = sbr.rel (%p160) target = $region12
      $region11: #{tpu_custom_call.1} parent=5 // pred_region
        %s164 = ssub.s32 %s12, 1
        // Predicated region
        $region13: #{tpu_custom_call.1} parent=11 // pred_check
          %p165 = pneg %p94
        $region14: #{tpu_custom_call.1} parent=11 // pred_check_branch
          %167 = sbr.rel (%p165) target = $region16
        $region15: #{tpu_custom_call.1} parent=11 // pred_region
          %p168 = scmp.lt.s32.totalorder %s26, 0
          %s169 = scalar_select %p168, %s26, 0
          %p170 = scmp.lt.s32.totalorder %s25, 0
          %s171 = scalar_select %p170, %s25, 0
          %s172 = sadd.s32 %s171, %s169
          %s173 = smul.addr %s172, 2
          %s174 = scalar_lea.vmem %s1, %s173
        $region16: #{tpu_custom_call.1} parent=11 // pred_fallthru
          _
        // Predicated region
        $region17: #{tpu_custom_call.1} parent=11 // pred_check
          %p175 = pneg %p120
        $region18: #{tpu_custom_call.1} parent=11 // pred_check_branch
          %177 = sbr.rel (%p175) target = $region20
        $region19: #{tpu_custom_call.1} parent=11 // pred_region
          %p178 = scmp.lt.s32.totalorder %s25, 0
          %s179 = scalar_select %p178, %s25, 0
          %s180 = scalar_lea.vmem %s2, %s179
        $region20: #{tpu_custom_call.1} parent=11 // pred_fallthru
          _
      $region12: #{tpu_custom_call.1} parent=5 // pred_fallthru
        _
      %p181 = scmp.lt.s32.totalorder %s12, 2
      // Predicated region
      $region21: #{tpu_custom_call.1} parent=5 // pred_check
        %p182 = pneg %p181
      $region22: #{tpu_custom_call.1} parent=5 // pred_check_branch
        %184 = sbr.rel (%p182) target = $region24
      $region23: #{tpu_custom_call.1} parent=5 // pred_region
        // Predicated region
        $region25: #{tpu_custom_call.1} parent=23 // pred_check
          %p185 = pneg %p60
        $region26: #{tpu_custom_call.1} parent=23 // pred_check_branch
          %187 = sbr.rel (%p185) target = $region28
        $region27: #{tpu_custom_call.1} parent=23 // pred_region
          %p188 = scmp.lt.s32.totalorder %s19, 1
          %s189 = scalar_select %p188, %s19, 1
          %p190 = scmp.lt.s32.totalorder %s22, 0
          %s191 = scalar_select %p190, %s22, 0
          %s192 = smul.addr %s189, 54
          %s193 = sadd.s32 %s191, %s192
          %s194 = smul.addr %s193, 4
          %s195 = scalar_lea.vmem %s0, %s194
        $region28: #{tpu_custom_call.1} parent=23 // pred_fallthru
          _
      $region24: #{tpu_custom_call.1} parent=5 // pred_fallthru
        _
      %p196 = scmp.le.s32.totalorder 1, %s12
      %p197 = scmp.lt.s32.totalorder %s12, 3
      %p198 = pnand %p196, %p197
      %p199 = pneg %p198
      // Predicated region
      $region29: #{tpu_custom_call.1} parent=5 // pred_check
        _
      $region30: #{tpu_custom_call.1} parent=5 // pred_check_branch
        %201 = sbr.rel (%p198) target = $region32
      $region31: #{tpu_custom_call.1} parent=5 // pred_region
        %s202 = ssub.s32 %s12, 1
        %p203 = scmp.lt.s32.totalorder %s23, 1
        %s204 = scalar_select %p203, %s23, 1
        %p205 = scmp.lt.s32.totalorder %s26, 0
        %s206 = scalar_select %p205, %s26, 0
        %s207 = smul.addr %s204, 54
        %s208 = sadd.s32 %s206, %s207
        %s209 = smul.addr %s208, 4
        %s210 = scalar_lea.vmem %s0, %s209
        %p211 = pneg %p66
        %p212 = pneg %p63
        %p213 = scmp.lt.s32.totalorder %s26, 0
        %s214 = scalar_select %p213, %s26, 0
        %p215 = scmp.lt.s32.totalorder %s25, 0
        %s216 = scalar_select %p215, %s25, 0
        %s217 = sadd.s32 %s216, %s214
        %s218 = smul.addr %s217, 2
        %s219 = scalar_lea.vmem %s1, %s218
        %p220 = pneg %p94
        %p221 = pneg %p91
        %p222 = scmp.lt.s32.totalorder %s25, 0
        %s223 = scalar_select %p222, %s25, 0
        %s224 = scalar_lea.vmem %s2, %s223
        %p225 = pneg %p120
        %p226 = pneg %p117
        %p227 = pneg %p150
        %p228 = pneg %p147
        %s229 = sand.u32 %s137, 1
        %s230 = scalar_lea.sflag [#allocation4], %s229
        %s231 = sand.u32 %s137, 1
        %s232 = smul.addr %s231, 256
        %s233 = scalar_lea.vmem [#allocation3], %s232
        %p234 = scmp.lt.s32.totalorder %s23, 1
        %s235 = scalar_select %p234, %s23, 1
        %p236 = scmp.lt.s32.totalorder %s26, 0
        %s237 = scalar_select %p236, %s26, 0
        %s238 = smul.addr %s235, 54
        %s239 = sadd.s32 %s237, %s238
        %s240 = smul.addr %s239, 4
        %s241 = scalar_lea.vmem %s0, %s240
        %p242 = scmp.lt.s32.totalorder %s26, 0
        %s243 = scalar_select %p242, %s26, 0
        %p244 = scmp.lt.s32.totalorder %s25, 0
        %s245 = scalar_select %p244, %s25, 0
        %s246 = sadd.s32 %s245, %s243
        %s247 = smul.addr %s246, 2
        %s248 = scalar_lea.vmem %s1, %s247
        %p249 = scmp.lt.s32.totalorder %s25, 0
        %s250 = scalar_select %p249, %s25, 0
        %s251 = scalar_lea.vmem %s2, %s250
        %s252 = smul.u32 16, %s24
        %p254 = scmp.eq.s32.totalorder %s26, 0
        // Predicated region
        $region33: #{tpu_custom_call.1} parent=31 // pred_check
          %p255 = pneg %p254
        $region34: #{tpu_custom_call.1} parent=31 // pred_check_branch
          %257 = sbr.rel (%p255) target = $region36
        $region35: #{tpu_custom_call.1} parent=31 // pred_region
          %258 = vst [vmem:[#allocation2] sm:$0xff] 0.0
          %259 = vst [vmem:[#allocation2 + $0x8] sm:$0xff] 0.0
          %260 = vst [vmem:[#allocation2 + $0x10] sm:$0xff] 0.0
          %261 = vst [vmem:[#allocation2 + $0x18] sm:$0xff] 0.0
          %262 = vst [vmem:[#allocation2 + $0x20] sm:$0xff] 0.0
          %263 = vst [vmem:[#allocation2 + $0x28] sm:$0xff] 0.0
          %264 = vst [vmem:[#allocation2 + $0x30] sm:$0xff] 0.0
          %265 = vst [vmem:[#allocation2 + $0x38] sm:$0xff] 0.0
          %266 = vst [vmem:[#allocation2 + $0x40] sm:$0xff] 0.0
          %267 = vst [vmem:[#allocation2 + $0x48] sm:$0xff] 0.0
          %268 = vst [vmem:[#allocation2 + $0x50] sm:$0xff] 0.0
          %269 = vst [vmem:[#allocation2 + $0x58] sm:$0xff] 0.0
          %270 = vst [vmem:[#allocation2 + $0x60] sm:$0xff] 0.0
          %271 = vst [vmem:[#allocation2 + $0x68] sm:$0xff] 0.0
          %272 = vst [vmem:[#allocation2 + $0x70] sm:$0xff] 0.0
          %273 = vst [vmem:[#allocation2 + $0x78] sm:$0xff] 0.0
          %274 = vst [vmem:[#allocation2 + $0x80] sm:$0xff] 0.0
          %275 = vst [vmem:[#allocation2 + $0x88] sm:$0xff] 0.0
          %276 = vst [vmem:[#allocation2 + $0x90] sm:$0xff] 0.0
          %277 = vst [vmem:[#allocation2 + $0x98] sm:$0xff] 0.0
          %278 = vst [vmem:[#allocation2 + $0xa0] sm:$0xff] 0.0
          %279 = vst [vmem:[#allocation2 + $0xa8] sm:$0xff] 0.0
          %280 = vst [vmem:[#allocation2 + $0xb0] sm:$0xff] 0.0
          %281 = vst [vmem:[#allocation2 + $0xb8] sm:$0xff] 0.0
          %282 = vst [vmem:[#allocation2 + $0xc0] sm:$0xff] 0.0
          %283 = vst [vmem:[#allocation2 + $0xc8] sm:$0xff] 0.0
          %284 = vst [vmem:[#allocation2 + $0xd0] sm:$0xff] 0.0
          %285 = vst [vmem:[#allocation2 + $0xd8] sm:$0xff] 0.0
          %286 = vst [vmem:[#allocation2 + $0xe0] sm:$0xff] 0.0
          %287 = vst [vmem:[#allocation2 + $0xe8] sm:$0xff] 0.0
          %288 = vst [vmem:[#allocation2 + $0xf0] sm:$0xff] 0.0
          %289 = vst [vmem:[#allocation2 + $0xf8] sm:$0xff] 0.0
        $region36: #{tpu_custom_call.1} parent=31 // pred_fallthru
          _
        %s290 = smul.u32 %s24, 16
        %s291 = smul.u32 %s290, 3
        %s292 = smul.addr %s291, 4
        %s293 = scalar_lea.vmem %s241, %s292
        %v294 = vld [vmem:[%s293] sm:$0xf]
        %v295 = vld [vmem:[%s293 + $0x4] sm:$0xf]
        %v296 = vld [vmem:[%s293 + $0x8] sm:$0x1]
        %v297 = vld [vmem:[%s293 + $0xc] sm:$0xf]
        %v298 = vld [vmem:[%s293 + $0x10] sm:$0xf]
        %v299 = vld [vmem:[%s293 + $0x14] sm:$0x1]
        %v300 = vld [vmem:[%s293 + $0x18] sm:$0xf]
        %v301 = vld [vmem:[%s293 + $0x1c] sm:$0xf]
        %v302 = vld [vmem:[%s293 + $0x20] sm:$0x1]
        %v303 = vld [vmem:[%s293 + $0x24] sm:$0xf]
        %v304 = vld [vmem:[%s293 + $0x28] sm:$0xf]
        %v305 = vld [vmem:[%s293 + $0x2c] sm:$0x1]
        %v306 = vld [vmem:[%s293 + $0x30] sm:$0xf]
        %v307 = vld [vmem:[%s293 + $0x34] sm:$0xf]
        %v308 = vld [vmem:[%s293 + $0x38] sm:$0x1]
        %v309 = vld [vmem:[%s293 + $0x3c] sm:$0xf]
        %v310 = vld [vmem:[%s293 + $0x40] sm:$0xf]
        %v311 = vld [vmem:[%s293 + $0x44] sm:$0x1]
        %v312 = vld [vmem:[%s293 + $0x48] sm:$0xf]
        %v313 = vld [vmem:[%s293 + $0x4c] sm:$0xf]
        %v314 = vld [vmem:[%s293 + $0x50] sm:$0x1]
        %v315 = vld [vmem:[%s293 + $0x54] sm:$0xf]
        %v316 = vld [vmem:[%s293 + $0x58] sm:$0xf]
        %v317 = vld [vmem:[%s293 + $0x5c] sm:$0x1]
        %v318 = vld [vmem:[%s293 + $0x60] sm:$0xf]
        %v319 = vld [vmem:[%s293 + $0x64] sm:$0xf]
        %v320 = vld [vmem:[%s293 + $0x68] sm:$0x1]
        %v321 = vld [vmem:[%s293 + $0x6c] sm:$0xf]
        %v322 = vld [vmem:[%s293 + $0x70] sm:$0xf]
        %v323 = vld [vmem:[%s293 + $0x74] sm:$0x1]
        %v324 = vld [vmem:[%s293 + $0x78] sm:$0xf]
        %v325 = vld [vmem:[%s293 + $0x7c] sm:$0xf]
        %v326 = vld [vmem:[%s293 + $0x80] sm:$0x1]
        %v327 = vld [vmem:[%s293 + $0x84] sm:$0xf]
        %v328 = vld [vmem:[%s293 + $0x88] sm:$0xf]
        %v329 = vld [vmem:[%s293 + $0x8c] sm:$0x1]
        %v330 = vld [vmem:[%s293 + $0x90] sm:$0xf]
        %v331 = vld [vmem:[%s293 + $0x94] sm:$0xf]
        %v332 = vld [vmem:[%s293 + $0x98] sm:$0x1]
        %v333 = vld [vmem:[%s293 + $0x9c] sm:$0xf]
        %v334 = vld [vmem:[%s293 + $0xa0] sm:$0xf]
        %v335 = vld [vmem:[%s293 + $0xa4] sm:$0x1]
        %v336 = vld [vmem:[%s293 + $0xa8] sm:$0xf]
        %v337 = vld [vmem:[%s293 + $0xac] sm:$0xf]
        %v338 = vld [vmem:[%s293 + $0xb0] sm:$0x1]
        %v339 = vld [vmem:[%s293 + $0xb4] sm:$0xf]
        %v340 = vld [vmem:[%s293 + $0xb8] sm:$0xf]
        %v341 = vld [vmem:[%s293 + $0xbc] sm:$0x1]
        %v342 = vld [vmem:[%s248] sm:$0x3]
        %vm343 = vsmask.f32 3328
        %vm344 = vsmask.f32 7440
        %vm345 = vmor %vm343, %vm344
        %v347 = vshrl.u32 %v294, 16
        %v349 = vrot.slane %v347, 4
        %v350 = vshll.u32 %v294, 16
        %v352 = vrot.slane %v350, 5
        %v353 = vor.u32 %v349, %v352
        %v354 = vrot.slane %v353, 4
        %v356 = vshll.u32 %v295, 16
        %v358 = vrot.slane %v356, 5
        %v359 = vsel %vm345, %v354, %v358
        %v360 = vshrl.u32 %v295, 16
        %v362 = vrot.slane %v360, 4
        %v363 = vor.u32 %v362, %v358
        %v364 = vrot.slane %v363, 4
        %v366 = vshll.u32 %v296, 16
        %v368 = vrot.slane %v366, 5
        %v369 = vsel %vm345, %v364, %v368
        %v371 = vshrl.u32 %v297, 16
        %v373 = vrot.slane %v371, 4
        %v374 = vshll.u32 %v297, 16
        %v376 = vrot.slane %v374, 5
        %v377 = vor.u32 %v373, %v376
        %v378 = vrot.slane %v377, 4
        %v380 = vshll.u32 %v298, 16
        %v382 = vrot.slane %v380, 5
        %v383 = vsel %vm345, %v378, %v382
        %v384 = vshrl.u32 %v298, 16
        %v386 = vrot.slane %v384, 4
        %v387 = vor.u32 %v386, %v382
        %v388 = vrot.slane %v387, 4
        %v390 = vshll.u32 %v299, 16
        %v392 = vrot.slane %v390, 5
        %v393 = vsel %vm345, %v388, %v392
        %v395 = vshrl.u32 %v300, 16
        %v397 = vrot.slane %v395, 4
        %v398 = vshll.u32 %v300, 16
        %v400 = vrot.slane %v398, 5
        %v401 = vor.u32 %v397, %v400
        %v402 = vrot.slane %v401, 4
        %v404 = vshll.u32 %v301, 16
        %v406 = vrot.slane %v404, 5
        %v407 = vsel %vm345, %v402, %v406
        %v408 = vshrl.u32 %v301, 16
        %v410 = vrot.slane %v408, 4
        %v411 = vor.u32 %v410, %v406
        %v412 = vrot.slane %v411, 4
        %v414 = vshll.u32 %v302, 16
        %v416 = vrot.slane %v414, 5
        %v417 = vsel %vm345, %v412, %v416
        %v419 = vshrl.u32 %v303, 16
        %v421 = vrot.slane %v419, 4
        %v422 = vshll.u32 %v303, 16
        %v424 = vrot.slane %v422, 5
        %v425 = vor.u32 %v421, %v424
        %v426 = vrot.slane %v425, 4
        %v428 = vshll.u32 %v304, 16
        %v430 = vrot.slane %v428, 5
        %v431 = vsel %vm345, %v426, %v430
        %v432 = vshrl.u32 %v304, 16
        %v434 = vrot.slane %v432, 4
        %v435 = vor.u32 %v434, %v430
        %v436 = vrot.slane %v435, 4
        %v438 = vshll.u32 %v305, 16
        %v440 = vrot.slane %v438, 5
        %v441 = vsel %vm345, %v436, %v440
        %v443 = vshrl.u32 %v306, 16
        %v445 = vrot.slane %v443, 4
        %v446 = vshll.u32 %v306, 16
        %v448 = vrot.slane %v446, 5
        %v449 = vor.u32 %v445, %v448
        %v450 = vrot.slane %v449, 4
        %v452 = vshll.u32 %v307, 16
        %v454 = vrot.slane %v452, 5
        %v455 = vsel %vm345, %v450, %v454
        %v456 = vshrl.u32 %v307, 16
        %v458 = vrot.slane %v456, 4
        %v459 = vor.u32 %v458, %v454
        %v460 = vrot.slane %v459, 4
        %v462 = vshll.u32 %v308, 16
        %v464 = vrot.slane %v462, 5
        %v465 = vsel %vm345, %v460, %v464
        %v467 = vshrl.u32 %v309, 16
        %v469 = vrot.slane %v467, 4
        %v470 = vshll.u32 %v309, 16
        %v472 = vrot.slane %v470, 5
        %v473 = vor.u32 %v469, %v472
        %v474 = vrot.slane %v473, 4
        %v476 = vshll.u32 %v310, 16
        %v478 = vrot.slane %v476, 5
        %v479 = vsel %vm345, %v474, %v478
        %v480 = vshrl.u32 %v310, 16
        %v482 = vrot.slane %v480, 4
        %v483 = vor.u32 %v482, %v478
        %v484 = vrot.slane %v483, 4
        %v486 = vshll.u32 %v311, 16
        %v488 = vrot.slane %v486, 5
        %v489 = vsel %vm345, %v484, %v488
        %v491 = vshrl.u32 %v312, 16
        %v493 = vrot.slane %v491, 4
        %v494 = vshll.u32 %v312, 16
        %v496 = vrot.slane %v494, 5
        %v497 = vor.u32 %v493, %v496
        %v498 = vrot.slane %v497, 4
        %v500 = vshll.u32 %v313, 16
        %v502 = vrot.slane %v500, 5
        %v503 = vsel %vm345, %v498, %v502
        %v504 = vshrl.u32 %v313, 16
        %v506 = vrot.slane %v504, 4
        %v507 = vor.u32 %v506, %v502
        %v508 = vrot.slane %v507, 4
        %v510 = vshll.u32 %v314, 16
        %v512 = vrot.slane %v510, 5
        %v513 = vsel %vm345, %v508, %v512
        %v515 = vshrl.u32 %v315, 16
        %v517 = vrot.slane %v515, 4
        %v518 = vshll.u32 %v315, 16
        %v520 = vrot.slane %v518, 5
        %v521 = vor.u32 %v517, %v520
        %v522 = vrot.slane %v521, 4
        %v524 = vshll.u32 %v316, 16
        %v526 = vrot.slane %v524, 5
        %v527 = vsel %vm345, %v522, %v526
        %v528 = vshrl.u32 %v316, 16
        %v530 = vrot.slane %v528, 4
        %v531 = vor.u32 %v530, %v526
        %v532 = vrot.slane %v531, 4
        %v534 = vshll.u32 %v317, 16
        %v536 = vrot.slane %v534, 5
        %v537 = vsel %vm345, %v532, %v536
        %v539 = vshrl.u32 %v318, 16
        %v541 = vrot.slane %v539, 4
        %v542 = vshll.u32 %v318, 16
        %v544 = vrot.slane %v542, 5
        %v545 = vor.u32 %v541, %v544
        %v546 = vrot.slane %v545, 4
        %v548 = vshll.u32 %v319, 16
        %v550 = vrot.slane %v548, 5
        %v551 = vsel %vm345, %v546, %v550
        %v552 = vshrl.u32 %v319, 16
        %v554 = vrot.slane %v552, 4
        %v555 = vor.u32 %v554, %v550
        %v556 = vrot.slane %v555, 4
        %v558 = vshll.u32 %v320, 16
        %v560 = vrot.slane %v558, 5
        %v561 = vsel %vm345, %v556, %v560
        %v563 = vshrl.u32 %v321, 16
        %v565 = vrot.slane %v563, 4
        %v566 = vshll.u32 %v321, 16
        %v568 = vrot.slane %v566, 5
        %v569 = vor.u32 %v565, %v568
        %v570 = vrot.slane %v569, 4
        %v572 = vshll.u32 %v322, 16
        %v574 = vrot.slane %v572, 5
        %v575 = vsel %vm345, %v570, %v574
        %v576 = vshrl.u32 %v322, 16
        %v578 = vrot.slane %v576, 4
        %v579 = vor.u32 %v578, %v574
        %v580 = vrot.slane %v579, 4
        %v582 = vshll.u32 %v323, 16
        %v584 = vrot.slane %v582, 5
        %v585 = vsel %vm345, %v580, %v584
        %v587 = vshrl.u32 %v324, 16
        %v589 = vrot.slane %v587, 4
        %v590 = vshll.u32 %v324, 16
        %v592 = vrot.slane %v590, 5
        %v593 = vor.u32 %v589, %v592
        %v594 = vrot.slane %v593, 4
        %v596 = vshll.u32 %v325, 16
        %v598 = vrot.slane %v596, 5
        %v599 = vsel %vm345, %v594, %v598
        %v600 = vshrl.u32 %v325, 16
        %v602 = vrot.slane %v600, 4
        %v603 = vor.u32 %v602, %v598
        %v604 = vrot.slane %v603, 4
        %v606 = vshll.u32 %v326, 16
        %v608 = vrot.slane %v606, 5
        %v609 = vsel %vm345, %v604, %v608
        %v611 = vshrl.u32 %v327, 16
        %v613 = vrot.slane %v611, 4
        %v614 = vshll.u32 %v327, 16
        %v616 = vrot.slane %v614, 5
        %v617 = vor.u32 %v613, %v616
        %v618 = vrot.slane %v617, 4
        %v620 = vshll.u32 %v328, 16
        %v622 = vrot.slane %v620, 5
        %v623 = vsel %vm345, %v618, %v622
        %v624 = vshrl.u32 %v328, 16
        %v626 = vrot.slane %v624, 4
        %v627 = vor.u32 %v626, %v622
        %v628 = vrot.slane %v627, 4
        %v630 = vshll.u32 %v329, 16
        %v632 = vrot.slane %v630, 5
        %v633 = vsel %vm345, %v628, %v632
        %v635 = vshrl.u32 %v330, 16
        %v637 = vrot.slane %v635, 4
        %v638 = vshll.u32 %v330, 16
        %v640 = vrot.slane %v638, 5
        %v641 = vor.u32 %v637, %v640
        %v642 = vrot.slane %v641, 4
        %v644 = vshll.u32 %v331, 16
        %v646 = vrot.slane %v644, 5
        %v647 = vsel %vm345, %v642, %v646
        %v648 = vshrl.u32 %v331, 16
        %v650 = vrot.slane %v648, 4
        %v651 = vor.u32 %v650, %v646
        %v652 = vrot.slane %v651, 4
        %v654 = vshll.u32 %v332, 16
        %v656 = vrot.slane %v654, 5
        %v657 = vsel %vm345, %v652, %v656
        %v659 = vshrl.u32 %v333, 16
        %v661 = vrot.slane %v659, 4
        %v662 = vshll.u32 %v333, 16
        %v664 = vrot.slane %v662, 5
        %v665 = vor.u32 %v661, %v664
        %v666 = vrot.slane %v665, 4
        %v668 = vshll.u32 %v334, 16
        %v670 = vrot.slane %v668, 5
        %v671 = vsel %vm345, %v666, %v670
        %v672 = vshrl.u32 %v334, 16
        %v674 = vrot.slane %v672, 4
        %v675 = vor.u32 %v674, %v670
        %v676 = vrot.slane %v675, 4
        %v678 = vshll.u32 %v335, 16
        %v680 = vrot.slane %v678, 5
        %v681 = vsel %vm345, %v676, %v680
        %v683 = vshrl.u32 %v336, 16
        %v685 = vrot.slane %v683, 4
        %v686 = vshll.u32 %v336, 16
        %v688 = vrot.slane %v686, 5
        %v689 = vor.u32 %v685, %v688
        %v690 = vrot.slane %v689, 4
        %v692 = vshll.u32 %v337, 16
        %v694 = vrot.slane %v692, 5
        %v695 = vsel %vm345, %v690, %v694
        %v696 = vshrl.u32 %v337, 16
        %v698 = vrot.slane %v696, 4
        %v699 = vor.u32 %v698, %v694
        %v700 = vrot.slane %v699, 4
        %v702 = vshll.u32 %v338, 16
        %v704 = vrot.slane %v702, 5
        %v705 = vsel %vm345, %v700, %v704
        %v707 = vshrl.u32 %v339, 16
        %v709 = vrot.slane %v707, 4
        %v710 = vshll.u32 %v339, 16
        %v712 = vrot.slane %v710, 5
        %v713 = vor.u32 %v709, %v712
        %v714 = vrot.slane %v713, 4
        %v716 = vshll.u32 %v340, 16
        %v718 = vrot.slane %v716, 5
        %v719 = vsel %vm345, %v714, %v718
        %v720 = vshrl.u32 %v340, 16
        %v722 = vrot.slane %v720, 4
        %v723 = vor.u32 %v722, %v718
        %v724 = vrot.slane %v723, 4
        %v726 = vshll.u32 %v341, 16
        %v728 = vrot.slane %v726, 5
        %v729 = vsel %vm345, %v724, %v728
        %s730 = scalar_lea.vmem %s248, 2
        %v731 = vld [vmem:[%s730] sm:$0x3]
        %v732 = vunpack.c.l.b16 %v359
        %v733 = vunpack.c.l.b16 %v369
        %v734 = vunpack.c.l.b16 %v383
        %v735 = vunpack.c.l.b16 %v393
        %v736 = vunpack.c.l.b16 %v407
        %v737 = vunpack.c.l.b16 %v417
        %v738 = vunpack.c.l.b16 %v431
        %v739 = vunpack.c.l.b16 %v441
        %v740 = vunpack.c.l.b16 %v455
        %v741 = vunpack.c.l.b16 %v465
        %v742 = vunpack.c.l.b16 %v479
        %v743 = vunpack.c.l.b16 %v489
        %v744 = vunpack.c.l.b16 %v503
        %v745 = vunpack.c.l.b16 %v513
        %v746 = vunpack.c.l.b16 %v527
        %v747 = vunpack.c.l.b16 %v537
        %v748 = vunpack.c.l.b16 %v551
        %v749 = vunpack.c.l.b16 %v561
        %v750 = vunpack.c.l.b16 %v575
        %v751 = vunpack.c.l.b16 %v585
        %v752 = vunpack.c.l.b16 %v599
        %v753 = vunpack.c.l.b16 %v609
        %v754 = vunpack.c.l.b16 %v623
        %v755 = vunpack.c.l.b16 %v633
        %v756 = vunpack.c.l.b16 %v647
        %v757 = vunpack.c.l.b16 %v657
        %v758 = vunpack.c.l.b16 %v671
        %v759 = vunpack.c.l.b16 %v681
        %v760 = vunpack.c.l.b16 %v695
        %v761 = vunpack.c.l.b16 %v705
        %v762 = vunpack.c.l.b16 %v719
        %v763 = vunpack.c.l.b16 %v729
        %v764 = vpack.c.b16 %v733, %v732
        %v765 = vpack.c.b16 %v735, %v734
        %v766 = vpack.c.b16 %v737, %v736
        %v767 = vpack.c.b16 %v739, %v738
        %v768 = vpack.c.b16 %v741, %v740
        %v769 = vpack.c.b16 %v743, %v742
        %v770 = vpack.c.b16 %v745, %v744
        %v771 = vpack.c.b16 %v747, %v746
        %v772 = vpack.c.b16 %v749, %v748
        %v773 = vpack.c.b16 %v751, %v750
        %v774 = vpack.c.b16 %v753, %v752
        %v775 = vpack.c.b16 %v755, %v754
        %v776 = vpack.c.b16 %v757, %v756
        %v777 = vpack.c.b16 %v759, %v758
        %v778 = vpack.c.b16 %v761, %v760
        %v779 = vpack.c.b16 %v763, %v762
        %vm780 = vcmask 31744
        %v782 = vsel %vm780, %v764, 0
        %v785 = vsel %vm780, %v765, 0
        %v788 = vsel %vm780, %v766, 0
        %v791 = vsel %vm780, %v767, 0
        %v794 = vsel %vm780, %v768, 0
        %v797 = vsel %vm780, %v769, 0
        %v800 = vsel %vm780, %v770, 0
        %v803 = vsel %vm780, %v771, 0
        %v806 = vsel %vm780, %v772, 0
        %v809 = vsel %vm780, %v773, 0
        %v812 = vsel %vm780, %v774, 0
        %v815 = vsel %vm780, %v775, 0
        %v818 = vsel %vm780, %v776, 0
        %v821 = vsel %vm780, %v777, 0
        %v824 = vsel %vm780, %v778, 0
        %v827 = vsel %vm780, %v779, 0
        %vm829 = vcmask 1041408
        %v831 = vsel %vm829, %v731, 0
        %833 = vmatprep.subr.bf16.mxu0 0
        %834 = vmatpush1.bf16.msra.mxu0 0
        %835 = vmatprep.subr.bf16.mxu0 0
        %836 = vmatpush1.bf16.msra.mxu0 0
        %837 = vmatprep.subr.bf16.mxu0 0
        %838 = vmatpush1.bf16.msra.mxu0 0
        %839 = vmatprep.subr.bf16.mxu0 0
        %840 = vmatpush1.bf16.msra.mxu0 0
        %841 = vmatprep.subr.bf16.mxu0 0
        %842 = vmatpush1.bf16.msra.mxu0 0
        %843 = vmatprep.subr.bf16.mxu0 0
        %844 = vmatpush1.bf16.msra.mxu0 0
        %845 = vmatprep.subr.bf16.mxu0 0
        %846 = vmatpush1.bf16.msra.mxu0 0
        %847 = vmatprep.subr.bf16.mxu0 0
        %848 = vmatpush1.bf16.msra.mxu0 %v831
        %849 = vmatprep.subr.bf16.mxu0 0
        %850 = vmatpush2.bf16.msra.mxu0 0
        %851 = vmatprep.subr.bf16.mxu0 0
        %852 = vmatpush2.bf16.msra.mxu0 0
        %853 = vmatprep.subr.bf16.mxu0 0
        %854 = vmatpush2.bf16.msra.mxu0 0
        %855 = vmatprep.subr.bf16.mxu0 0
        %856 = vmatpush2.bf16.msra.mxu0 0
        %857 = vmatprep.subr.bf16.mxu0 0
        %858 = vmatpush2.bf16.msra.mxu0 0
        %859 = vmatprep.subr.bf16.mxu0 0
        %860 = vmatpush2.bf16.msra.mxu0 0
        %861 = vmatprep.subr.bf16.mxu0 0
        %862 = vmatpush2.bf16.msra.mxu0 0
        %863 = vmatprep.subr.bf16.mxu0 0
        %864 = vmatpush2.bf16.msra.mxu0 0
        %865 = vmatprep.mubr.bf16.mxu0 0
        %866 = vmatmul.mubr.bf16.gmra.mxu0 %v782
        %v867 = vpop.f32.mrf.mxu0
        %v868 = vadd.f32 0.0, %v867
        %v869 = vpop.f32.mrf.mxu0
        %v870 = vpop.f32.mrf.mxu0
        %v871 = vadd.f32 0.0, %v870
        %v872 = vpop.f32.mrf.mxu0
        %873 = vmatprep.mubr.bf16.mxu0 0
        %874 = vmatmul.mubr.bf16.gmra.mxu0 %v785
        %v875 = vpop.f32.mrf.mxu0
        %v876 = vadd.f32 0.0, %v875
        %v877 = vpop.f32.mrf.mxu0
        %v878 = vpop.f32.mrf.mxu0
        %v879 = vadd.f32 0.0, %v878
        %v880 = vpop.f32.mrf.mxu0
        %881 = vmatprep.mubr.bf16.mxu0 0
        %882 = vmatmul.mubr.bf16.gmra.mxu0 %v788
        %v883 = vpop.f32.mrf.mxu0
        %v884 = vadd.f32 0.0, %v883
        %v885 = vpop.f32.mrf.mxu0
        %v886 = vpop.f32.mrf.mxu0
        %v887 = vadd.f32 0.0, %v886
        %v888 = vpop.f32.mrf.mxu0
        %889 = vmatprep.mubr.bf16.mxu0 0
        %890 = vmatmul.mubr.bf16.gmra.mxu0 %v791
        %v891 = vpop.f32.mrf.mxu0
        %v892 = vadd.f32 0.0, %v891
        %v893 = vpop.f32.mrf.mxu0
        %v894 = vpop.f32.mrf.mxu0
        %v895 = vadd.f32 0.0, %v894
        %v896 = vpop.f32.mrf.mxu0
        %897 = vmatprep.mubr.bf16.mxu0 0
        %898 = vmatmul.mubr.bf16.gmra.mxu0 %v794
        %v899 = vpop.f32.mrf.mxu0
        %v900 = vadd.f32 0.0, %v899
        %v901 = vpop.f32.mrf.mxu0
        %v902 = vpop.f32.mrf.mxu0
        %v903 = vadd.f32 0.0, %v902
        %v904 = vpop.f32.mrf.mxu0
        %905 = vmatprep.mubr.bf16.mxu0 0
        %906 = vmatmul.mubr.bf16.gmra.mxu0 %v797
        %v907 = vpop.f32.mrf.mxu0
        %v908 = vadd.f32 0.0, %v907
        %v909 = vpop.f32.mrf.mxu0
        %v910 = vpop.f32.mrf.mxu0
        %v911 = vadd.f32 0.0, %v910
        %v912 = vpop.f32.mrf.mxu0
        %913 = vmatprep.mubr.bf16.mxu0 0
        %914 = vmatmul.mubr.bf16.gmra.mxu0 %v800
        %v915 = vpop.f32.mrf.mxu0
        %v916 = vadd.f32 0.0, %v915
        %v917 = vpop.f32.mrf.mxu0
        %v918 = vpop.f32.mrf.mxu0
        %v919 = vadd.f32 0.0, %v918
        %v920 = vpop.f32.mrf.mxu0
        %921 = vmatprep.mubr.bf16.mxu0 0
        %922 = vmatmul.mubr.bf16.gmra.mxu0 %v803
        %v923 = vpop.f32.mrf.mxu0
        %v924 = vadd.f32 0.0, %v923
        %v925 = vpop.f32.mrf.mxu0
        %v926 = vpop.f32.mrf.mxu0
        %v927 = vadd.f32 0.0, %v926
        %v928 = vpop.f32.mrf.mxu0
        %929 = vmatprep.mubr.bf16.mxu0 0
        %930 = vmatmul.mubr.bf16.gmra.mxu0 %v806
        %v931 = vpop.f32.mrf.mxu0
        %v932 = vadd.f32 0.0, %v931
        %v933 = vpop.f32.mrf.mxu0
        %v934 = vpop.f32.mrf.mxu0
        %v935 = vadd.f32 0.0, %v934
        %v936 = vpop.f32.mrf.mxu0
        %937 = vmatprep.mubr.bf16.mxu0 0
        %938 = vmatmul.mubr.bf16.gmra.mxu0 %v809
        %v939 = vpop.f32.mrf.mxu0
        %v940 = vadd.f32 0.0, %v939
        %v941 = vpop.f32.mrf.mxu0
        %v942 = vpop.f32.mrf.mxu0
        %v943 = vadd.f32 0.0, %v942
        %v944 = vpop.f32.mrf.mxu0
        %945 = vmatprep.mubr.bf16.mxu0 0
        %946 = vmatmul.mubr.bf16.gmra.mxu0 %v812
        %v947 = vpop.f32.mrf.mxu0
        %v948 = vadd.f32 0.0, %v947
        %v949 = vpop.f32.mrf.mxu0
        %v950 = vpop.f32.mrf.mxu0
        %v951 = vadd.f32 0.0, %v950
        %v952 = vpop.f32.mrf.mxu0
        %953 = vmatprep.mubr.bf16.mxu0 0
        %954 = vmatmul.mubr.bf16.gmra.mxu0 %v815
        %v955 = vpop.f32.mrf.mxu0
        %v956 = vadd.f32 0.0, %v955
        %v957 = vpop.f32.mrf.mxu0
        %v958 = vpop.f32.mrf.mxu0
        %v959 = vadd.f32 0.0, %v958
        %v960 = vpop.f32.mrf.mxu0
        %961 = vmatprep.mubr.bf16.mxu0 0
        %962 = vmatmul.mubr.bf16.gmra.mxu0 %v818
        %v963 = vpop.f32.mrf.mxu0
        %v964 = vadd.f32 0.0, %v963
        %v965 = vpop.f32.mrf.mxu0
        %v966 = vpop.f32.mrf.mxu0
        %v967 = vadd.f32 0.0, %v966
        %v968 = vpop.f32.mrf.mxu0
        %969 = vmatprep.mubr.bf16.mxu0 0
        %970 = vmatmul.mubr.bf16.gmra.mxu0 %v821
        %v971 = vpop.f32.mrf.mxu0
        %v972 = vadd.f32 0.0, %v971
        %v973 = vpop.f32.mrf.mxu0
        %v974 = vpop.f32.mrf.mxu0
        %v975 = vadd.f32 0.0, %v974
        %v976 = vpop.f32.mrf.mxu0
        %977 = vmatprep.mubr.bf16.mxu0 0
        %978 = vmatmul.mubr.bf16.gmra.mxu0 %v824
        %v979 = vpop.f32.mrf.mxu0
        %v980 = vadd.f32 0.0, %v979
        %v981 = vpop.f32.mrf.mxu0
        %v982 = vpop.f32.mrf.mxu0
        %v983 = vadd.f32 0.0, %v982
        %v984 = vpop.f32.mrf.mxu0
        %985 = vmatprep.mubr.bf16.mxu0 0
        %986 = vmatmul.mubr.bf16.gmra.mxu0 %v827
        %v987 = vpop.f32.mrf.mxu0
        %v988 = vadd.f32 0.0, %v987
        %v989 = vpop.f32.mrf.mxu0
        %v990 = vpop.f32.mrf.mxu0
        %v991 = vadd.f32 0.0, %v990
        %v992 = vpop.f32.mrf.mxu0
        %993 = vdwg.mxu0
        %v1026 = vunpack.c.l.b16 %v294
        %v1027 = vunpack.c.l.b16 %v295
        %v1028 = vunpack.c.l.b16 %v297
        %v1029 = vunpack.c.l.b16 %v298
        %v1030 = vunpack.c.l.b16 %v300
        %v1031 = vunpack.c.l.b16 %v301
        %v1032 = vunpack.c.l.b16 %v303
        %v1033 = vunpack.c.l.b16 %v304
        %v1034 = vunpack.c.l.b16 %v306
        %v1035 = vunpack.c.l.b16 %v307
        %v1036 = vunpack.c.l.b16 %v309
        %v1037 = vunpack.c.l.b16 %v310
        %v1038 = vunpack.c.l.b16 %v312
        %v1039 = vunpack.c.l.b16 %v313
        %v1040 = vunpack.c.l.b16 %v315
        %v1041 = vunpack.c.l.b16 %v316
        %v1042 = vunpack.c.l.b16 %v318
        %v1043 = vunpack.c.l.b16 %v319
        %v1044 = vunpack.c.l.b16 %v321
        %v1045 = vunpack.c.l.b16 %v322
        %v1046 = vunpack.c.l.b16 %v324
        %v1047 = vunpack.c.l.b16 %v325
        %v1048 = vunpack.c.l.b16 %v327
        %v1049 = vunpack.c.l.b16 %v328
        %v1050 = vunpack.c.l.b16 %v330
        %v1051 = vunpack.c.l.b16 %v331
        %v1052 = vunpack.c.l.b16 %v333
        %v1053 = vunpack.c.l.b16 %v334
        %v1054 = vunpack.c.l.b16 %v336
        %v1055 = vunpack.c.l.b16 %v337
        %v1056 = vunpack.c.l.b16 %v339
        %v1057 = vunpack.c.l.b16 %v340
        %v1058 = vpack.c.b16 %v1027, %v1026
        %v1059 = vpack.c.b16 %v1029, %v1028
        %v1060 = vpack.c.b16 %v1031, %v1030
        %v1061 = vpack.c.b16 %v1033, %v1032
        %v1062 = vpack.c.b16 %v1035, %v1034
        %v1063 = vpack.c.b16 %v1037, %v1036
        %v1064 = vpack.c.b16 %v1039, %v1038
        %v1065 = vpack.c.b16 %v1041, %v1040
        %v1066 = vpack.c.b16 %v1043, %v1042
        %v1067 = vpack.c.b16 %v1045, %v1044
        %v1068 = vpack.c.b16 %v1047, %v1046
        %v1069 = vpack.c.b16 %v1049, %v1048
        %v1070 = vpack.c.b16 %v1051, %v1050
        %v1071 = vpack.c.b16 %v1053, %v1052
        %v1072 = vpack.c.b16 %v1055, %v1054
        %v1073 = vpack.c.b16 %v1057, %v1056
        %v1075 = vsel %vm780, %v1058, 0
        %v1078 = vsel %vm780, %v1059, 0
        %v1081 = vsel %vm780, %v1060, 0
        %v1084 = vsel %vm780, %v1061, 0
        %v1087 = vsel %vm780, %v1062, 0
        %v1090 = vsel %vm780, %v1063, 0
        %v1093 = vsel %vm780, %v1064, 0
        %v1096 = vsel %vm780, %v1065, 0
        %v1099 = vsel %vm780, %v1066, 0
        %v1102 = vsel %vm780, %v1067, 0
        %v1105 = vsel %vm780, %v1068, 0
        %v1108 = vsel %vm780, %v1069, 0
        %v1111 = vsel %vm780, %v1070, 0
        %v1114 = vsel %vm780, %v1071, 0
        %v1117 = vsel %vm780, %v1072, 0
        %v1120 = vsel %vm780, %v1073, 0
        %v1123 = vsel %vm829, %v342, 0
        %1125 = vmatprep.subr.bf16.mxu0 0
        %1126 = vmatpush1.bf16.msra.mxu0 0
        %1127 = vmatprep.subr.bf16.mxu0 0
        %1128 = vmatpush1.bf16.msra.mxu0 0
        %1129 = vmatprep.subr.bf16.mxu0 0
        %1130 = vmatpush1.bf16.msra.mxu0 0
        %1131 = vmatprep.subr.bf16.mxu0 0
        %1132 = vmatpush1.bf16.msra.mxu0 0
        %1133 = vmatprep.subr.bf16.mxu0 0
        %1134 = vmatpush1.bf16.msra.mxu0 0
        %1135 = vmatprep.subr.bf16.mxu0 0
        %1136 = vmatpush1.bf16.msra.mxu0 0
        %1137 = vmatprep.subr.bf16.mxu0 0
        %1138 = vmatpush1.bf16.msra.mxu0 0
        %1139 = vmatprep.subr.bf16.mxu0 0
        %1140 = vmatpush1.bf16.msra.mxu0 %v1123
        %1141 = vmatprep.subr.bf16.mxu0 0
        %1142 = vmatpush2.bf16.msra.mxu0 0
        %1143 = vmatprep.subr.bf16.mxu0 0
        %1144 = vmatpush2.bf16.msra.mxu0 0
        %1145 = vmatprep.subr.bf16.mxu0 0
        %1146 = vmatpush2.bf16.msra.mxu0 0
        %1147 = vmatprep.subr.bf16.mxu0 0
        %1148 = vmatpush2.bf16.msra.mxu0 0
        %1149 = vmatprep.subr.bf16.mxu0 0
        %1150 = vmatpush2.bf16.msra.mxu0 0
        %1151 = vmatprep.subr.bf16.mxu0 0
        %1152 = vmatpush2.bf16.msra.mxu0 0
        %1153 = vmatprep.subr.bf16.mxu0 0
        %1154 = vmatpush2.bf16.msra.mxu0 0
        %1155 = vmatprep.subr.bf16.mxu0 0
        %1156 = vmatpush2.bf16.msra.mxu0 0
        %1157 = vmatprep.mubr.bf16.mxu0 0
        %1158 = vmatmul.mubr.bf16.gmra.mxu0 %v1075
        %v1159 = vpop.f32.mrf.mxu0
        %v1160 = vadd.f32 %v868, %v1159
        %v1161 = vpop.f32.mrf.mxu0
        %v1162 = vpop.f32.mrf.mxu0
        %v1163 = vadd.f32 %v871, %v1162
        %v1164 = vpop.f32.mrf.mxu0
        %1165 = vmatprep.mubr.bf16.mxu0 0
        %1166 = vmatmul.mubr.bf16.gmra.mxu0 %v1078
        %v1167 = vpop.f32.mrf.mxu0
        %v1168 = vadd.f32 %v876, %v1167
        %v1169 = vpop.f32.mrf.mxu0
        %v1170 = vpop.f32.mrf.mxu0
        %v1171 = vadd.f32 %v879, %v1170
        %v1172 = vpop.f32.mrf.mxu0
        %1173 = vmatprep.mubr.bf16.mxu0 0
        %1174 = vmatmul.mubr.bf16.gmra.mxu0 %v1081
        %v1175 = vpop.f32.mrf.mxu0
        %v1176 = vadd.f32 %v884, %v1175
        %v1177 = vpop.f32.mrf.mxu0
        %v1178 = vpop.f32.mrf.mxu0
        %v1179 = vadd.f32 %v887, %v1178
        %v1180 = vpop.f32.mrf.mxu0
        %1181 = vmatprep.mubr.bf16.mxu0 0
        %1182 = vmatmul.mubr.bf16.gmra.mxu0 %v1084
        %v1183 = vpop.f32.mrf.mxu0
        %v1184 = vadd.f32 %v892, %v1183
        %v1185 = vpop.f32.mrf.mxu0
        %v1186 = vpop.f32.mrf.mxu0
        %v1187 = vadd.f32 %v895, %v1186
        %v1188 = vpop.f32.mrf.mxu0
        %1189 = vmatprep.mubr.bf16.mxu0 0
        %1190 = vmatmul.mubr.bf16.gmra.mxu0 %v1087
        %v1191 = vpop.f32.mrf.mxu0
        %v1192 = vadd.f32 %v900, %v1191
        %v1193 = vpop.f32.mrf.mxu0
        %v1194 = vpop.f32.mrf.mxu0
        %v1195 = vadd.f32 %v903, %v1194
        %v1196 = vpop.f32.mrf.mxu0
        %1197 = vmatprep.mubr.bf16.mxu0 0
        %1198 = vmatmul.mubr.bf16.gmra.mxu0 %v1090
        %v1199 = vpop.f32.mrf.mxu0
        %v1200 = vadd.f32 %v908, %v1199
        %v1201 = vpop.f32.mrf.mxu0
        %v1202 = vpop.f32.mrf.mxu0
        %v1203 = vadd.f32 %v911, %v1202
        %v1204 = vpop.f32.mrf.mxu0
        %1205 = vmatprep.mubr.bf16.mxu0 0
        %1206 = vmatmul.mubr.bf16.gmra.mxu0 %v1093
        %v1207 = vpop.f32.mrf.mxu0
        %v1208 = vadd.f32 %v916, %v1207
        %v1209 = vpop.f32.mrf.mxu0
        %v1210 = vpop.f32.mrf.mxu0
        %v1211 = vadd.f32 %v919, %v1210
        %v1212 = vpop.f32.mrf.mxu0
        %1213 = vmatprep.mubr.bf16.mxu0 0
        %1214 = vmatmul.mubr.bf16.gmra.mxu0 %v1096
        %v1215 = vpop.f32.mrf.mxu0
        %v1216 = vadd.f32 %v924, %v1215
        %v1217 = vpop.f32.mrf.mxu0
        %v1218 = vpop.f32.mrf.mxu0
        %v1219 = vadd.f32 %v927, %v1218
        %v1220 = vpop.f32.mrf.mxu0
        %1221 = vmatprep.mubr.bf16.mxu0 0
        %1222 = vmatmul.mubr.bf16.gmra.mxu0 %v1099
        %v1223 = vpop.f32.mrf.mxu0
        %v1224 = vadd.f32 %v932, %v1223
        %v1225 = vpop.f32.mrf.mxu0
        %v1226 = vpop.f32.mrf.mxu0
        %v1227 = vadd.f32 %v935, %v1226
        %v1228 = vpop.f32.mrf.mxu0
        %1229 = vmatprep.mubr.bf16.mxu0 0
        %1230 = vmatmul.mubr.bf16.gmra.mxu0 %v1102
        %v1231 = vpop.f32.mrf.mxu0
        %v1232 = vadd.f32 %v940, %v1231
        %v1233 = vpop.f32.mrf.mxu0
        %v1234 = vpop.f32.mrf.mxu0
        %v1235 = vadd.f32 %v943, %v1234
        %v1236 = vpop.f32.mrf.mxu0
        %1237 = vmatprep.mubr.bf16.mxu0 0
        %1238 = vmatmul.mubr.bf16.gmra.mxu0 %v1105
        %v1239 = vpop.f32.mrf.mxu0
        %v1240 = vadd.f32 %v948, %v1239
        %v1241 = vpop.f32.mrf.mxu0
        %v1242 = vpop.f32.mrf.mxu0
        %v1243 = vadd.f32 %v951, %v1242
        %v1244 = vpop.f32.mrf.mxu0
        %1245 = vmatprep.mubr.bf16.mxu0 0
        %1246 = vmatmul.mubr.bf16.gmra.mxu0 %v1108
        %v1247 = vpop.f32.mrf.mxu0
        %v1248 = vadd.f32 %v956, %v1247
        %v1249 = vpop.f32.mrf.mxu0
        %v1250 = vpop.f32.mrf.mxu0
        %v1251 = vadd.f32 %v959, %v1250
        %v1252 = vpop.f32.mrf.mxu0
        %1253 = vmatprep.mubr.bf16.mxu0 0
        %1254 = vmatmul.mubr.bf16.gmra.mxu0 %v1111
        %v1255 = vpop.f32.mrf.mxu0
        %v1256 = vadd.f32 %v964, %v1255
        %v1257 = vpop.f32.mrf.mxu0
        %v1258 = vpop.f32.mrf.mxu0
        %v1259 = vadd.f32 %v967, %v1258
        %v1260 = vpop.f32.mrf.mxu0
        %1261 = vmatprep.mubr.bf16.mxu0 0
        %1262 = vmatmul.mubr.bf16.gmra.mxu0 %v1114
        %v1263 = vpop.f32.mrf.mxu0
        %v1264 = vadd.f32 %v972, %v1263
        %v1265 = vpop.f32.mrf.mxu0
        %v1266 = vpop.f32.mrf.mxu0
        %v1267 = vadd.f32 %v975, %v1266
        %v1268 = vpop.f32.mrf.mxu0
        %1269 = vmatprep.mubr.bf16.mxu0 0
        %1270 = vmatmul.mubr.bf16.gmra.mxu0 %v1117
        %v1271 = vpop.f32.mrf.mxu0
        %v1272 = vadd.f32 %v980, %v1271
        %v1273 = vpop.f32.mrf.mxu0
        %v1274 = vpop.f32.mrf.mxu0
        %v1275 = vadd.f32 %v983, %v1274
        %v1276 = vpop.f32.mrf.mxu0
        %1277 = vmatprep.mubr.bf16.mxu0 0
        %1278 = vmatmul.mubr.bf16.gmra.mxu0 %v1120
        %v1279 = vpop.f32.mrf.mxu0
        %v1280 = vadd.f32 %v988, %v1279
        %v1281 = vpop.f32.mrf.mxu0
        %v1282 = vpop.f32.mrf.mxu0
        %v1283 = vadd.f32 %v991, %v1282
        %v1284 = vpop.f32.mrf.mxu0
        %1285 = vdwg.mxu0
        %vm1302 = vcmask 1042432
        %vm1303 = vcmask 1046532
        %vm1304 = vmor %vm1302, %vm1303
        %v1305 = vrot.slane %v294, 5
        %v1306 = vrot.slane %v1305, 4
        %v1307 = vrot.slane %v295, 5
        %v1308 = vsel %vm1304, %v1306, %v1307
        %v1309 = vrot.slane %v1307, 4
        %v1310 = vrot.slane %v296, 5
        %v1311 = vsel %vm1304, %v1309, %v1310
        %v1312 = vrot.slane %v297, 5
        %v1313 = vrot.slane %v1312, 4
        %v1314 = vrot.slane %v298, 5
        %v1315 = vsel %vm1304, %v1313, %v1314
        %v1316 = vrot.slane %v1314, 4
        %v1317 = vrot.slane %v299, 5
        %v1318 = vsel %vm1304, %v1316, %v1317
        %v1319 = vrot.slane %v300, 5
        %v1320 = vrot.slane %v1319, 4
        %v1321 = vrot.slane %v301, 5
        %v1322 = vsel %vm1304, %v1320, %v1321
        %v1323 = vrot.slane %v1321, 4
        %v1324 = vrot.slane %v302, 5
        %v1325 = vsel %vm1304, %v1323, %v1324
        %v1326 = vrot.slane %v303, 5
        %v1327 = vrot.slane %v1326, 4
        %v1328 = vrot.slane %v304, 5
        %v1329 = vsel %vm1304, %v1327, %v1328
        %v1330 = vrot.slane %v1328, 4
        %v1331 = vrot.slane %v305, 5
        %v1332 = vsel %vm1304, %v1330, %v1331
        %v1333 = vrot.slane %v306, 5
        %v1334 = vrot.slane %v1333, 4
        %v1335 = vrot.slane %v307, 5
        %v1336 = vsel %vm1304, %v1334, %v1335
        %v1337 = vrot.slane %v1335, 4
        %v1338 = vrot.slane %v308, 5
        %v1339 = vsel %vm1304, %v1337, %v1338
        %v1340 = vrot.slane %v309, 5
        %v1341 = vrot.slane %v1340, 4
        %v1342 = vrot.slane %v310, 5
        %v1343 = vsel %vm1304, %v1341, %v1342
        %v1344 = vrot.slane %v1342, 4
        %v1345 = vrot.slane %v311, 5
        %v1346 = vsel %vm1304, %v1344, %v1345
        %v1347 = vrot.slane %v312, 5
        %v1348 = vrot.slane %v1347, 4
        %v1349 = vrot.slane %v313, 5
        %v1350 = vsel %vm1304, %v1348, %v1349
        %v1351 = vrot.slane %v1349, 4
        %v1352 = vrot.slane %v314, 5
        %v1353 = vsel %vm1304, %v1351, %v1352
        %v1354 = vrot.slane %v315, 5
        %v1355 = vrot.slane %v1354, 4
        %v1356 = vrot.slane %v316, 5
        %v1357 = vsel %vm1304, %v1355, %v1356
        %v1358 = vrot.slane %v1356, 4
        %v1359 = vrot.slane %v317, 5
        %v1360 = vsel %vm1304, %v1358, %v1359
        %v1361 = vrot.slane %v318, 5
        %v1362 = vrot.slane %v1361, 4
        %v1363 = vrot.slane %v319, 5
        %v1364 = vsel %vm1304, %v1362, %v1363
        %v1365 = vrot.slane %v1363, 4
        %v1366 = vrot.slane %v320, 5
        %v1367 = vsel %vm1304, %v1365, %v1366
        %v1368 = vrot.slane %v321, 5
        %v1369 = vrot.slane %v1368, 4
        %v1370 = vrot.slane %v322, 5
        %v1371 = vsel %vm1304, %v1369, %v1370
        %v1372 = vrot.slane %v1370, 4
        %v1373 = vrot.slane %v323, 5
        %v1374 = vsel %vm1304, %v1372, %v1373
        %v1375 = vrot.slane %v324, 5
        %v1376 = vrot.slane %v1375, 4
        %v1377 = vrot.slane %v325, 5
        %v1378 = vsel %vm1304, %v1376, %v1377
        %v1379 = vrot.slane %v1377, 4
        %v1380 = vrot.slane %v326, 5
        %v1381 = vsel %vm1304, %v1379, %v1380
        %v1382 = vrot.slane %v327, 5
        %v1383 = vrot.slane %v1382, 4
        %v1384 = vrot.slane %v328, 5
        %v1385 = vsel %vm1304, %v1383, %v1384
        %v1386 = vrot.slane %v1384, 4
        %v1387 = vrot.slane %v329, 5
        %v1388 = vsel %vm1304, %v1386, %v1387
        %v1389 = vrot.slane %v330, 5
        %v1390 = vrot.slane %v1389, 4
        %v1391 = vrot.slane %v331, 5
        %v1392 = vsel %vm1304, %v1390, %v1391
        %v1393 = vrot.slane %v1391, 4
        %v1394 = vrot.slane %v332, 5
        %v1395 = vsel %vm1304, %v1393, %v1394
        %v1396 = vrot.slane %v333, 5
        %v1397 = vrot.slane %v1396, 4
        %v1398 = vrot.slane %v334, 5
        %v1399 = vsel %vm1304, %v1397, %v1398
        %v1400 = vrot.slane %v1398, 4
        %v1401 = vrot.slane %v335, 5
        %v1402 = vsel %vm1304, %v1400, %v1401
        %v1403 = vrot.slane %v336, 5
        %v1404 = vrot.slane %v1403, 4
        %v1405 = vrot.slane %v337, 5
        %v1406 = vsel %vm1304, %v1404, %v1405
        %v1407 = vrot.slane %v1405, 4
        %v1408 = vrot.slane %v338, 5
        %v1409 = vsel %vm1304, %v1407, %v1408
        %v1410 = vrot.slane %v339, 5
        %v1411 = vrot.slane %v1410, 4
        %v1412 = vrot.slane %v340, 5
        %v1413 = vsel %vm1304, %v1411, %v1412
        %v1414 = vrot.slane %v1412, 4
        %v1415 = vrot.slane %v341, 5
        %v1416 = vsel %vm1304, %v1414, %v1415
        %s1417 = scalar_lea.vmem %s248, 4
        %v1418 = vld [vmem:[%s1417] sm:$0x3]
        %v1419 = vunpack.c.l.b16 %v1308
        %v1420 = vunpack.c.l.b16 %v1311
        %v1421 = vunpack.c.l.b16 %v1315
        %v1422 = vunpack.c.l.b16 %v1318
        %v1423 = vunpack.c.l.b16 %v1322
        %v1424 = vunpack.c.l.b16 %v1325
        %v1425 = vunpack.c.l.b16 %v1329
        %v1426 = vunpack.c.l.b16 %v1332
        %v1427 = vunpack.c.l.b16 %v1336
        %v1428 = vunpack.c.l.b16 %v1339
        %v1429 = vunpack.c.l.b16 %v1343
        %v1430 = vunpack.c.l.b16 %v1346
        %v1431 = vunpack.c.l.b16 %v1350
        %v1432 = vunpack.c.l.b16 %v1353
        %v1433 = vunpack.c.l.b16 %v1357
        %v1434 = vunpack.c.l.b16 %v1360
        %v1435 = vunpack.c.l.b16 %v1364
        %v1436 = vunpack.c.l.b16 %v1367
        %v1437 = vunpack.c.l.b16 %v1371
        %v1438 = vunpack.c.l.b16 %v1374
        %v1439 = vunpack.c.l.b16 %v1378
        %v1440 = vunpack.c.l.b16 %v1381
        %v1441 = vunpack.c.l.b16 %v1385
        %v1442 = vunpack.c.l.b16 %v1388
        %v1443 = vunpack.c.l.b16 %v1392
        %v1444 = vunpack.c.l.b16 %v1395
        %v1445 = vunpack.c.l.b16 %v1399
        %v1446 = vunpack.c.l.b16 %v1402
        %v1447 = vunpack.c.l.b16 %v1406
        %v1448 = vunpack.c.l.b16 %v1409
        %v1449 = vunpack.c.l.b16 %v1413
        %v1450 = vunpack.c.l.b16 %v1416
        %v1451 = vpack.c.b16 %v1420, %v1419
        %v1452 = vpack.c.b16 %v1422, %v1421
        %v1453 = vpack.c.b16 %v1424, %v1423
        %v1454 = vpack.c.b16 %v1426, %v1425
        %v1455 = vpack.c.b16 %v1428, %v1427
        %v1456 = vpack.c.b16 %v1430, %v1429
        %v1457 = vpack.c.b16 %v1432, %v1431
        %v1458 = vpack.c.b16 %v1434, %v1433
        %v1459 = vpack.c.b16 %v1436, %v1435
        %v1460 = vpack.c.b16 %v1438, %v1437
        %v1461 = vpack.c.b16 %v1440, %v1439
        %v1462 = vpack.c.b16 %v1442, %v1441
        %v1463 = vpack.c.b16 %v1444, %v1443
        %v1464 = vpack.c.b16 %v1446, %v1445
        %v1465 = vpack.c.b16 %v1448, %v1447
        %v1466 = vpack.c.b16 %v1450, %v1449
        %v1468 = vsel %vm780, %v1451, 0
        %v1471 = vsel %vm780, %v1452, 0
        %v1474 = vsel %vm780, %v1453, 0
        %v1477 = vsel %vm780, %v1454, 0
        %v1480 = vsel %vm780, %v1455, 0
        %v1483 = vsel %vm780, %v1456, 0
        %v1486 = vsel %vm780, %v1457, 0
        %v1489 = vsel %vm780, %v1458, 0
        %v1492 = vsel %vm780, %v1459, 0
        %v1495 = vsel %vm780, %v1460, 0
        %v1498 = vsel %vm780, %v1461, 0
        %v1501 = vsel %vm780, %v1462, 0
        %v1504 = vsel %vm780, %v1463, 0
        %v1507 = vsel %vm780, %v1464, 0
        %v1510 = vsel %vm780, %v1465, 0
        %v1513 = vsel %vm780, %v1466, 0
        %v1516 = vsel %vm829, %v1418, 0
        %1518 = vmatprep.subr.bf16.mxu0 0
        %1519 = vmatpush1.bf16.msra.mxu0 0
        %1520 = vmatprep.subr.bf16.mxu0 0
        %1521 = vmatpush1.bf16.msra.mxu0 0
        %1522 = vmatprep.subr.bf16.mxu0 0
        %1523 = vmatpush1.bf16.msra.mxu0 0
        %1524 = vmatprep.subr.bf16.mxu0 0
        %1525 = vmatpush1.bf16.msra.mxu0 0
        %1526 = vmatprep.subr.bf16.mxu0 0
        %1527 = vmatpush1.bf16.msra.mxu0 0
        %1528 = vmatprep.subr.bf16.mxu0 0
        %1529 = vmatpush1.bf16.msra.mxu0 0
        %1530 = vmatprep.subr.bf16.mxu0 0
        %1531 = vmatpush1.bf16.msra.mxu0 0
        %1532 = vmatprep.subr.bf16.mxu0 0
        %1533 = vmatpush1.bf16.msra.mxu0 %v1516
        %1534 = vmatprep.subr.bf16.mxu0 0
        %1535 = vmatpush2.bf16.msra.mxu0 0
        %1536 = vmatprep.subr.bf16.mxu0 0
        %1537 = vmatpush2.bf16.msra.mxu0 0
        %1538 = vmatprep.subr.bf16.mxu0 0
        %1539 = vmatpush2.bf16.msra.mxu0 0
        %1540 = vmatprep.subr.bf16.mxu0 0
        %1541 = vmatpush2.bf16.msra.mxu0 0
        %1542 = vmatprep.subr.bf16.mxu0 0
        %1543 = vmatpush2.bf16.msra.mxu0 0
        %1544 = vmatprep.subr.bf16.mxu0 0
        %1545 = vmatpush2.bf16.msra.mxu0 0
        %1546 = vmatprep.subr.bf16.mxu0 0
        %1547 = vmatpush2.bf16.msra.mxu0 0
        %1548 = vmatprep.subr.bf16.mxu0 0
        %1549 = vmatpush2.bf16.msra.mxu0 0
        %1550 = vmatprep.mubr.bf16.mxu0 0
        %1551 = vmatmul.mubr.bf16.gmra.mxu0 %v1468
        %v1552 = vpop.f32.mrf.mxu0
        %v1553 = vadd.f32 0.0, %v1552
        %v1554 = vpop.f32.mrf.mxu0
        %v1555 = vpop.f32.mrf.mxu0
        %v1556 = vadd.f32 0.0, %v1555
        %v1557 = vpop.f32.mrf.mxu0
        %1558 = vmatprep.mubr.bf16.mxu0 0
        %1559 = vmatmul.mubr.bf16.gmra.mxu0 %v1471
        %v1560 = vpop.f32.mrf.mxu0
        %v1561 = vadd.f32 0.0, %v1560
        %v1562 = vpop.f32.mrf.mxu0
        %v1563 = vpop.f32.mrf.mxu0
        %v1564 = vadd.f32 0.0, %v1563
        %v1565 = vpop.f32.mrf.mxu0
        %1566 = vmatprep.mubr.bf16.mxu0 0
        %1567 = vmatmul.mubr.bf16.gmra.mxu0 %v1474
        %v1568 = vpop.f32.mrf.mxu0
        %v1569 = vadd.f32 0.0, %v1568
        %v1570 = vpop.f32.mrf.mxu0
        %v1571 = vpop.f32.mrf.mxu0
        %v1572 = vadd.f32 0.0, %v1571
        %v1573 = vpop.f32.mrf.mxu0
        %1574 = vmatprep.mubr.bf16.mxu0 0
        %1575 = vmatmul.mubr.bf16.gmra.mxu0 %v1477
        %v1576 = vpop.f32.mrf.mxu0
        %v1577 = vadd.f32 0.0, %v1576
        %v1578 = vpop.f32.mrf.mxu0
        %v1579 = vpop.f32.mrf.mxu0
        %v1580 = vadd.f32 0.0, %v1579
        %v1581 = vpop.f32.mrf.mxu0
        %1582 = vmatprep.mubr.bf16.mxu0 0
        %1583 = vmatmul.mubr.bf16.gmra.mxu0 %v1480
        %v1584 = vpop.f32.mrf.mxu0
        %v1585 = vadd.f32 0.0, %v1584
        %v1586 = vpop.f32.mrf.mxu0
        %v1587 = vpop.f32.mrf.mxu0
        %v1588 = vadd.f32 0.0, %v1587
        %v1589 = vpop.f32.mrf.mxu0
        %1590 = vmatprep.mubr.bf16.mxu0 0
        %1591 = vmatmul.mubr.bf16.gmra.mxu0 %v1483
        %v1592 = vpop.f32.mrf.mxu0
        %v1593 = vadd.f32 0.0, %v1592
        %v1594 = vpop.f32.mrf.mxu0
        %v1595 = vpop.f32.mrf.mxu0
        %v1596 = vadd.f32 0.0, %v1595
        %v1597 = vpop.f32.mrf.mxu0
        %1598 = vmatprep.mubr.bf16.mxu0 0
        %1599 = vmatmul.mubr.bf16.gmra.mxu0 %v1486
        %v1600 = vpop.f32.mrf.mxu0
        %v1601 = vadd.f32 0.0, %v1600
        %v1602 = vpop.f32.mrf.mxu0
        %v1603 = vpop.f32.mrf.mxu0
        %v1604 = vadd.f32 0.0, %v1603
        %v1605 = vpop.f32.mrf.mxu0
        %1606 = vmatprep.mubr.bf16.mxu0 0
        %1607 = vmatmul.mubr.bf16.gmra.mxu0 %v1489
        %v1608 = vpop.f32.mrf.mxu0
        %v1609 = vadd.f32 0.0, %v1608
        %v1610 = vpop.f32.mrf.mxu0
        %v1611 = vpop.f32.mrf.mxu0
        %v1612 = vadd.f32 0.0, %v1611
        %v1613 = vpop.f32.mrf.mxu0
        %1614 = vmatprep.mubr.bf16.mxu0 0
        %1615 = vmatmul.mubr.bf16.gmra.mxu0 %v1492
        %v1616 = vpop.f32.mrf.mxu0
        %v1617 = vadd.f32 0.0, %v1616
        %v1618 = vpop.f32.mrf.mxu0
        %v1619 = vpop.f32.mrf.mxu0
        %v1620 = vadd.f32 0.0, %v1619
        %v1621 = vpop.f32.mrf.mxu0
        %1622 = vmatprep.mubr.bf16.mxu0 0
        %1623 = vmatmul.mubr.bf16.gmra.mxu0 %v1495
        %v1624 = vpop.f32.mrf.mxu0
        %v1625 = vadd.f32 0.0, %v1624
        %v1626 = vpop.f32.mrf.mxu0
        %v1627 = vpop.f32.mrf.mxu0
        %v1628 = vadd.f32 0.0, %v1627
        %v1629 = vpop.f32.mrf.mxu0
        %1630 = vmatprep.mubr.bf16.mxu0 0
        %1631 = vmatmul.mubr.bf16.gmra.mxu0 %v1498
        %v1632 = vpop.f32.mrf.mxu0
        %v1633 = vadd.f32 0.0, %v1632
        %v1634 = vpop.f32.mrf.mxu0
        %v1635 = vpop.f32.mrf.mxu0
        %v1636 = vadd.f32 0.0, %v1635
        %v1637 = vpop.f32.mrf.mxu0
        %1638 = vmatprep.mubr.bf16.mxu0 0
        %1639 = vmatmul.mubr.bf16.gmra.mxu0 %v1501
        %v1640 = vpop.f32.mrf.mxu0
        %v1641 = vadd.f32 0.0, %v1640
        %v1642 = vpop.f32.mrf.mxu0
        %v1643 = vpop.f32.mrf.mxu0
        %v1644 = vadd.f32 0.0, %v1643
        %v1645 = vpop.f32.mrf.mxu0
        %1646 = vmatprep.mubr.bf16.mxu0 0
        %1647 = vmatmul.mubr.bf16.gmra.mxu0 %v1504
        %v1648 = vpop.f32.mrf.mxu0
        %v1649 = vadd.f32 0.0, %v1648
        %v1650 = vpop.f32.mrf.mxu0
        %v1651 = vpop.f32.mrf.mxu0
        %v1652 = vadd.f32 0.0, %v1651
        %v1653 = vpop.f32.mrf.mxu0
        %1654 = vmatprep.mubr.bf16.mxu0 0
        %1655 = vmatmul.mubr.bf16.gmra.mxu0 %v1507
        %v1656 = vpop.f32.mrf.mxu0
        %v1657 = vadd.f32 0.0, %v1656
        %v1658 = vpop.f32.mrf.mxu0
        %v1659 = vpop.f32.mrf.mxu0
        %v1660 = vadd.f32 0.0, %v1659
        %v1661 = vpop.f32.mrf.mxu0
        %1662 = vmatprep.mubr.bf16.mxu0 0
        %1663 = vmatmul.mubr.bf16.gmra.mxu0 %v1510
        %v1664 = vpop.f32.mrf.mxu0
        %v1665 = vadd.f32 0.0, %v1664
        %v1666 = vpop.f32.mrf.mxu0
        %v1667 = vpop.f32.mrf.mxu0
        %v1668 = vadd.f32 0.0, %v1667
        %v1669 = vpop.f32.mrf.mxu0
        %1670 = vmatprep.mubr.bf16.mxu0 0
        %1671 = vmatmul.mubr.bf16.gmra.mxu0 %v1513
        %v1672 = vpop.f32.mrf.mxu0
        %v1673 = vadd.f32 0.0, %v1672
        %v1674 = vpop.f32.mrf.mxu0
        %v1675 = vpop.f32.mrf.mxu0
        %v1676 = vadd.f32 0.0, %v1675
        %v1677 = vpop.f32.mrf.mxu0
        %1678 = vdwg.mxu0
        %v1679 = vadd.f32 %v1160, %v1553
        %v1680 = vadd.f32 %v1163, %v1556
        %v1681 = vadd.f32 %v1168, %v1561
        %v1682 = vadd.f32 %v1171, %v1564
        %v1683 = vadd.f32 %v1176, %v1569
        %v1684 = vadd.f32 %v1179, %v1572
        %v1685 = vadd.f32 %v1184, %v1577
        %v1686 = vadd.f32 %v1187, %v1580
        %v1687 = vadd.f32 %v1192, %v1585
        %v1688 = vadd.f32 %v1195, %v1588
        %v1689 = vadd.f32 %v1200, %v1593
        %v1690 = vadd.f32 %v1203, %v1596
        %v1691 = vadd.f32 %v1208, %v1601
        %v1692 = vadd.f32 %v1211, %v1604
        %v1693 = vadd.f32 %v1216, %v1609
        %v1694 = vadd.f32 %v1219, %v1612
        %v1695 = vadd.f32 %v1224, %v1617
        %v1696 = vadd.f32 %v1227, %v1620
        %v1697 = vadd.f32 %v1232, %v1625
        %v1698 = vadd.f32 %v1235, %v1628
        %v1699 = vadd.f32 %v1240, %v1633
        %v1700 = vadd.f32 %v1243, %v1636
        %v1701 = vadd.f32 %v1248, %v1641
        %v1702 = vadd.f32 %v1251, %v1644
        %v1703 = vadd.f32 %v1256, %v1649
        %v1704 = vadd.f32 %v1259, %v1652
        %v1705 = vadd.f32 %v1264, %v1657
        %v1706 = vadd.f32 %v1267, %v1660
        %v1707 = vadd.f32 %v1272, %v1665
        %v1708 = vadd.f32 %v1275, %v1668
        %v1709 = vadd.f32 %v1280, %v1673
        %v1710 = vadd.f32 %v1283, %v1676
        %s1711 = sadd.s32 %s290, 1
        %s1712 = smul.u32 %s1711, 3
        %s1713 = smul.addr %s1712, 4
        %s1714 = scalar_lea.vmem %s241, %s1713
        %v1715 = vld [vmem:[%s1714] sm:$0xf]
        %v1716 = vld [vmem:[%s1714 + $0x4] sm:$0xf]
        %v1717 = vld [vmem:[%s1714 + $0x8] sm:$0x1]
        %v1718 = vld [vmem:[%s1714 + $0xc] sm:$0xf]
        %v1719 = vld [vmem:[%s1714 + $0x10] sm:$0xf]
        %v1720 = vld [vmem:[%s1714 + $0x14] sm:$0x1]
        %v1721 = vld [vmem:[%s1714 + $0x18] sm:$0xf]
        %v1722 = vld [vmem:[%s1714 + $0x1c] sm:$0xf]
        %v1723 = vld [vmem:[%s1714 + $0x20] sm:$0x1]
        %v1724 = vld [vmem:[%s1714 + $0x24] sm:$0xf]
        %v1725 = vld [vmem:[%s1714 + $0x28] sm:$0xf]
        %v1726 = vld [vmem:[%s1714 + $0x2c] sm:$0x1]
        %v1727 = vld [vmem:[%s1714 + $0x30] sm:$0xf]
        %v1728 = vld [vmem:[%s1714 + $0x34] sm:$0xf]
        %v1729 = vld [vmem:[%s1714 + $0x38] sm:$0x1]
        %v1730 = vld [vmem:[%s1714 + $0x3c] sm:$0xf]
        %v1731 = vld [vmem:[%s1714 + $0x40] sm:$0xf]
        %v1732 = vld [vmem:[%s1714 + $0x44] sm:$0x1]
        %v1733 = vld [vmem:[%s1714 + $0x48] sm:$0xf]
        %v1734 = vld [vmem:[%s1714 + $0x4c] sm:$0xf]
        %v1735 = vld [vmem:[%s1714 + $0x50] sm:$0x1]
        %v1736 = vld [vmem:[%s1714 + $0x54] sm:$0xf]
        %v1737 = vld [vmem:[%s1714 + $0x58] sm:$0xf]
        %v1738 = vld [vmem:[%s1714 + $0x5c] sm:$0x1]
        %v1739 = vld [vmem:[%s1714 + $0x60] sm:$0xf]
        %v1740 = vld [vmem:[%s1714 + $0x64] sm:$0xf]
        %v1741 = vld [vmem:[%s1714 + $0x68] sm:$0x1]
        %v1742 = vld [vmem:[%s1714 + $0x6c] sm:$0xf]
        %v1743 = vld [vmem:[%s1714 + $0x70] sm:$0xf]
        %v1744 = vld [vmem:[%s1714 + $0x74] sm:$0x1]
        %v1745 = vld [vmem:[%s1714 + $0x78] sm:$0xf]
        %v1746 = vld [vmem:[%s1714 + $0x7c] sm:$0xf]
        %v1747 = vld [vmem:[%s1714 + $0x80] sm:$0x1]
        %v1748 = vld [vmem:[%s1714 + $0x84] sm:$0xf]
        %v1749 = vld [vmem:[%s1714 + $0x88] sm:$0xf]
        %v1750 = vld [vmem:[%s1714 + $0x8c] sm:$0x1]
        %v1751 = vld [vmem:[%s1714 + $0x90] sm:$0xf]
        %v1752 = vld [vmem:[%s1714 + $0x94] sm:$0xf]
        %v1753 = vld [vmem:[%s1714 + $0x98] sm:$0x1]
        %v1754 = vld [vmem:[%s1714 + $0x9c] sm:$0xf]
        %v1755 = vld [vmem:[%s1714 + $0xa0] sm:$0xf]
        %v1756 = vld [vmem:[%s1714 + $0xa4] sm:$0x1]
        %v1757 = vld [vmem:[%s1714 + $0xa8] sm:$0xf]
        %v1758 = vld [vmem:[%s1714 + $0xac] sm:$0xf]
        %v1759 = vld [vmem:[%s1714 + $0xb0] sm:$0x1]
        %v1760 = vld [vmem:[%s1714 + $0xb4] sm:$0xf]
        %v1761 = vld [vmem:[%s1714 + $0xb8] sm:$0xf]
        %v1762 = vld [vmem:[%s1714 + $0xbc] sm:$0x1]
        %s1763 = scalar_lea.vmem %s248, 6
        %v1764 = vld [vmem:[%s1763] sm:$0x3]
        %v1797 = vunpack.c.l.b16 %v1715
        %v1798 = vunpack.c.l.b16 %v1716
        %v1799 = vunpack.c.l.b16 %v1718
        %v1800 = vunpack.c.l.b16 %v1719
        %v1801 = vunpack.c.l.b16 %v1721
        %v1802 = vunpack.c.l.b16 %v1722
        %v1803 = vunpack.c.l.b16 %v1724
        %v1804 = vunpack.c.l.b16 %v1725
        %v1805 = vunpack.c.l.b16 %v1727
        %v1806 = vunpack.c.l.b16 %v1728
        %v1807 = vunpack.c.l.b16 %v1730
        %v1808 = vunpack.c.l.b16 %v1731
        %v1809 = vunpack.c.l.b16 %v1733
        %v1810 = vunpack.c.l.b16 %v1734
        %v1811 = vunpack.c.l.b16 %v1736
        %v1812 = vunpack.c.l.b16 %v1737
        %v1813 = vunpack.c.l.b16 %v1739
        %v1814 = vunpack.c.l.b16 %v1740
        %v1815 = vunpack.c.l.b16 %v1742
        %v1816 = vunpack.c.l.b16 %v1743
        %v1817 = vunpack.c.l.b16 %v1745
        %v1818 = vunpack.c.l.b16 %v1746
        %v1819 = vunpack.c.l.b16 %v1748
        %v1820 = vunpack.c.l.b16 %v1749
        %v1821 = vunpack.c.l.b16 %v1751
        %v1822 = vunpack.c.l.b16 %v1752
        %v1823 = vunpack.c.l.b16 %v1754
        %v1824 = vunpack.c.l.b16 %v1755
        %v1825 = vunpack.c.l.b16 %v1757
        %v1826 = vunpack.c.l.b16 %v1758
        %v1827 = vunpack.c.l.b16 %v1760
        %v1828 = vunpack.c.l.b16 %v1761
        %v1829 = vpack.c.b16 %v1798, %v1797
        %v1830 = vpack.c.b16 %v1800, %v1799
        %v1831 = vpack.c.b16 %v1802, %v1801
        %v1832 = vpack.c.b16 %v1804, %v1803
        %v1833 = vpack.c.b16 %v1806, %v1805
        %v1834 = vpack.c.b16 %v1808, %v1807
        %v1835 = vpack.c.b16 %v1810, %v1809
        %v1836 = vpack.c.b16 %v1812, %v1811
        %v1837 = vpack.c.b16 %v1814, %v1813
        %v1838 = vpack.c.b16 %v1816, %v1815
        %v1839 = vpack.c.b16 %v1818, %v1817
        %v1840 = vpack.c.b16 %v1820, %v1819
        %v1841 = vpack.c.b16 %v1822, %v1821
        %v1842 = vpack.c.b16 %v1824, %v1823
        %v1843 = vpack.c.b16 %v1826, %v1825
        %v1844 = vpack.c.b16 %v1828, %v1827
        %v1846 = vsel %vm780, %v1829, 0
        %v1849 = vsel %vm780, %v1830, 0
        %v1852 = vsel %vm780, %v1831, 0
        %v1855 = vsel %vm780, %v1832, 0
        %v1858 = vsel %vm780, %v1833, 0
        %v1861 = vsel %vm780, %v1834, 0
        %v1864 = vsel %vm780, %v1835, 0
        %v1867 = vsel %vm780, %v1836, 0
        %v1870 = vsel %vm780, %v1837, 0
        %v1873 = vsel %vm780, %v1838, 0
        %v1876 = vsel %vm780, %v1839, 0
        %v1879 = vsel %vm780, %v1840, 0
        %v1882 = vsel %vm780, %v1841, 0
        %v1885 = vsel %vm780, %v1842, 0
        %v1888 = vsel %vm780, %v1843, 0
        %v1891 = vsel %vm780, %v1844, 0
        %v1894 = vsel %vm829, %v1764, 0
        %1896 = vmatprep.subr.bf16.mxu0 0
        %1897 = vmatpush1.bf16.msra.mxu0 0
        %1898 = vmatprep.subr.bf16.mxu0 0
        %1899 = vmatpush1.bf16.msra.mxu0 0
        %1900 = vmatprep.subr.bf16.mxu0 0
        %1901 = vmatpush1.bf16.msra.mxu0 0
        %1902 = vmatprep.subr.bf16.mxu0 0
        %1903 = vmatpush1.bf16.msra.mxu0 0
        %1904 = vmatprep.subr.bf16.mxu0 0
        %1905 = vmatpush1.bf16.msra.mxu0 0
        %1906 = vmatprep.subr.bf16.mxu0 0
        %1907 = vmatpush1.bf16.msra.mxu0 0
        %1908 = vmatprep.subr.bf16.mxu0 0
        %1909 = vmatpush1.bf16.msra.mxu0 0
        %1910 = vmatprep.subr.bf16.mxu0 0
        %1911 = vmatpush1.bf16.msra.mxu0 %v1894
        %1912 = vmatprep.subr.bf16.mxu0 0
        %1913 = vmatpush2.bf16.msra.mxu0 0
        %1914 = vmatprep.subr.bf16.mxu0 0
        %1915 = vmatpush2.bf16.msra.mxu0 0
        %1916 = vmatprep.subr.bf16.mxu0 0
        %1917 = vmatpush2.bf16.msra.mxu0 0
        %1918 = vmatprep.subr.bf16.mxu0 0
        %1919 = vmatpush2.bf16.msra.mxu0 0
        %1920 = vmatprep.subr.bf16.mxu0 0
        %1921 = vmatpush2.bf16.msra.mxu0 0
        %1922 = vmatprep.subr.bf16.mxu0 0
        %1923 = vmatpush2.bf16.msra.mxu0 0
        %1924 = vmatprep.subr.bf16.mxu0 0
        %1925 = vmatpush2.bf16.msra.mxu0 0
        %1926 = vmatprep.subr.bf16.mxu0 0
        %1927 = vmatpush2.bf16.msra.mxu0 0
        %1928 = vmatprep.mubr.bf16.mxu0 0
        %1929 = vmatmul.mubr.bf16.gmra.mxu0 %v1846
        %v1930 = vpop.f32.mrf.mxu0
        %v1931 = vadd.f32 0.0, %v1930
        %v1932 = vpop.f32.mrf.mxu0
        %v1933 = vpop.f32.mrf.mxu0
        %v1934 = vadd.f32 0.0, %v1933
        %v1935 = vpop.f32.mrf.mxu0
        %1936 = vmatprep.mubr.bf16.mxu0 0
        %1937 = vmatmul.mubr.bf16.gmra.mxu0 %v1849
        %v1938 = vpop.f32.mrf.mxu0
        %v1939 = vadd.f32 0.0, %v1938
        %v1940 = vpop.f32.mrf.mxu0
        %v1941 = vpop.f32.mrf.mxu0
        %v1942 = vadd.f32 0.0, %v1941
        %v1943 = vpop.f32.mrf.mxu0
        %1944 = vmatprep.mubr.bf16.mxu0 0
        %1945 = vmatmul.mubr.bf16.gmra.mxu0 %v1852
        %v1946 = vpop.f32.mrf.mxu0
        %v1947 = vadd.f32 0.0, %v1946
        %v1948 = vpop.f32.mrf.mxu0
        %v1949 = vpop.f32.mrf.mxu0
        %v1950 = vadd.f32 0.0, %v1949
        %v1951 = vpop.f32.mrf.mxu0
        %1952 = vmatprep.mubr.bf16.mxu0 0
        %1953 = vmatmul.mubr.bf16.gmra.mxu0 %v1855
        %v1954 = vpop.f32.mrf.mxu0
        %v1955 = vadd.f32 0.0, %v1954
        %v1956 = vpop.f32.mrf.mxu0
        %v1957 = vpop.f32.mrf.mxu0
        %v1958 = vadd.f32 0.0, %v1957
        %v1959 = vpop.f32.mrf.mxu0
        %1960 = vmatprep.mubr.bf16.mxu0 0
        %1961 = vmatmul.mubr.bf16.gmra.mxu0 %v1858
        %v1962 = vpop.f32.mrf.mxu0
        %v1963 = vadd.f32 0.0, %v1962
        %v1964 = vpop.f32.mrf.mxu0
        %v1965 = vpop.f32.mrf.mxu0
        %v1966 = vadd.f32 0.0, %v1965
        %v1967 = vpop.f32.mrf.mxu0
        %1968 = vmatprep.mubr.bf16.mxu0 0
        %1969 = vmatmul.mubr.bf16.gmra.mxu0 %v1861
        %v1970 = vpop.f32.mrf.mxu0
        %v1971 = vadd.f32 0.0, %v1970
        %v1972 = vpop.f32.mrf.mxu0
        %v1973 = vpop.f32.mrf.mxu0
        %v1974 = vadd.f32 0.0, %v1973
        %v1975 = vpop.f32.mrf.mxu0
        %1976 = vmatprep.mubr.bf16.mxu0 0
        %1977 = vmatmul.mubr.bf16.gmra.mxu0 %v1864
        %v1978 = vpop.f32.mrf.mxu0
        %v1979 = vadd.f32 0.0, %v1978
        %v1980 = vpop.f32.mrf.mxu0
        %v1981 = vpop.f32.mrf.mxu0
        %v1982 = vadd.f32 0.0, %v1981
        %v1983 = vpop.f32.mrf.mxu0
        %1984 = vmatprep.mubr.bf16.mxu0 0
        %1985 = vmatmul.mubr.bf16.gmra.mxu0 %v1867
        %v1986 = vpop.f32.mrf.mxu0
        %v1987 = vadd.f32 0.0, %v1986
        %v1988 = vpop.f32.mrf.mxu0
        %v1989 = vpop.f32.mrf.mxu0
        %v1990 = vadd.f32 0.0, %v1989
        %v1991 = vpop.f32.mrf.mxu0
        %1992 = vmatprep.mubr.bf16.mxu0 0
        %1993 = vmatmul.mubr.bf16.gmra.mxu0 %v1870
        %v1994 = vpop.f32.mrf.mxu0
        %v1995 = vadd.f32 0.0, %v1994
        %v1996 = vpop.f32.mrf.mxu0
        %v1997 = vpop.f32.mrf.mxu0
        %v1998 = vadd.f32 0.0, %v1997
        %v1999 = vpop.f32.mrf.mxu0
        %2000 = vmatprep.mubr.bf16.mxu0 0
        %2001 = vmatmul.mubr.bf16.gmra.mxu0 %v1873
        %v2002 = vpop.f32.mrf.mxu0
        %v2003 = vadd.f32 0.0, %v2002
        %v2004 = vpop.f32.mrf.mxu0
        %v2005 = vpop.f32.mrf.mxu0
        %v2006 = vadd.f32 0.0, %v2005
        %v2007 = vpop.f32.mrf.mxu0
        %2008 = vmatprep.mubr.bf16.mxu0 0
        %2009 = vmatmul.mubr.bf16.gmra.mxu0 %v1876
        %v2010 = vpop.f32.mrf.mxu0
        %v2011 = vadd.f32 0.0, %v2010
        %v2012 = vpop.f32.mrf.mxu0
        %v2013 = vpop.f32.mrf.mxu0
        %v2014 = vadd.f32 0.0, %v2013
        %v2015 = vpop.f32.mrf.mxu0
        %2016 = vmatprep.mubr.bf16.mxu0 0
        %2017 = vmatmul.mubr.bf16.gmra.mxu0 %v1879
        %v2018 = vpop.f32.mrf.mxu0
        %v2019 = vadd.f32 0.0, %v2018
        %v2020 = vpop.f32.mrf.mxu0
        %v2021 = vpop.f32.mrf.mxu0
        %v2022 = vadd.f32 0.0, %v2021
        %v2023 = vpop.f32.mrf.mxu0
        %2024 = vmatprep.mubr.bf16.mxu0 0
        %2025 = vmatmul.mubr.bf16.gmra.mxu0 %v1882
        %v2026 = vpop.f32.mrf.mxu0
        %v2027 = vadd.f32 0.0, %v2026
        %v2028 = vpop.f32.mrf.mxu0
        %v2029 = vpop.f32.mrf.mxu0
        %v2030 = vadd.f32 0.0, %v2029
        %v2031 = vpop.f32.mrf.mxu0
        %2032 = vmatprep.mubr.bf16.mxu0 0
        %2033 = vmatmul.mubr.bf16.gmra.mxu0 %v1885
        %v2034 = vpop.f32.mrf.mxu0
        %v2035 = vadd.f32 0.0, %v2034
        %v2036 = vpop.f32.mrf.mxu0
        %v2037 = vpop.f32.mrf.mxu0
        %v2038 = vadd.f32 0.0, %v2037
        %v2039 = vpop.f32.mrf.mxu0
        %2040 = vmatprep.mubr.bf16.mxu0 0
        %2041 = vmatmul.mubr.bf16.gmra.mxu0 %v1888
        %v2042 = vpop.f32.mrf.mxu0
        %v2043 = vadd.f32 0.0, %v2042
        %v2044 = vpop.f32.mrf.mxu0
        %v2045 = vpop.f32.mrf.mxu0
        %v2046 = vadd.f32 0.0, %v2045
        %v2047 = vpop.f32.mrf.mxu0
        %2048 = vmatprep.mubr.bf16.mxu0 0
        %2049 = vmatmul.mubr.bf16.gmra.mxu0 %v1891
        %v2050 = vpop.f32.mrf.mxu0
        %v2051 = vadd.f32 0.0, %v2050
        %v2052 = vpop.f32.mrf.mxu0
        %v2053 = vpop.f32.mrf.mxu0
        %v2054 = vadd.f32 0.0, %v2053
        %v2055 = vpop.f32.mrf.mxu0
        %2056 = vdwg.mxu0
        %v2057 = vadd.f32 %v1679, %v1931
        %v2058 = vadd.f32 %v1680, %v1934
        %v2059 = vadd.f32 %v1681, %v1939
        %v2060 = vadd.f32 %v1682, %v1942
        %v2061 = vadd.f32 %v1683, %v1947
        %v2062 = vadd.f32 %v1684, %v1950
        %v2063 = vadd.f32 %v1685, %v1955
        %v2064 = vadd.f32 %v1686, %v1958
        %v2065 = vadd.f32 %v1687, %v1963
        %v2066 = vadd.f32 %v1688, %v1966
        %v2067 = vadd.f32 %v1689, %v1971
        %v2068 = vadd.f32 %v1690, %v1974
        %v2069 = vadd.f32 %v1691, %v1979
        %v2070 = vadd.f32 %v1692, %v1982
        %v2071 = vadd.f32 %v1693, %v1987
        %v2072 = vadd.f32 %v1694, %v1990
        %v2073 = vadd.f32 %v1695, %v1995
        %v2074 = vadd.f32 %v1696, %v1998
        %v2075 = vadd.f32 %v1697, %v2003
        %v2076 = vadd.f32 %v1698, %v2006
        %v2077 = vadd.f32 %v1699, %v2011
        %v2078 = vadd.f32 %v1700, %v2014
        %v2079 = vadd.f32 %v1701, %v2019
        %v2080 = vadd.f32 %v1702, %v2022
        %v2081 = vadd.f32 %v1703, %v2027
        %v2082 = vadd.f32 %v1704, %v2030
        %v2083 = vadd.f32 %v1705, %v2035
        %v2084 = vadd.f32 %v1706, %v2038
        %v2085 = vadd.f32 %v1707, %v2043
        %v2086 = vadd.f32 %v1708, %v2046
        %v2087 = vadd.f32 %v1709, %v2051
        %v2088 = vadd.f32 %v1710, %v2054
        %v2090 = vshrl.u32 %v1715, 16
        %v2092 = vrot.slane %v2090, 4
        %v2093 = vshll.u32 %v1715, 16
        %v2095 = vrot.slane %v2093, 5
        %v2096 = vor.u32 %v2092, %v2095
        %v2097 = vrot.slane %v2096, 4
        %v2099 = vshll.u32 %v1716, 16
        %v2101 = vrot.slane %v2099, 5
        %v2102 = vsel %vm345, %v2097, %v2101
        %v2103 = vshrl.u32 %v1716, 16
        %v2105 = vrot.slane %v2103, 4
        %v2106 = vor.u32 %v2105, %v2101
        %v2107 = vrot.slane %v2106, 4
        %v2109 = vshll.u32 %v1717, 16
        %v2111 = vrot.slane %v2109, 5
        %v2112 = vsel %vm345, %v2107, %v2111
        %v2114 = vshrl.u32 %v1718, 16
        %v2116 = vrot.slane %v2114, 4
        %v2117 = vshll.u32 %v1718, 16
        %v2119 = vrot.slane %v2117, 5
        %v2120 = vor.u32 %v2116, %v2119
        %v2121 = vrot.slane %v2120, 4
        %v2123 = vshll.u32 %v1719, 16
        %v2125 = vrot.slane %v2123, 5
        %v2126 = vsel %vm345, %v2121, %v2125
        %v2127 = vshrl.u32 %v1719, 16
        %v2129 = vrot.slane %v2127, 4
        %v2130 = vor.u32 %v2129, %v2125
        %v2131 = vrot.slane %v2130, 4
        %v2133 = vshll.u32 %v1720, 16
        %v2135 = vrot.slane %v2133, 5
        %v2136 = vsel %vm345, %v2131, %v2135
        %v2138 = vshrl.u32 %v1721, 16
        %v2140 = vrot.slane %v2138, 4
        %v2141 = vshll.u32 %v1721, 16
        %v2143 = vrot.slane %v2141, 5
        %v2144 = vor.u32 %v2140, %v2143
        %v2145 = vrot.slane %v2144, 4
        %v2147 = vshll.u32 %v1722, 16
        %v2149 = vrot.slane %v2147, 5
        %v2150 = vsel %vm345, %v2145, %v2149
        %v2151 = vshrl.u32 %v1722, 16
        %v2153 = vrot.slane %v2151, 4
        %v2154 = vor.u32 %v2153, %v2149
        %v2155 = vrot.slane %v2154, 4
        %v2157 = vshll.u32 %v1723, 16
        %v2159 = vrot.slane %v2157, 5
        %v2160 = vsel %vm345, %v2155, %v2159
        %v2162 = vshrl.u32 %v1724, 16
        %v2164 = vrot.slane %v2162, 4
        %v2165 = vshll.u32 %v1724, 16
        %v2167 = vrot.slane %v2165, 5
        %v2168 = vor.u32 %v2164, %v2167
        %v2169 = vrot.slane %v2168, 4
        %v2171 = vshll.u32 %v1725, 16
        %v2173 = vrot.slane %v2171, 5
        %v2174 = vsel %vm345, %v2169, %v2173
        %v2175 = vshrl.u32 %v1725, 16
        %v2177 = vrot.slane %v2175, 4
        %v2178 = vor.u32 %v2177, %v2173
        %v2179 = vrot.slane %v2178, 4
        %v2181 = vshll.u32 %v1726, 16
        %v2183 = vrot.slane %v2181, 5
        %v2184 = vsel %vm345, %v2179, %v2183
        %v2186 = vshrl.u32 %v1727, 16
        %v2188 = vrot.slane %v2186, 4
        %v2189 = vshll.u32 %v1727, 16
        %v2191 = vrot.slane %v2189, 5
        %v2192 = vor.u32 %v2188, %v2191
        %v2193 = vrot.slane %v2192, 4
        %v2195 = vshll.u32 %v1728, 16
        %v2197 = vrot.slane %v2195, 5
        %v2198 = vsel %vm345, %v2193, %v2197
        %v2199 = vshrl.u32 %v1728, 16
        %v2201 = vrot.slane %v2199, 4
        %v2202 = vor.u32 %v2201, %v2197
        %v2203 = vrot.slane %v2202, 4
        %v2205 = vshll.u32 %v1729, 16
        %v2207 = vrot.slane %v2205, 5
        %v2208 = vsel %vm345, %v2203, %v2207
        %v2210 = vshrl.u32 %v1730, 16
        %v2212 = vrot.slane %v2210, 4
        %v2213 = vshll.u32 %v1730, 16
        %v2215 = vrot.slane %v2213, 5
        %v2216 = vor.u32 %v2212, %v2215
        %v2217 = vrot.slane %v2216, 4
        %v2219 = vshll.u32 %v1731, 16
        %v2221 = vrot.slane %v2219, 5
        %v2222 = vsel %vm345, %v2217, %v2221
        %v2223 = vshrl.u32 %v1731, 16
        %v2225 = vrot.slane %v2223, 4
        %v2226 = vor.u32 %v2225, %v2221
        %v2227 = vrot.slane %v2226, 4
        %v2229 = vshll.u32 %v1732, 16
        %v2231 = vrot.slane %v2229, 5
        %v2232 = vsel %vm345, %v2227, %v2231
        %v2234 = vshrl.u32 %v1733, 16
        %v2236 = vrot.slane %v2234, 4
        %v2237 = vshll.u32 %v1733, 16
        %v2239 = vrot.slane %v2237, 5
        %v2240 = vor.u32 %v2236, %v2239
        %v2241 = vrot.slane %v2240, 4
        %v2243 = vshll.u32 %v1734, 16
        %v2245 = vrot.slane %v2243, 5
        %v2246 = vsel %vm345, %v2241, %v2245
        %v2247 = vshrl.u32 %v1734, 16
        %v2249 = vrot.slane %v2247, 4
        %v2250 = vor.u32 %v2249, %v2245
        %v2251 = vrot.slane %v2250, 4
        %v2253 = vshll.u32 %v1735, 16
        %v2255 = vrot.slane %v2253, 5
        %v2256 = vsel %vm345, %v2251, %v2255
        %v2258 = vshrl.u32 %v1736, 16
        %v2260 = vrot.slane %v2258, 4
        %v2261 = vshll.u32 %v1736, 16
        %v2263 = vrot.slane %v2261, 5
        %v2264 = vor.u32 %v2260, %v2263
        %v2265 = vrot.slane %v2264, 4
        %v2267 = vshll.u32 %v1737, 16
        %v2269 = vrot.slane %v2267, 5
        %v2270 = vsel %vm345, %v2265, %v2269
        %v2271 = vshrl.u32 %v1737, 16
        %v2273 = vrot.slane %v2271, 4
        %v2274 = vor.u32 %v2273, %v2269
        %v2275 = vrot.slane %v2274, 4
        %v2277 = vshll.u32 %v1738, 16
        %v2279 = vrot.slane %v2277, 5
        %v2280 = vsel %vm345, %v2275, %v2279
        %v2282 = vshrl.u32 %v1739, 16
        %v2284 = vrot.slane %v2282, 4
        %v2285 = vshll.u32 %v1739, 16
        %v2287 = vrot.slane %v2285, 5
        %v2288 = vor.u32 %v2284, %v2287
        %v2289 = vrot.slane %v2288, 4
        %v2291 = vshll.u32 %v1740, 16
        %v2293 = vrot.slane %v2291, 5
        %v2294 = vsel %vm345, %v2289, %v2293
        %v2295 = vshrl.u32 %v1740, 16
        %v2297 = vrot.slane %v2295, 4
        %v2298 = vor.u32 %v2297, %v2293
        %v2299 = vrot.slane %v2298, 4
        %v2301 = vshll.u32 %v1741, 16
        %v2303 = vrot.slane %v2301, 5
        %v2304 = vsel %vm345, %v2299, %v2303
        %v2306 = vshrl.u32 %v1742, 16
        %v2308 = vrot.slane %v2306, 4
        %v2309 = vshll.u32 %v1742, 16
        %v2311 = vrot.slane %v2309, 5
        %v2312 = vor.u32 %v2308, %v2311
        %v2313 = vrot.slane %v2312, 4
        %v2315 = vshll.u32 %v1743, 16
        %v2317 = vrot.slane %v2315, 5
        %v2318 = vsel %vm345, %v2313, %v2317
        %v2319 = vshrl.u32 %v1743, 16
        %v2321 = vrot.slane %v2319, 4
        %v2322 = vor.u32 %v2321, %v2317
        %v2323 = vrot.slane %v2322, 4
        %v2325 = vshll.u32 %v1744, 16
        %v2327 = vrot.slane %v2325, 5
        %v2328 = vsel %vm345, %v2323, %v2327
        %v2330 = vshrl.u32 %v1745, 16
        %v2332 = vrot.slane %v2330, 4
        %v2333 = vshll.u32 %v1745, 16
        %v2335 = vrot.slane %v2333, 5
        %v2336 = vor.u32 %v2332, %v2335
        %v2337 = vrot.slane %v2336, 4
        %v2339 = vshll.u32 %v1746, 16
        %v2341 = vrot.slane %v2339, 5
        %v2342 = vsel %vm345, %v2337, %v2341
        %v2343 = vshrl.u32 %v1746, 16
        %v2345 = vrot.slane %v2343, 4
        %v2346 = vor.u32 %v2345, %v2341
        %v2347 = vrot.slane %v2346, 4
        %v2349 = vshll.u32 %v1747, 16
        %v2351 = vrot.slane %v2349, 5
        %v2352 = vsel %vm345, %v2347, %v2351
        %v2354 = vshrl.u32 %v1748, 16
        %v2356 = vrot.slane %v2354, 4
        %v2357 = vshll.u32 %v1748, 16
        %v2359 = vrot.slane %v2357, 5
        %v2360 = vor.u32 %v2356, %v2359
        %v2361 = vrot.slane %v2360, 4
        %v2363 = vshll.u32 %v1749, 16
        %v2365 = vrot.slane %v2363, 5
        %v2366 = vsel %vm345, %v2361, %v2365
        %v2367 = vshrl.u32 %v1749, 16
        %v2369 = vrot.slane %v2367, 4
        %v2370 = vor.u32 %v2369, %v2365
        %v2371 = vrot.slane %v2370, 4
        %v2373 = vshll.u32 %v1750, 16
        %v2375 = vrot.slane %v2373, 5
        %v2376 = vsel %vm345, %v2371, %v2375
        %v2378 = vshrl.u32 %v1751, 16
        %v2380 = vrot.slane %v2378, 4
        %v2381 = vshll.u32 %v1751, 16
        %v2383 = vrot.slane %v2381, 5
        %v2384 = vor.u32 %v2380, %v2383
        %v2385 = vrot.slane %v2384, 4
        %v2387 = vshll.u32 %v1752, 16
        %v2389 = vrot.slane %v2387, 5
        %v2390 = vsel %vm345, %v2385, %v2389
        %v2391 = vshrl.u32 %v1752, 16
        %v2393 = vrot.slane %v2391, 4
        %v2394 = vor.u32 %v2393, %v2389
        %v2395 = vrot.slane %v2394, 4
        %v2397 = vshll.u32 %v1753, 16
        %v2399 = vrot.slane %v2397, 5
        %v2400 = vsel %vm345, %v2395, %v2399
        %v2402 = vshrl.u32 %v1754, 16
        %v2404 = vrot.slane %v2402, 4
        %v2405 = vshll.u32 %v1754, 16
        %v2407 = vrot.slane %v2405, 5
        %v2408 = vor.u32 %v2404, %v2407
        %v2409 = vrot.slane %v2408, 4
        %v2411 = vshll.u32 %v1755, 16
        %v2413 = vrot.slane %v2411, 5
        %v2414 = vsel %vm345, %v2409, %v2413
        %v2415 = vshrl.u32 %v1755, 16
        %v2417 = vrot.slane %v2415, 4
        %v2418 = vor.u32 %v2417, %v2413
        %v2419 = vrot.slane %v2418, 4
        %v2421 = vshll.u32 %v1756, 16
        %v2423 = vrot.slane %v2421, 5
        %v2424 = vsel %vm345, %v2419, %v2423
        %v2426 = vshrl.u32 %v1757, 16
        %v2428 = vrot.slane %v2426, 4
        %v2429 = vshll.u32 %v1757, 16
        %v2431 = vrot.slane %v2429, 5
        %v2432 = vor.u32 %v2428, %v2431
        %v2433 = vrot.slane %v2432, 4
        %v2435 = vshll.u32 %v1758, 16
        %v2437 = vrot.slane %v2435, 5
        %v2438 = vsel %vm345, %v2433, %v2437
        %v2439 = vshrl.u32 %v1758, 16
        %v2441 = vrot.slane %v2439, 4
        %v2442 = vor.u32 %v2441, %v2437
        %v2443 = vrot.slane %v2442, 4
        %v2445 = vshll.u32 %v1759, 16
        %v2447 = vrot.slane %v2445, 5
        %v2448 = vsel %vm345, %v2443, %v2447
        %v2450 = vshrl.u32 %v1760, 16
        %v2452 = vrot.slane %v2450, 4
        %v2453 = vshll.u32 %v1760, 16
        %v2455 = vrot.slane %v2453, 5
        %v2456 = vor.u32 %v2452, %v2455
        %v2457 = vrot.slane %v2456, 4
        %v2459 = vshll.u32 %v1761, 16
        %v2461 = vrot.slane %v2459, 5
        %v2462 = vsel %vm345, %v2457, %v2461
        %v2463 = vshrl.u32 %v1761, 16
        %v2465 = vrot.slane %v2463, 4
        %v2466 = vor.u32 %v2465, %v2461
        %v2467 = vrot.slane %v2466, 4
        %v2469 = vshll.u32 %v1762, 16
        %v2471 = vrot.slane %v2469, 5
        %v2472 = vsel %vm345, %v2467, %v2471
        %s2473 = scalar_lea.vmem %s248, 8
        %v2474 = vld [vmem:[%s2473] sm:$0x3]
        %v2475 = vunpack.c.l.b16 %v2102
        %v2476 = vunpack.c.l.b16 %v2112
        %v2477 = vunpack.c.l.b16 %v2126
        %v2478 = vunpack.c.l.b16 %v2136
        %v2479 = vunpack.c.l.b16 %v2150
        %v2480 = vunpack.c.l.b16 %v2160
        %v2481 = vunpack.c.l.b16 %v2174
        %v2482 = vunpack.c.l.b16 %v2184
        %v2483 = vunpack.c.l.b16 %v2198
        %v2484 = vunpack.c.l.b16 %v2208
        %v2485 = vunpack.c.l.b16 %v2222
        %v2486 = vunpack.c.l.b16 %v2232
        %v2487 = vunpack.c.l.b16 %v2246
        %v2488 = vunpack.c.l.b16 %v2256
        %v2489 = vunpack.c.l.b16 %v2270
        %v2490 = vunpack.c.l.b16 %v2280
        %v2491 = vunpack.c.l.b16 %v2294
        %v2492 = vunpack.c.l.b16 %v2304
        %v2493 = vunpack.c.l.b16 %v2318
        %v2494 = vunpack.c.l.b16 %v2328
        %v2495 = vunpack.c.l.b16 %v2342
        %v2496 = vunpack.c.l.b16 %v2352
        %v2497 = vunpack.c.l.b16 %v2366
        %v2498 = vunpack.c.l.b16 %v2376
        %v2499 = vunpack.c.l.b16 %v2390
        %v2500 = vunpack.c.l.b16 %v2400
        %v2501 = vunpack.c.l.b16 %v2414
        %v2502 = vunpack.c.l.b16 %v2424
        %v2503 = vunpack.c.l.b16 %v2438
        %v2504 = vunpack.c.l.b16 %v2448
        %v2505 = vunpack.c.l.b16 %v2462
        %v2506 = vunpack.c.l.b16 %v2472
        %v2507 = vpack.c.b16 %v2476, %v2475
        %v2508 = vpack.c.b16 %v2478, %v2477
        %v2509 = vpack.c.b16 %v2480, %v2479
        %v2510 = vpack.c.b16 %v2482, %v2481
        %v2511 = vpack.c.b16 %v2484, %v2483
        %v2512 = vpack.c.b16 %v2486, %v2485
        %v2513 = vpack.c.b16 %v2488, %v2487
        %v2514 = vpack.c.b16 %v2490, %v2489
        %v2515 = vpack.c.b16 %v2492, %v2491
        %v2516 = vpack.c.b16 %v2494, %v2493
        %v2517 = vpack.c.b16 %v2496, %v2495
        %v2518 = vpack.c.b16 %v2498, %v2497
        %v2519 = vpack.c.b16 %v2500, %v2499
        %v2520 = vpack.c.b16 %v2502, %v2501
        %v2521 = vpack.c.b16 %v2504, %v2503
        %v2522 = vpack.c.b16 %v2506, %v2505
        %v2524 = vsel %vm780, %v2507, 0
        %v2527 = vsel %vm780, %v2508, 0
        %v2530 = vsel %vm780, %v2509, 0
        %v2533 = vsel %vm780, %v2510, 0
        %v2536 = vsel %vm780, %v2511, 0
        %v2539 = vsel %vm780, %v2512, 0
        %v2542 = vsel %vm780, %v2513, 0
        %v2545 = vsel %vm780, %v2514, 0
        %v2548 = vsel %vm780, %v2515, 0
        %v2551 = vsel %vm780, %v2516, 0
        %v2554 = vsel %vm780, %v2517, 0
        %v2557 = vsel %vm780, %v2518, 0
        %v2560 = vsel %vm780, %v2519, 0
        %v2563 = vsel %vm780, %v2520, 0
        %v2566 = vsel %vm780, %v2521, 0
        %v2569 = vsel %vm780, %v2522, 0
        %v2572 = vsel %vm829, %v2474, 0
        %2574 = vmatprep.subr.bf16.mxu0 0
        %2575 = vmatpush1.bf16.msra.mxu0 0
        %2576 = vmatprep.subr.bf16.mxu0 0
        %2577 = vmatpush1.bf16.msra.mxu0 0
        %2578 = vmatprep.subr.bf16.mxu0 0
        %2579 = vmatpush1.bf16.msra.mxu0 0
        %2580 = vmatprep.subr.bf16.mxu0 0
        %2581 = vmatpush1.bf16.msra.mxu0 0
        %2582 = vmatprep.subr.bf16.mxu0 0
        %2583 = vmatpush1.bf16.msra.mxu0 0
        %2584 = vmatprep.subr.bf16.mxu0 0
        %2585 = vmatpush1.bf16.msra.mxu0 0
        %2586 = vmatprep.subr.bf16.mxu0 0
        %2587 = vmatpush1.bf16.msra.mxu0 0
        %2588 = vmatprep.subr.bf16.mxu0 0
        %2589 = vmatpush1.bf16.msra.mxu0 %v2572
        %2590 = vmatprep.subr.bf16.mxu0 0
        %2591 = vmatpush2.bf16.msra.mxu0 0
        %2592 = vmatprep.subr.bf16.mxu0 0
        %2593 = vmatpush2.bf16.msra.mxu0 0
        %2594 = vmatprep.subr.bf16.mxu0 0
        %2595 = vmatpush2.bf16.msra.mxu0 0
        %2596 = vmatprep.subr.bf16.mxu0 0
        %2597 = vmatpush2.bf16.msra.mxu0 0
        %2598 = vmatprep.subr.bf16.mxu0 0
        %2599 = vmatpush2.bf16.msra.mxu0 0
        %2600 = vmatprep.subr.bf16.mxu0 0
        %2601 = vmatpush2.bf16.msra.mxu0 0
        %2602 = vmatprep.subr.bf16.mxu0 0
        %2603 = vmatpush2.bf16.msra.mxu0 0
        %2604 = vmatprep.subr.bf16.mxu0 0
        %2605 = vmatpush2.bf16.msra.mxu0 0
        %2606 = vmatprep.mubr.bf16.mxu0 0
        %2607 = vmatmul.mubr.bf16.gmra.mxu0 %v2524
        %v2608 = vpop.f32.mrf.mxu0
        %v2609 = vadd.f32 0.0, %v2608
        %v2610 = vpop.f32.mrf.mxu0
        %v2611 = vpop.f32.mrf.mxu0
        %v2612 = vadd.f32 0.0, %v2611
        %v2613 = vpop.f32.mrf.mxu0
        %2614 = vmatprep.mubr.bf16.mxu0 0
        %2615 = vmatmul.mubr.bf16.gmra.mxu0 %v2527
        %v2616 = vpop.f32.mrf.mxu0
        %v2617 = vadd.f32 0.0, %v2616
        %v2618 = vpop.f32.mrf.mxu0
        %v2619 = vpop.f32.mrf.mxu0
        %v2620 = vadd.f32 0.0, %v2619
        %v2621 = vpop.f32.mrf.mxu0
        %2622 = vmatprep.mubr.bf16.mxu0 0
        %2623 = vmatmul.mubr.bf16.gmra.mxu0 %v2530
        %v2624 = vpop.f32.mrf.mxu0
        %v2625 = vadd.f32 0.0, %v2624
        %v2626 = vpop.f32.mrf.mxu0
        %v2627 = vpop.f32.mrf.mxu0
        %v2628 = vadd.f32 0.0, %v2627
        %v2629 = vpop.f32.mrf.mxu0
        %2630 = vmatprep.mubr.bf16.mxu0 0
        %2631 = vmatmul.mubr.bf16.gmra.mxu0 %v2533
        %v2632 = vpop.f32.mrf.mxu0
        %v2633 = vadd.f32 0.0, %v2632
        %v2634 = vpop.f32.mrf.mxu0
        %v2635 = vpop.f32.mrf.mxu0
        %v2636 = vadd.f32 0.0, %v2635
        %v2637 = vpop.f32.mrf.mxu0
        %2638 = vmatprep.mubr.bf16.mxu0 0
        %2639 = vmatmul.mubr.bf16.gmra.mxu0 %v2536
        %v2640 = vpop.f32.mrf.mxu0
        %v2641 = vadd.f32 0.0, %v2640
        %v2642 = vpop.f32.mrf.mxu0
        %v2643 = vpop.f32.mrf.mxu0
        %v2644 = vadd.f32 0.0, %v2643
        %v2645 = vpop.f32.mrf.mxu0
        %2646 = vmatprep.mubr.bf16.mxu0 0
        %2647 = vmatmul.mubr.bf16.gmra.mxu0 %v2539
        %v2648 = vpop.f32.mrf.mxu0
        %v2649 = vadd.f32 0.0, %v2648
        %v2650 = vpop.f32.mrf.mxu0
        %v2651 = vpop.f32.mrf.mxu0
        %v2652 = vadd.f32 0.0, %v2651
        %v2653 = vpop.f32.mrf.mxu0
        %2654 = vmatprep.mubr.bf16.mxu0 0
        %2655 = vmatmul.mubr.bf16.gmra.mxu0 %v2542
        %v2656 = vpop.f32.mrf.mxu0
        %v2657 = vadd.f32 0.0, %v2656
        %v2658 = vpop.f32.mrf.mxu0
        %v2659 = vpop.f32.mrf.mxu0
        %v2660 = vadd.f32 0.0, %v2659
        %v2661 = vpop.f32.mrf.mxu0
        %2662 = vmatprep.mubr.bf16.mxu0 0
        %2663 = vmatmul.mubr.bf16.gmra.mxu0 %v2545
        %v2664 = vpop.f32.mrf.mxu0
        %v2665 = vadd.f32 0.0, %v2664
        %v2666 = vpop.f32.mrf.mxu0
        %v2667 = vpop.f32.mrf.mxu0
        %v2668 = vadd.f32 0.0, %v2667
        %v2669 = vpop.f32.mrf.mxu0
        %2670 = vmatprep.mubr.bf16.mxu0 0
        %2671 = vmatmul.mubr.bf16.gmra.mxu0 %v2548
        %v2672 = vpop.f32.mrf.mxu0
        %v2673 = vadd.f32 0.0, %v2672
        %v2674 = vpop.f32.mrf.mxu0
        %v2675 = vpop.f32.mrf.mxu0
        %v2676 = vadd.f32 0.0, %v2675
        %v2677 = vpop.f32.mrf.mxu0
        %2678 = vmatprep.mubr.bf16.mxu0 0
        %2679 = vmatmul.mubr.bf16.gmra.mxu0 %v2551
        %v2680 = vpop.f32.mrf.mxu0
        %v2681 = vadd.f32 0.0, %v2680
        %v2682 = vpop.f32.mrf.mxu0
        %v2683 = vpop.f32.mrf.mxu0
        %v2684 = vadd.f32 0.0, %v2683
        %v2685 = vpop.f32.mrf.mxu0
        %2686 = vmatprep.mubr.bf16.mxu0 0
        %2687 = vmatmul.mubr.bf16.gmra.mxu0 %v2554
        %v2688 = vpop.f32.mrf.mxu0
        %v2689 = vadd.f32 0.0, %v2688
        %v2690 = vpop.f32.mrf.mxu0
        %v2691 = vpop.f32.mrf.mxu0
        %v2692 = vadd.f32 0.0, %v2691
        %v2693 = vpop.f32.mrf.mxu0
        %2694 = vmatprep.mubr.bf16.mxu0 0
        %2695 = vmatmul.mubr.bf16.gmra.mxu0 %v2557
        %v2696 = vpop.f32.mrf.mxu0
        %v2697 = vadd.f32 0.0, %v2696
        %v2698 = vpop.f32.mrf.mxu0
        %v2699 = vpop.f32.mrf.mxu0
        %v2700 = vadd.f32 0.0, %v2699
        %v2701 = vpop.f32.mrf.mxu0
        %2702 = vmatprep.mubr.bf16.mxu0 0
        %2703 = vmatmul.mubr.bf16.gmra.mxu0 %v2560
        %v2704 = vpop.f32.mrf.mxu0
        %v2705 = vadd.f32 0.0, %v2704
        %v2706 = vpop.f32.mrf.mxu0
        %v2707 = vpop.f32.mrf.mxu0
        %v2708 = vadd.f32 0.0, %v2707
        %v2709 = vpop.f32.mrf.mxu0
        %2710 = vmatprep.mubr.bf16.mxu0 0
        %2711 = vmatmul.mubr.bf16.gmra.mxu0 %v2563
        %v2712 = vpop.f32.mrf.mxu0
        %v2713 = vadd.f32 0.0, %v2712
        %v2714 = vpop.f32.mrf.mxu0
        %v2715 = vpop.f32.mrf.mxu0
        %v2716 = vadd.f32 0.0, %v2715
        %v2717 = vpop.f32.mrf.mxu0
        %2718 = vmatprep.mubr.bf16.mxu0 0
        %2719 = vmatmul.mubr.bf16.gmra.mxu0 %v2566
        %v2720 = vpop.f32.mrf.mxu0
        %v2721 = vadd.f32 0.0, %v2720
        %v2722 = vpop.f32.mrf.mxu0
        %v2723 = vpop.f32.mrf.mxu0
        %v2724 = vadd.f32 0.0, %v2723
        %v2725 = vpop.f32.mrf.mxu0
        %2726 = vmatprep.mubr.bf16.mxu0 0
        %2727 = vmatmul.mubr.bf16.gmra.mxu0 %v2569
        %v2728 = vpop.f32.mrf.mxu0
        %v2729 = vadd.f32 0.0, %v2728
        %v2730 = vpop.f32.mrf.mxu0
        %v2731 = vpop.f32.mrf.mxu0
        %v2732 = vadd.f32 0.0, %v2731
        %v2733 = vpop.f32.mrf.mxu0
        %2734 = vdwg.mxu0
        %v2735 = vadd.f32 %v2057, %v2609
        %v2736 = vadd.f32 %v2058, %v2612
        %v2737 = vadd.f32 %v2059, %v2617
        %v2738 = vadd.f32 %v2060, %v2620
        %v2739 = vadd.f32 %v2061, %v2625
        %v2740 = vadd.f32 %v2062, %v2628
        %v2741 = vadd.f32 %v2063, %v2633
        %v2742 = vadd.f32 %v2064, %v2636
        %v2743 = vadd.f32 %v2065, %v2641
        %v2744 = vadd.f32 %v2066, %v2644
        %v2745 = vadd.f32 %v2067, %v2649
        %v2746 = vadd.f32 %v2068, %v2652
        %v2747 = vadd.f32 %v2069, %v2657
        %v2748 = vadd.f32 %v2070, %v2660
        %v2749 = vadd.f32 %v2071, %v2665
        %v2750 = vadd.f32 %v2072, %v2668
        %v2751 = vadd.f32 %v2073, %v2673
        %v2752 = vadd.f32 %v2074, %v2676
        %v2753 = vadd.f32 %v2075, %v2681
        %v2754 = vadd.f32 %v2076, %v2684
        %v2755 = vadd.f32 %v2077, %v2689
        %v2756 = vadd.f32 %v2078, %v2692
        %v2757 = vadd.f32 %v2079, %v2697
        %v2758 = vadd.f32 %v2080, %v2700
        %v2759 = vadd.f32 %v2081, %v2705
        %v2760 = vadd.f32 %v2082, %v2708
        %v2761 = vadd.f32 %v2083, %v2713
        %v2762 = vadd.f32 %v2084, %v2716
        %v2763 = vadd.f32 %v2085, %v2721
        %v2764 = vadd.f32 %v2086, %v2724
        %v2765 = vadd.f32 %v2087, %v2729
        %v2766 = vadd.f32 %v2088, %v2732
        %v2783 = vrot.slane %v1715, 5
        %v2784 = vrot.slane %v2783, 4
        %v2785 = vrot.slane %v1716, 5
        %v2786 = vsel %vm1304, %v2784, %v2785
        %v2787 = vrot.slane %v2785, 4
        %v2788 = vrot.slane %v1717, 5
        %v2789 = vsel %vm1304, %v2787, %v2788
        %v2790 = vrot.slane %v1718, 5
        %v2791 = vrot.slane %v2790, 4
        %v2792 = vrot.slane %v1719, 5
        %v2793 = vsel %vm1304, %v2791, %v2792
        %v2794 = vrot.slane %v2792, 4
        %v2795 = vrot.slane %v1720, 5
        %v2796 = vsel %vm1304, %v2794, %v2795
        %v2797 = vrot.slane %v1721, 5
        %v2798 = vrot.slane %v2797, 4
        %v2799 = vrot.slane %v1722, 5
        %v2800 = vsel %vm1304, %v2798, %v2799
        %v2801 = vrot.slane %v2799, 4
        %v2802 = vrot.slane %v1723, 5
        %v2803 = vsel %vm1304, %v2801, %v2802
        %v2804 = vrot.slane %v1724, 5
        %v2805 = vrot.slane %v2804, 4
        %v2806 = vrot.slane %v1725, 5
        %v2807 = vsel %vm1304, %v2805, %v2806
        %v2808 = vrot.slane %v2806, 4
        %v2809 = vrot.slane %v1726, 5
        %v2810 = vsel %vm1304, %v2808, %v2809
        %v2811 = vrot.slane %v1727, 5
        %v2812 = vrot.slane %v2811, 4
        %v2813 = vrot.slane %v1728, 5
        %v2814 = vsel %vm1304, %v2812, %v2813
        %v2815 = vrot.slane %v2813, 4
        %v2816 = vrot.slane %v1729, 5
        %v2817 = vsel %vm1304, %v2815, %v2816
        %v2818 = vrot.slane %v1730, 5
        %v2819 = vrot.slane %v2818, 4
        %v2820 = vrot.slane %v1731, 5
        %v2821 = vsel %vm1304, %v2819, %v2820
        %v2822 = vrot.slane %v2820, 4
        %v2823 = vrot.slane %v1732, 5
        %v2824 = vsel %vm1304, %v2822, %v2823
        %v2825 = vrot.slane %v1733, 5
        %v2826 = vrot.slane %v2825, 4
        %v2827 = vrot.slane %v1734, 5
        %v2828 = vsel %vm1304, %v2826, %v2827
        %v2829 = vrot.slane %v2827, 4
        %v2830 = vrot.slane %v1735, 5
        %v2831 = vsel %vm1304, %v2829, %v2830
        %v2832 = vrot.slane %v1736, 5
        %v2833 = vrot.slane %v2832, 4
        %v2834 = vrot.slane %v1737, 5
        %v2835 = vsel %vm1304, %v2833, %v2834
        %v2836 = vrot.slane %v2834, 4
        %v2837 = vrot.slane %v1738, 5
        %v2838 = vsel %vm1304, %v2836, %v2837
        %v2839 = vrot.slane %v1739, 5
        %v2840 = vrot.slane %v2839, 4
        %v2841 = vrot.slane %v1740, 5
        %v2842 = vsel %vm1304, %v2840, %v2841
        %v2843 = vrot.slane %v2841, 4
        %v2844 = vrot.slane %v1741, 5
        %v2845 = vsel %vm1304, %v2843, %v2844
        %v2846 = vrot.slane %v1742, 5
        %v2847 = vrot.slane %v2846, 4
        %v2848 = vrot.slane %v1743, 5
        %v2849 = vsel %vm1304, %v2847, %v2848
        %v2850 = vrot.slane %v2848, 4
        %v2851 = vrot.slane %v1744, 5
        %v2852 = vsel %vm1304, %v2850, %v2851
        %v2853 = vrot.slane %v1745, 5
        %v2854 = vrot.slane %v2853, 4
        %v2855 = vrot.slane %v1746, 5
        %v2856 = vsel %vm1304, %v2854, %v2855
        %v2857 = vrot.slane %v2855, 4
        %v2858 = vrot.slane %v1747, 5
        %v2859 = vsel %vm1304, %v2857, %v2858
        %v2860 = vrot.slane %v1748, 5
        %v2861 = vrot.slane %v2860, 4
        %v2862 = vrot.slane %v1749, 5
        %v2863 = vsel %vm1304, %v2861, %v2862
        %v2864 = vrot.slane %v2862, 4
        %v2865 = vrot.slane %v1750, 5
        %v2866 = vsel %vm1304, %v2864, %v2865
        %v2867 = vrot.slane %v1751, 5
        %v2868 = vrot.slane %v2867, 4
        %v2869 = vrot.slane %v1752, 5
        %v2870 = vsel %vm1304, %v2868, %v2869
        %v2871 = vrot.slane %v2869, 4
        %v2872 = vrot.slane %v1753, 5
        %v2873 = vsel %vm1304, %v2871, %v2872
        %v2874 = vrot.slane %v1754, 5
        %v2875 = vrot.slane %v2874, 4
        %v2876 = vrot.slane %v1755, 5
        %v2877 = vsel %vm1304, %v2875, %v2876
        %v2878 = vrot.slane %v2876, 4
        %v2879 = vrot.slane %v1756, 5
        %v2880 = vsel %vm1304, %v2878, %v2879
        %v2881 = vrot.slane %v1757, 5
        %v2882 = vrot.slane %v2881, 4
        %v2883 = vrot.slane %v1758, 5
        %v2884 = vsel %vm1304, %v2882, %v2883
        %v2885 = vrot.slane %v2883, 4
        %v2886 = vrot.slane %v1759, 5
        %v2887 = vsel %vm1304, %v2885, %v2886
        %v2888 = vrot.slane %v1760, 5
        %v2889 = vrot.slane %v2888, 4
        %v2890 = vrot.slane %v1761, 5
        %v2891 = vsel %vm1304, %v2889, %v2890
        %v2892 = vrot.slane %v2890, 4
        %v2893 = vrot.slane %v1762, 5
        %v2894 = vsel %vm1304, %v2892, %v2893
        %s2895 = scalar_lea.vmem %s248, 10
        %v2896 = vld [vmem:[%s2895] sm:$0x3]
        %v2897 = vunpack.c.l.b16 %v2786
        %v2898 = vunpack.c.l.b16 %v2789
        %v2899 = vunpack.c.l.b16 %v2793
        %v2900 = vunpack.c.l.b16 %v2796
        %v2901 = vunpack.c.l.b16 %v2800
        %v2902 = vunpack.c.l.b16 %v2803
        %v2903 = vunpack.c.l.b16 %v2807
        %v2904 = vunpack.c.l.b16 %v2810
        %v2905 = vunpack.c.l.b16 %v2814
        %v2906 = vunpack.c.l.b16 %v2817
        %v2907 = vunpack.c.l.b16 %v2821
        %v2908 = vunpack.c.l.b16 %v2824
        %v2909 = vunpack.c.l.b16 %v2828
        %v2910 = vunpack.c.l.b16 %v2831
        %v2911 = vunpack.c.l.b16 %v2835
        %v2912 = vunpack.c.l.b16 %v2838
        %v2913 = vunpack.c.l.b16 %v2842
        %v2914 = vunpack.c.l.b16 %v2845
        %v2915 = vunpack.c.l.b16 %v2849
        %v2916 = vunpack.c.l.b16 %v2852
        %v2917 = vunpack.c.l.b16 %v2856
        %v2918 = vunpack.c.l.b16 %v2859
        %v2919 = vunpack.c.l.b16 %v2863
        %v2920 = vunpack.c.l.b16 %v2866
        %v2921 = vunpack.c.l.b16 %v2870
        %v2922 = vunpack.c.l.b16 %v2873
        %v2923 = vunpack.c.l.b16 %v2877
        %v2924 = vunpack.c.l.b16 %v2880
        %v2925 = vunpack.c.l.b16 %v2884
        %v2926 = vunpack.c.l.b16 %v2887
        %v2927 = vunpack.c.l.b16 %v2891
        %v2928 = vunpack.c.l.b16 %v2894
        %v2929 = vpack.c.b16 %v2898, %v2897
        %v2930 = vpack.c.b16 %v2900, %v2899
        %v2931 = vpack.c.b16 %v2902, %v2901
        %v2932 = vpack.c.b16 %v2904, %v2903
        %v2933 = vpack.c.b16 %v2906, %v2905
        %v2934 = vpack.c.b16 %v2908, %v2907
        %v2935 = vpack.c.b16 %v2910, %v2909
        %v2936 = vpack.c.b16 %v2912, %v2911
        %v2937 = vpack.c.b16 %v2914, %v2913
        %v2938 = vpack.c.b16 %v2916, %v2915
        %v2939 = vpack.c.b16 %v2918, %v2917
        %v2940 = vpack.c.b16 %v2920, %v2919
        %v2941 = vpack.c.b16 %v2922, %v2921
        %v2942 = vpack.c.b16 %v2924, %v2923
        %v2943 = vpack.c.b16 %v2926, %v2925
        %v2944 = vpack.c.b16 %v2928, %v2927
        %v2946 = vsel %vm780, %v2929, 0
        %v2949 = vsel %vm780, %v2930, 0
        %v2952 = vsel %vm780, %v2931, 0
        %v2955 = vsel %vm780, %v2932, 0
        %v2958 = vsel %vm780, %v2933, 0
        %v2961 = vsel %vm780, %v2934, 0
        %v2964 = vsel %vm780, %v2935, 0
        %v2967 = vsel %vm780, %v2936, 0
        %v2970 = vsel %vm780, %v2937, 0
        %v2973 = vsel %vm780, %v2938, 0
        %v2976 = vsel %vm780, %v2939, 0
        %v2979 = vsel %vm780, %v2940, 0
        %v2982 = vsel %vm780, %v2941, 0
        %v2985 = vsel %vm780, %v2942, 0
        %v2988 = vsel %vm780, %v2943, 0
        %v2991 = vsel %vm780, %v2944, 0
        %v2994 = vsel %vm829, %v2896, 0
        %2996 = vmatprep.subr.bf16.mxu0 0
        %2997 = vmatpush1.bf16.msra.mxu0 0
        %2998 = vmatprep.subr.bf16.mxu0 0
        %2999 = vmatpush1.bf16.msra.mxu0 0
        %3000 = vmatprep.subr.bf16.mxu0 0
        %3001 = vmatpush1.bf16.msra.mxu0 0
        %3002 = vmatprep.subr.bf16.mxu0 0
        %3003 = vmatpush1.bf16.msra.mxu0 0
        %3004 = vmatprep.subr.bf16.mxu0 0
        %3005 = vmatpush1.bf16.msra.mxu0 0
        %3006 = vmatprep.subr.bf16.mxu0 0
        %3007 = vmatpush1.bf16.msra.mxu0 0
        %3008 = vmatprep.subr.bf16.mxu0 0
        %3009 = vmatpush1.bf16.msra.mxu0 0
        %3010 = vmatprep.subr.bf16.mxu0 0
        %3011 = vmatpush1.bf16.msra.mxu0 %v2994
        %3012 = vmatprep.subr.bf16.mxu0 0
        %3013 = vmatpush2.bf16.msra.mxu0 0
        %3014 = vmatprep.subr.bf16.mxu0 0
        %3015 = vmatpush2.bf16.msra.mxu0 0
        %3016 = vmatprep.subr.bf16.mxu0 0
        %3017 = vmatpush2.bf16.msra.mxu0 0
        %3018 = vmatprep.subr.bf16.mxu0 0
        %3019 = vmatpush2.bf16.msra.mxu0 0
        %3020 = vmatprep.subr.bf16.mxu0 0
        %3021 = vmatpush2.bf16.msra.mxu0 0
        %3022 = vmatprep.subr.bf16.mxu0 0
        %3023 = vmatpush2.bf16.msra.mxu0 0
        %3024 = vmatprep.subr.bf16.mxu0 0
        %3025 = vmatpush2.bf16.msra.mxu0 0
        %3026 = vmatprep.subr.bf16.mxu0 0
        %3027 = vmatpush2.bf16.msra.mxu0 0
        %3028 = vmatprep.mubr.bf16.mxu0 0
        %3029 = vmatmul.mubr.bf16.gmra.mxu0 %v2946
        %v3030 = vpop.f32.mrf.mxu0
        %v3031 = vadd.f32 0.0, %v3030
        %v3032 = vpop.f32.mrf.mxu0
        %v3033 = vpop.f32.mrf.mxu0
        %v3034 = vadd.f32 0.0, %v3033
        %v3035 = vpop.f32.mrf.mxu0
        %3036 = vmatprep.mubr.bf16.mxu0 0
        %3037 = vmatmul.mubr.bf16.gmra.mxu0 %v2949
        %v3038 = vpop.f32.mrf.mxu0
        %v3039 = vadd.f32 0.0, %v3038
        %v3040 = vpop.f32.mrf.mxu0
        %v3041 = vpop.f32.mrf.mxu0
        %v3042 = vadd.f32 0.0, %v3041
        %v3043 = vpop.f32.mrf.mxu0
        %3044 = vmatprep.mubr.bf16.mxu0 0
        %3045 = vmatmul.mubr.bf16.gmra.mxu0 %v2952
        %v3046 = vpop.f32.mrf.mxu0
        %v3047 = vadd.f32 0.0, %v3046
        %v3048 = vpop.f32.mrf.mxu0
        %v3049 = vpop.f32.mrf.mxu0
        %v3050 = vadd.f32 0.0, %v3049
        %v3051 = vpop.f32.mrf.mxu0
        %3052 = vmatprep.mubr.bf16.mxu0 0
        %3053 = vmatmul.mubr.bf16.gmra.mxu0 %v2955
        %v3054 = vpop.f32.mrf.mxu0
        %v3055 = vadd.f32 0.0, %v3054
        %v3056 = vpop.f32.mrf.mxu0
        %v3057 = vpop.f32.mrf.mxu0
        %v3058 = vadd.f32 0.0, %v3057
        %v3059 = vpop.f32.mrf.mxu0
        %3060 = vmatprep.mubr.bf16.mxu0 0
        %3061 = vmatmul.mubr.bf16.gmra.mxu0 %v2958
        %v3062 = vpop.f32.mrf.mxu0
        %v3063 = vadd.f32 0.0, %v3062
        %v3064 = vpop.f32.mrf.mxu0
        %v3065 = vpop.f32.mrf.mxu0
        %v3066 = vadd.f32 0.0, %v3065
        %v3067 = vpop.f32.mrf.mxu0
        %3068 = vmatprep.mubr.bf16.mxu0 0
        %3069 = vmatmul.mubr.bf16.gmra.mxu0 %v2961
        %v3070 = vpop.f32.mrf.mxu0
        %v3071 = vadd.f32 0.0, %v3070
        %v3072 = vpop.f32.mrf.mxu0
        %v3073 = vpop.f32.mrf.mxu0
        %v3074 = vadd.f32 0.0, %v3073
        %v3075 = vpop.f32.mrf.mxu0
        %3076 = vmatprep.mubr.bf16.mxu0 0
        %3077 = vmatmul.mubr.bf16.gmra.mxu0 %v2964
        %v3078 = vpop.f32.mrf.mxu0
        %v3079 = vadd.f32 0.0, %v3078
        %v3080 = vpop.f32.mrf.mxu0
        %v3081 = vpop.f32.mrf.mxu0
        %v3082 = vadd.f32 0.0, %v3081
        %v3083 = vpop.f32.mrf.mxu0
        %3084 = vmatprep.mubr.bf16.mxu0 0
        %3085 = vmatmul.mubr.bf16.gmra.mxu0 %v2967
        %v3086 = vpop.f32.mrf.mxu0
        %v3087 = vadd.f32 0.0, %v3086
        %v3088 = vpop.f32.mrf.mxu0
        %v3089 = vpop.f32.mrf.mxu0
        %v3090 = vadd.f32 0.0, %v3089
        %v3091 = vpop.f32.mrf.mxu0
        %3092 = vmatprep.mubr.bf16.mxu0 0
        %3093 = vmatmul.mubr.bf16.gmra.mxu0 %v2970
        %v3094 = vpop.f32.mrf.mxu0
        %v3095 = vadd.f32 0.0, %v3094
        %v3096 = vpop.f32.mrf.mxu0
        %v3097 = vpop.f32.mrf.mxu0
        %v3098 = vadd.f32 0.0, %v3097
        %v3099 = vpop.f32.mrf.mxu0
        %3100 = vmatprep.mubr.bf16.mxu0 0
        %3101 = vmatmul.mubr.bf16.gmra.mxu0 %v2973
        %v3102 = vpop.f32.mrf.mxu0
        %v3103 = vadd.f32 0.0, %v3102
        %v3104 = vpop.f32.mrf.mxu0
        %v3105 = vpop.f32.mrf.mxu0
        %v3106 = vadd.f32 0.0, %v3105
        %v3107 = vpop.f32.mrf.mxu0
        %3108 = vmatprep.mubr.bf16.mxu0 0
        %3109 = vmatmul.mubr.bf16.gmra.mxu0 %v2976
        %v3110 = vpop.f32.mrf.mxu0
        %v3111 = vadd.f32 0.0, %v3110
        %v3112 = vpop.f32.mrf.mxu0
        %v3113 = vpop.f32.mrf.mxu0
        %v3114 = vadd.f32 0.0, %v3113
        %v3115 = vpop.f32.mrf.mxu0
        %3116 = vmatprep.mubr.bf16.mxu0 0
        %3117 = vmatmul.mubr.bf16.gmra.mxu0 %v2979
        %v3118 = vpop.f32.mrf.mxu0
        %v3119 = vadd.f32 0.0, %v3118
        %v3120 = vpop.f32.mrf.mxu0
        %v3121 = vpop.f32.mrf.mxu0
        %v3122 = vadd.f32 0.0, %v3121
        %v3123 = vpop.f32.mrf.mxu0
        %3124 = vmatprep.mubr.bf16.mxu0 0
        %3125 = vmatmul.mubr.bf16.gmra.mxu0 %v2982
        %v3126 = vpop.f32.mrf.mxu0
        %v3127 = vadd.f32 0.0, %v3126
        %v3128 = vpop.f32.mrf.mxu0
        %v3129 = vpop.f32.mrf.mxu0
        %v3130 = vadd.f32 0.0, %v3129
        %v3131 = vpop.f32.mrf.mxu0
        %3132 = vmatprep.mubr.bf16.mxu0 0
        %3133 = vmatmul.mubr.bf16.gmra.mxu0 %v2985
        %v3134 = vpop.f32.mrf.mxu0
        %v3135 = vadd.f32 0.0, %v3134
        %v3136 = vpop.f32.mrf.mxu0
        %v3137 = vpop.f32.mrf.mxu0
        %v3138 = vadd.f32 0.0, %v3137
        %v3139 = vpop.f32.mrf.mxu0
        %3140 = vmatprep.mubr.bf16.mxu0 0
        %3141 = vmatmul.mubr.bf16.gmra.mxu0 %v2988
        %v3142 = vpop.f32.mrf.mxu0
        %v3143 = vadd.f32 0.0, %v3142
        %v3144 = vpop.f32.mrf.mxu0
        %v3145 = vpop.f32.mrf.mxu0
        %v3146 = vadd.f32 0.0, %v3145
        %v3147 = vpop.f32.mrf.mxu0
        %3148 = vmatprep.mubr.bf16.mxu0 0
        %3149 = vmatmul.mubr.bf16.gmra.mxu0 %v2991
        %v3150 = vpop.f32.mrf.mxu0
        %v3151 = vadd.f32 0.0, %v3150
        %v3152 = vpop.f32.mrf.mxu0
        %v3153 = vpop.f32.mrf.mxu0
        %v3154 = vadd.f32 0.0, %v3153
        %v3155 = vpop.f32.mrf.mxu0
        %3156 = vdwg.mxu0
        %v3157 = vadd.f32 %v2735, %v3031
        %v3158 = vadd.f32 %v2736, %v3034
        %v3159 = vadd.f32 %v2737, %v3039
        %v3160 = vadd.f32 %v2738, %v3042
        %v3161 = vadd.f32 %v2739, %v3047
        %v3162 = vadd.f32 %v2740, %v3050
        %v3163 = vadd.f32 %v2741, %v3055
        %v3164 = vadd.f32 %v2742, %v3058
        %v3165 = vadd.f32 %v2743, %v3063
        %v3166 = vadd.f32 %v2744, %v3066
        %v3167 = vadd.f32 %v2745, %v3071
        %v3168 = vadd.f32 %v2746, %v3074
        %v3169 = vadd.f32 %v2747, %v3079
        %v3170 = vadd.f32 %v2748, %v3082
        %v3171 = vadd.f32 %v2749, %v3087
        %v3172 = vadd.f32 %v2750, %v3090
        %v3173 = vadd.f32 %v2751, %v3095
        %v3174 = vadd.f32 %v2752, %v3098
        %v3175 = vadd.f32 %v2753, %v3103
        %v3176 = vadd.f32 %v2754, %v3106
        %v3177 = vadd.f32 %v2755, %v3111
        %v3178 = vadd.f32 %v2756, %v3114
        %v3179 = vadd.f32 %v2757, %v3119
        %v3180 = vadd.f32 %v2758, %v3122
        %v3181 = vadd.f32 %v2759, %v3127
        %v3182 = vadd.f32 %v2760, %v3130
        %v3183 = vadd.f32 %v2761, %v3135
        %v3184 = vadd.f32 %v2762, %v3138
        %v3185 = vadd.f32 %v2763, %v3143
        %v3186 = vadd.f32 %v2764, %v3146
        %v3187 = vadd.f32 %v2765, %v3151
        %v3188 = vadd.f32 %v2766, %v3154
        %s3189 = sadd.s32 %s290, 2
        %s3190 = smul.u32 %s3189, 3
        %s3191 = smul.addr %s3190, 4
        %s3192 = scalar_lea.vmem %s241, %s3191
        %v3193 = vld [vmem:[%s3192] sm:$0xf]
        %v3194 = vld [vmem:[%s3192 + $0x4] sm:$0xf]
        %v3195 = vld [vmem:[%s3192 + $0x8] sm:$0x1]
        %v3196 = vld [vmem:[%s3192 + $0xc] sm:$0xf]
        %v3197 = vld [vmem:[%s3192 + $0x10] sm:$0xf]
        %v3198 = vld [vmem:[%s3192 + $0x14] sm:$0x1]
        %v3199 = vld [vmem:[%s3192 + $0x18] sm:$0xf]
        %v3200 = vld [vmem:[%s3192 + $0x1c] sm:$0xf]
        %v3201 = vld [vmem:[%s3192 + $0x20] sm:$0x1]
        %v3202 = vld [vmem:[%s3192 + $0x24] sm:$0xf]
        %v3203 = vld [vmem:[%s3192 + $0x28] sm:$0xf]
        %v3204 = vld [vmem:[%s3192 + $0x2c] sm:$0x1]
        %v3205 = vld [vmem:[%s3192 + $0x30] sm:$0xf]
        %v3206 = vld [vmem:[%s3192 + $0x34] sm:$0xf]
        %v3207 = vld [vmem:[%s3192 + $0x38] sm:$0x1]
        %v3208 = vld [vmem:[%s3192 + $0x3c] sm:$0xf]
        %v3209 = vld [vmem:[%s3192 + $0x40] sm:$0xf]
        %v3210 = vld [vmem:[%s3192 + $0x44] sm:$0x1]
        %v3211 = vld [vmem:[%s3192 + $0x48] sm:$0xf]
        %v3212 = vld [vmem:[%s3192 + $0x4c] sm:$0xf]
        %v3213 = vld [vmem:[%s3192 + $0x50] sm:$0x1]
        %v3214 = vld [vmem:[%s3192 + $0x54] sm:$0xf]
        %v3215 = vld [vmem:[%s3192 + $0x58] sm:$0xf]
        %v3216 = vld [vmem:[%s3192 + $0x5c] sm:$0x1]
        %v3217 = vld [vmem:[%s3192 + $0x60] sm:$0xf]
        %v3218 = vld [vmem:[%s3192 + $0x64] sm:$0xf]
        %v3219 = vld [vmem:[%s3192 + $0x68] sm:$0x1]
        %v3220 = vld [vmem:[%s3192 + $0x6c] sm:$0xf]
        %v3221 = vld [vmem:[%s3192 + $0x70] sm:$0xf]
        %v3222 = vld [vmem:[%s3192 + $0x74] sm:$0x1]
        %v3223 = vld [vmem:[%s3192 + $0x78] sm:$0xf]
        %v3224 = vld [vmem:[%s3192 + $0x7c] sm:$0xf]
        %v3225 = vld [vmem:[%s3192 + $0x80] sm:$0x1]
        %v3226 = vld [vmem:[%s3192 + $0x84] sm:$0xf]
        %v3227 = vld [vmem:[%s3192 + $0x88] sm:$0xf]
        %v3228 = vld [vmem:[%s3192 + $0x8c] sm:$0x1]
        %v3229 = vld [vmem:[%s3192 + $0x90] sm:$0xf]
        %v3230 = vld [vmem:[%s3192 + $0x94] sm:$0xf]
        %v3231 = vld [vmem:[%s3192 + $0x98] sm:$0x1]
        %v3232 = vld [vmem:[%s3192 + $0x9c] sm:$0xf]
        %v3233 = vld [vmem:[%s3192 + $0xa0] sm:$0xf]
        %v3234 = vld [vmem:[%s3192 + $0xa4] sm:$0x1]
        %v3235 = vld [vmem:[%s3192 + $0xa8] sm:$0xf]
        %v3236 = vld [vmem:[%s3192 + $0xac] sm:$0xf]
        %v3237 = vld [vmem:[%s3192 + $0xb0] sm:$0x1]
        %v3238 = vld [vmem:[%s3192 + $0xb4] sm:$0xf]
        %v3239 = vld [vmem:[%s3192 + $0xb8] sm:$0xf]
        %v3240 = vld [vmem:[%s3192 + $0xbc] sm:$0x1]
        %s3241 = scalar_lea.vmem %s248, 12
        %v3242 = vld [vmem:[%s3241] sm:$0x3]
        %v3275 = vunpack.c.l.b16 %v3193
        %v3276 = vunpack.c.l.b16 %v3194
        %v3277 = vunpack.c.l.b16 %v3196
        %v3278 = vunpack.c.l.b16 %v3197
        %v3279 = vunpack.c.l.b16 %v3199
        %v3280 = vunpack.c.l.b16 %v3200
        %v3281 = vunpack.c.l.b16 %v3202
        %v3282 = vunpack.c.l.b16 %v3203
        %v3283 = vunpack.c.l.b16 %v3205
        %v3284 = vunpack.c.l.b16 %v3206
        %v3285 = vunpack.c.l.b16 %v3208
        %v3286 = vunpack.c.l.b16 %v3209
        %v3287 = vunpack.c.l.b16 %v3211
        %v3288 = vunpack.c.l.b16 %v3212
        %v3289 = vunpack.c.l.b16 %v3214
        %v3290 = vunpack.c.l.b16 %v3215
        %v3291 = vunpack.c.l.b16 %v3217
        %v3292 = vunpack.c.l.b16 %v3218
        %v3293 = vunpack.c.l.b16 %v3220
        %v3294 = vunpack.c.l.b16 %v3221
        %v3295 = vunpack.c.l.b16 %v3223
        %v3296 = vunpack.c.l.b16 %v3224
        %v3297 = vunpack.c.l.b16 %v3226
        %v3298 = vunpack.c.l.b16 %v3227
        %v3299 = vunpack.c.l.b16 %v3229
        %v3300 = vunpack.c.l.b16 %v3230
        %v3301 = vunpack.c.l.b16 %v3232
        %v3302 = vunpack.c.l.b16 %v3233
        %v3303 = vunpack.c.l.b16 %v3235
        %v3304 = vunpack.c.l.b16 %v3236
        %v3305 = vunpack.c.l.b16 %v3238
        %v3306 = vunpack.c.l.b16 %v3239
        %v3307 = vpack.c.b16 %v3276, %v3275
        %v3308 = vpack.c.b16 %v3278, %v3277
        %v3309 = vpack.c.b16 %v3280, %v3279
        %v3310 = vpack.c.b16 %v3282, %v3281
        %v3311 = vpack.c.b16 %v3284, %v3283
        %v3312 = vpack.c.b16 %v3286, %v3285
        %v3313 = vpack.c.b16 %v3288, %v3287
        %v3314 = vpack.c.b16 %v3290, %v3289
        %v3315 = vpack.c.b16 %v3292, %v3291
        %v3316 = vpack.c.b16 %v3294, %v3293
        %v3317 = vpack.c.b16 %v3296, %v3295
        %v3318 = vpack.c.b16 %v3298, %v3297
        %v3319 = vpack.c.b16 %v3300, %v3299
        %v3320 = vpack.c.b16 %v3302, %v3301
        %v3321 = vpack.c.b16 %v3304, %v3303
        %v3322 = vpack.c.b16 %v3306, %v3305
        %v3324 = vsel %vm780, %v3307, 0
        %v3327 = vsel %vm780, %v3308, 0
        %v3330 = vsel %vm780, %v3309, 0
        %v3333 = vsel %vm780, %v3310, 0
        %v3336 = vsel %vm780, %v3311, 0
        %v3339 = vsel %vm780, %v3312, 0
        %v3342 = vsel %vm780, %v3313, 0
        %v3345 = vsel %vm780, %v3314, 0
        %v3348 = vsel %vm780, %v3315, 0
        %v3351 = vsel %vm780, %v3316, 0
        %v3354 = vsel %vm780, %v3317, 0
        %v3357 = vsel %vm780, %v3318, 0
        %v3360 = vsel %vm780, %v3319, 0
        %v3363 = vsel %vm780, %v3320, 0
        %v3366 = vsel %vm780, %v3321, 0
        %v3369 = vsel %vm780, %v3322, 0
        %v3372 = vsel %vm829, %v3242, 0
        %3374 = vmatprep.subr.bf16.mxu0 0
        %3375 = vmatpush1.bf16.msra.mxu0 0
        %3376 = vmatprep.subr.bf16.mxu0 0
        %3377 = vmatpush1.bf16.msra.mxu0 0
        %3378 = vmatprep.subr.bf16.mxu0 0
        %3379 = vmatpush1.bf16.msra.mxu0 0
        %3380 = vmatprep.subr.bf16.mxu0 0
        %3381 = vmatpush1.bf16.msra.mxu0 0
        %3382 = vmatprep.subr.bf16.mxu0 0
        %3383 = vmatpush1.bf16.msra.mxu0 0
        %3384 = vmatprep.subr.bf16.mxu0 0
        %3385 = vmatpush1.bf16.msra.mxu0 0
        %3386 = vmatprep.subr.bf16.mxu0 0
        %3387 = vmatpush1.bf16.msra.mxu0 0
        %3388 = vmatprep.subr.bf16.mxu0 0
        %3389 = vmatpush1.bf16.msra.mxu0 %v3372
        %3390 = vmatprep.subr.bf16.mxu0 0
        %3391 = vmatpush2.bf16.msra.mxu0 0
        %3392 = vmatprep.subr.bf16.mxu0 0
        %3393 = vmatpush2.bf16.msra.mxu0 0
        %3394 = vmatprep.subr.bf16.mxu0 0
        %3395 = vmatpush2.bf16.msra.mxu0 0
        %3396 = vmatprep.subr.bf16.mxu0 0
        %3397 = vmatpush2.bf16.msra.mxu0 0
        %3398 = vmatprep.subr.bf16.mxu0 0
        %3399 = vmatpush2.bf16.msra.mxu0 0
        %3400 = vmatprep.subr.bf16.mxu0 0
        %3401 = vmatpush2.bf16.msra.mxu0 0
        %3402 = vmatprep.subr.bf16.mxu0 0
        %3403 = vmatpush2.bf16.msra.mxu0 0
        %3404 = vmatprep.subr.bf16.mxu0 0
        %3405 = vmatpush2.bf16.msra.mxu0 0
        %3406 = vmatprep.mubr.bf16.mxu0 0
        %3407 = vmatmul.mubr.bf16.gmra.mxu0 %v3324
        %v3408 = vpop.f32.mrf.mxu0
        %v3409 = vadd.f32 0.0, %v3408
        %v3410 = vpop.f32.mrf.mxu0
        %v3411 = vpop.f32.mrf.mxu0
        %v3412 = vadd.f32 0.0, %v3411
        %v3413 = vpop.f32.mrf.mxu0
        %3414 = vmatprep.mubr.bf16.mxu0 0
        %3415 = vmatmul.mubr.bf16.gmra.mxu0 %v3327
        %v3416 = vpop.f32.mrf.mxu0
        %v3417 = vadd.f32 0.0, %v3416
        %v3418 = vpop.f32.mrf.mxu0
        %v3419 = vpop.f32.mrf.mxu0
        %v3420 = vadd.f32 0.0, %v3419
        %v3421 = vpop.f32.mrf.mxu0
        %3422 = vmatprep.mubr.bf16.mxu0 0
        %3423 = vmatmul.mubr.bf16.gmra.mxu0 %v3330
        %v3424 = vpop.f32.mrf.mxu0
        %v3425 = vadd.f32 0.0, %v3424
        %v3426 = vpop.f32.mrf.mxu0
        %v3427 = vpop.f32.mrf.mxu0
        %v3428 = vadd.f32 0.0, %v3427
        %v3429 = vpop.f32.mrf.mxu0
        %3430 = vmatprep.mubr.bf16.mxu0 0
        %3431 = vmatmul.mubr.bf16.gmra.mxu0 %v3333
        %v3432 = vpop.f32.mrf.mxu0
        %v3433 = vadd.f32 0.0, %v3432
        %v3434 = vpop.f32.mrf.mxu0
        %v3435 = vpop.f32.mrf.mxu0
        %v3436 = vadd.f32 0.0, %v3435
        %v3437 = vpop.f32.mrf.mxu0
        %3438 = vmatprep.mubr.bf16.mxu0 0
        %3439 = vmatmul.mubr.bf16.gmra.mxu0 %v3336
        %v3440 = vpop.f32.mrf.mxu0
        %v3441 = vadd.f32 0.0, %v3440
        %v3442 = vpop.f32.mrf.mxu0
        %v3443 = vpop.f32.mrf.mxu0
        %v3444 = vadd.f32 0.0, %v3443
        %v3445 = vpop.f32.mrf.mxu0
        %3446 = vmatprep.mubr.bf16.mxu0 0
        %3447 = vmatmul.mubr.bf16.gmra.mxu0 %v3339
        %v3448 = vpop.f32.mrf.mxu0
        %v3449 = vadd.f32 0.0, %v3448
        %v3450 = vpop.f32.mrf.mxu0
        %v3451 = vpop.f32.mrf.mxu0
        %v3452 = vadd.f32 0.0, %v3451
        %v3453 = vpop.f32.mrf.mxu0
        %3454 = vmatprep.mubr.bf16.mxu0 0
        %3455 = vmatmul.mubr.bf16.gmra.mxu0 %v3342
        %v3456 = vpop.f32.mrf.mxu0
        %v3457 = vadd.f32 0.0, %v3456
        %v3458 = vpop.f32.mrf.mxu0
        %v3459 = vpop.f32.mrf.mxu0
        %v3460 = vadd.f32 0.0, %v3459
        %v3461 = vpop.f32.mrf.mxu0
        %3462 = vmatprep.mubr.bf16.mxu0 0
        %3463 = vmatmul.mubr.bf16.gmra.mxu0 %v3345
        %v3464 = vpop.f32.mrf.mxu0
        %v3465 = vadd.f32 0.0, %v3464
        %v3466 = vpop.f32.mrf.mxu0
        %v3467 = vpop.f32.mrf.mxu0
        %v3468 = vadd.f32 0.0, %v3467
        %v3469 = vpop.f32.mrf.mxu0
        %3470 = vmatprep.mubr.bf16.mxu0 0
        %3471 = vmatmul.mubr.bf16.gmra.mxu0 %v3348
        %v3472 = vpop.f32.mrf.mxu0
        %v3473 = vadd.f32 0.0, %v3472
        %v3474 = vpop.f32.mrf.mxu0
        %v3475 = vpop.f32.mrf.mxu0
        %v3476 = vadd.f32 0.0, %v3475
        %v3477 = vpop.f32.mrf.mxu0
        %3478 = vmatprep.mubr.bf16.mxu0 0
        %3479 = vmatmul.mubr.bf16.gmra.mxu0 %v3351
        %v3480 = vpop.f32.mrf.mxu0
        %v3481 = vadd.f32 0.0, %v3480
        %v3482 = vpop.f32.mrf.mxu0
        %v3483 = vpop.f32.mrf.mxu0
        %v3484 = vadd.f32 0.0, %v3483
        %v3485 = vpop.f32.mrf.mxu0
        %3486 = vmatprep.mubr.bf16.mxu0 0
        %3487 = vmatmul.mubr.bf16.gmra.mxu0 %v3354
        %v3488 = vpop.f32.mrf.mxu0
        %v3489 = vadd.f32 0.0, %v3488
        %v3490 = vpop.f32.mrf.mxu0
        %v3491 = vpop.f32.mrf.mxu0
        %v3492 = vadd.f32 0.0, %v3491
        %v3493 = vpop.f32.mrf.mxu0
        %3494 = vmatprep.mubr.bf16.mxu0 0
        %3495 = vmatmul.mubr.bf16.gmra.mxu0 %v3357
        %v3496 = vpop.f32.mrf.mxu0
        %v3497 = vadd.f32 0.0, %v3496
        %v3498 = vpop.f32.mrf.mxu0
        %v3499 = vpop.f32.mrf.mxu0
        %v3500 = vadd.f32 0.0, %v3499
        %v3501 = vpop.f32.mrf.mxu0
        %3502 = vmatprep.mubr.bf16.mxu0 0
        %3503 = vmatmul.mubr.bf16.gmra.mxu0 %v3360
        %v3504 = vpop.f32.mrf.mxu0
        %v3505 = vadd.f32 0.0, %v3504
        %v3506 = vpop.f32.mrf.mxu0
        %v3507 = vpop.f32.mrf.mxu0
        %v3508 = vadd.f32 0.0, %v3507
        %v3509 = vpop.f32.mrf.mxu0
        %3510 = vmatprep.mubr.bf16.mxu0 0
        %3511 = vmatmul.mubr.bf16.gmra.mxu0 %v3363
        %v3512 = vpop.f32.mrf.mxu0
        %v3513 = vadd.f32 0.0, %v3512
        %v3514 = vpop.f32.mrf.mxu0
        %v3515 = vpop.f32.mrf.mxu0
        %v3516 = vadd.f32 0.0, %v3515
        %v3517 = vpop.f32.mrf.mxu0
        %3518 = vmatprep.mubr.bf16.mxu0 0
        %3519 = vmatmul.mubr.bf16.gmra.mxu0 %v3366
        %v3520 = vpop.f32.mrf.mxu0
        %v3521 = vadd.f32 0.0, %v3520
        %v3522 = vpop.f32.mrf.mxu0
        %v3523 = vpop.f32.mrf.mxu0
        %v3524 = vadd.f32 0.0, %v3523
        %v3525 = vpop.f32.mrf.mxu0
        %3526 = vmatprep.mubr.bf16.mxu0 0
        %3527 = vmatmul.mubr.bf16.gmra.mxu0 %v3369
        %v3528 = vpop.f32.mrf.mxu0
        %v3529 = vadd.f32 0.0, %v3528
        %v3530 = vpop.f32.mrf.mxu0
        %v3531 = vpop.f32.mrf.mxu0
        %v3532 = vadd.f32 0.0, %v3531
        %v3533 = vpop.f32.mrf.mxu0
        %3534 = vdwg.mxu0
        %v3535 = vadd.f32 %v3157, %v3409
        %v3536 = vadd.f32 %v3158, %v3412
        %v3537 = vadd.f32 %v3159, %v3417
        %v3538 = vadd.f32 %v3160, %v3420
        %v3539 = vadd.f32 %v3161, %v3425
        %v3540 = vadd.f32 %v3162, %v3428
        %v3541 = vadd.f32 %v3163, %v3433
        %v3542 = vadd.f32 %v3164, %v3436
        %v3543 = vadd.f32 %v3165, %v3441
        %v3544 = vadd.f32 %v3166, %v3444
        %v3545 = vadd.f32 %v3167, %v3449
        %v3546 = vadd.f32 %v3168, %v3452
        %v3547 = vadd.f32 %v3169, %v3457
        %v3548 = vadd.f32 %v3170, %v3460
        %v3549 = vadd.f32 %v3171, %v3465
        %v3550 = vadd.f32 %v3172, %v3468
        %v3551 = vadd.f32 %v3173, %v3473
        %v3552 = vadd.f32 %v3174, %v3476
        %v3553 = vadd.f32 %v3175, %v3481
        %v3554 = vadd.f32 %v3176, %v3484
        %v3555 = vadd.f32 %v3177, %v3489
        %v3556 = vadd.f32 %v3178, %v3492
        %v3557 = vadd.f32 %v3179, %v3497
        %v3558 = vadd.f32 %v3180, %v3500
        %v3559 = vadd.f32 %v3181, %v3505
        %v3560 = vadd.f32 %v3182, %v3508
        %v3561 = vadd.f32 %v3183, %v3513
        %v3562 = vadd.f32 %v3184, %v3516
        %v3563 = vadd.f32 %v3185, %v3521
        %v3564 = vadd.f32 %v3186, %v3524
        %v3565 = vadd.f32 %v3187, %v3529
        %v3566 = vadd.f32 %v3188, %v3532
        %v3568 = vshrl.u32 %v3193, 16
        %v3570 = vrot.slane %v3568, 4
        %v3571 = vshll.u32 %v3193, 16
        %v3573 = vrot.slane %v3571, 5
        %v3574 = vor.u32 %v3570, %v3573
        %v3575 = vrot.slane %v3574, 4
        %v3577 = vshll.u32 %v3194, 16
        %v3579 = vrot.slane %v3577, 5
        %v3580 = vsel %vm345, %v3575, %v3579
        %v3581 = vshrl.u32 %v3194, 16
        %v3583 = vrot.slane %v3581, 4
        %v3584 = vor.u32 %v3583, %v3579
        %v3585 = vrot.slane %v3584, 4
        %v3587 = vshll.u32 %v3195, 16
        %v3589 = vrot.slane %v3587, 5
        %v3590 = vsel %vm345, %v3585, %v3589
        %v3592 = vshrl.u32 %v3196, 16
        %v3594 = vrot.slane %v3592, 4
        %v3595 = vshll.u32 %v3196, 16
        %v3597 = vrot.slane %v3595, 5
        %v3598 = vor.u32 %v3594, %v3597
        %v3599 = vrot.slane %v3598, 4
        %v3601 = vshll.u32 %v3197, 16
        %v3603 = vrot.slane %v3601, 5
        %v3604 = vsel %vm345, %v3599, %v3603
        %v3605 = vshrl.u32 %v3197, 16
        %v3607 = vrot.slane %v3605, 4
        %v3608 = vor.u32 %v3607, %v3603
        %v3609 = vrot.slane %v3608, 4
        %v3611 = vshll.u32 %v3198, 16
        %v3613 = vrot.slane %v3611, 5
        %v3614 = vsel %vm345, %v3609, %v3613
        %v3616 = vshrl.u32 %v3199, 16
        %v3618 = vrot.slane %v3616, 4
        %v3619 = vshll.u32 %v3199, 16
        %v3621 = vrot.slane %v3619, 5
        %v3622 = vor.u32 %v3618, %v3621
        %v3623 = vrot.slane %v3622, 4
        %v3625 = vshll.u32 %v3200, 16
        %v3627 = vrot.slane %v3625, 5
        %v3628 = vsel %vm345, %v3623, %v3627
        %v3629 = vshrl.u32 %v3200, 16
        %v3631 = vrot.slane %v3629, 4
        %v3632 = vor.u32 %v3631, %v3627
        %v3633 = vrot.slane %v3632, 4
        %v3635 = vshll.u32 %v3201, 16
        %v3637 = vrot.slane %v3635, 5
        %v3638 = vsel %vm345, %v3633, %v3637
        %v3640 = vshrl.u32 %v3202, 16
        %v3642 = vrot.slane %v3640, 4
        %v3643 = vshll.u32 %v3202, 16
        %v3645 = vrot.slane %v3643, 5
        %v3646 = vor.u32 %v3642, %v3645
        %v3647 = vrot.slane %v3646, 4
        %v3649 = vshll.u32 %v3203, 16
        %v3651 = vrot.slane %v3649, 5
        %v3652 = vsel %vm345, %v3647, %v3651
        %v3653 = vshrl.u32 %v3203, 16
        %v3655 = vrot.slane %v3653, 4
        %v3656 = vor.u32 %v3655, %v3651
        %v3657 = vrot.slane %v3656, 4
        %v3659 = vshll.u32 %v3204, 16
        %v3661 = vrot.slane %v3659, 5
        %v3662 = vsel %vm345, %v3657, %v3661
        %v3664 = vshrl.u32 %v3205, 16
        %v3666 = vrot.slane %v3664, 4
        %v3667 = vshll.u32 %v3205, 16
        %v3669 = vrot.slane %v3667, 5
        %v3670 = vor.u32 %v3666, %v3669
        %v3671 = vrot.slane %v3670, 4
        %v3673 = vshll.u32 %v3206, 16
        %v3675 = vrot.slane %v3673, 5
        %v3676 = vsel %vm345, %v3671, %v3675
        %v3677 = vshrl.u32 %v3206, 16
        %v3679 = vrot.slane %v3677, 4
        %v3680 = vor.u32 %v3679, %v3675
        %v3681 = vrot.slane %v3680, 4
        %v3683 = vshll.u32 %v3207, 16
        %v3685 = vrot.slane %v3683, 5
        %v3686 = vsel %vm345, %v3681, %v3685
        %v3688 = vshrl.u32 %v3208, 16
        %v3690 = vrot.slane %v3688, 4
        %v3691 = vshll.u32 %v3208, 16
        %v3693 = vrot.slane %v3691, 5
        %v3694 = vor.u32 %v3690, %v3693
        %v3695 = vrot.slane %v3694, 4
        %v3697 = vshll.u32 %v3209, 16
        %v3699 = vrot.slane %v3697, 5
        %v3700 = vsel %vm345, %v3695, %v3699
        %v3701 = vshrl.u32 %v3209, 16
        %v3703 = vrot.slane %v3701, 4
        %v3704 = vor.u32 %v3703, %v3699
        %v3705 = vrot.slane %v3704, 4
        %v3707 = vshll.u32 %v3210, 16
        %v3709 = vrot.slane %v3707, 5
        %v3710 = vsel %vm345, %v3705, %v3709
        %v3712 = vshrl.u32 %v3211, 16
        %v3714 = vrot.slane %v3712, 4
        %v3715 = vshll.u32 %v3211, 16
        %v3717 = vrot.slane %v3715, 5
        %v3718 = vor.u32 %v3714, %v3717
        %v3719 = vrot.slane %v3718, 4
        %v3721 = vshll.u32 %v3212, 16
        %v3723 = vrot.slane %v3721, 5
        %v3724 = vsel %vm345, %v3719, %v3723
        %v3725 = vshrl.u32 %v3212, 16
        %v3727 = vrot.slane %v3725, 4
        %v3728 = vor.u32 %v3727, %v3723
        %v3729 = vrot.slane %v3728, 4
        %v3731 = vshll.u32 %v3213, 16
        %v3733 = vrot.slane %v3731, 5
        %v3734 = vsel %vm345, %v3729, %v3733
        %v3736 = vshrl.u32 %v3214, 16
        %v3738 = vrot.slane %v3736, 4
        %v3739 = vshll.u32 %v3214, 16
        %v3741 = vrot.slane %v3739, 5
        %v3742 = vor.u32 %v3738, %v3741
        %v3743 = vrot.slane %v3742, 4
        %v3745 = vshll.u32 %v3215, 16
        %v3747 = vrot.slane %v3745, 5
        %v3748 = vsel %vm345, %v3743, %v3747
        %v3749 = vshrl.u32 %v3215, 16
        %v3751 = vrot.slane %v3749, 4
        %v3752 = vor.u32 %v3751, %v3747
        %v3753 = vrot.slane %v3752, 4
        %v3755 = vshll.u32 %v3216, 16
        %v3757 = vrot.slane %v3755, 5
        %v3758 = vsel %vm345, %v3753, %v3757
        %v3760 = vshrl.u32 %v3217, 16
        %v3762 = vrot.slane %v3760, 4
        %v3763 = vshll.u32 %v3217, 16
        %v3765 = vrot.slane %v3763, 5
        %v3766 = vor.u32 %v3762, %v3765
        %v3767 = vrot.slane %v3766, 4
        %v3769 = vshll.u32 %v3218, 16
        %v3771 = vrot.slane %v3769, 5
        %v3772 = vsel %vm345, %v3767, %v3771
        %v3773 = vshrl.u32 %v3218, 16
        %v3775 = vrot.slane %v3773, 4
        %v3776 = vor.u32 %v3775, %v3771
        %v3777 = vrot.slane %v3776, 4
        %v3779 = vshll.u32 %v3219, 16
        %v3781 = vrot.slane %v3779, 5
        %v3782 = vsel %vm345, %v3777, %v3781
        %v3784 = vshrl.u32 %v3220, 16
        %v3786 = vrot.slane %v3784, 4
        %v3787 = vshll.u32 %v3220, 16
        %v3789 = vrot.slane %v3787, 5
        %v3790 = vor.u32 %v3786, %v3789
        %v3791 = vrot.slane %v3790, 4
        %v3793 = vshll.u32 %v3221, 16
        %v3795 = vrot.slane %v3793, 5
        %v3796 = vsel %vm345, %v3791, %v3795
        %v3797 = vshrl.u32 %v3221, 16
        %v3799 = vrot.slane %v3797, 4
        %v3800 = vor.u32 %v3799, %v3795
        %v3801 = vrot.slane %v3800, 4
        %v3803 = vshll.u32 %v3222, 16
        %v3805 = vrot.slane %v3803, 5
        %v3806 = vsel %vm345, %v3801, %v3805
        %v3808 = vshrl.u32 %v3223, 16
        %v3810 = vrot.slane %v3808, 4
        %v3811 = vshll.u32 %v3223, 16
        %v3813 = vrot.slane %v3811, 5
        %v3814 = vor.u32 %v3810, %v3813
        %v3815 = vrot.slane %v3814, 4
        %v3817 = vshll.u32 %v3224, 16
        %v3819 = vrot.slane %v3817, 5
        %v3820 = vsel %vm345, %v3815, %v3819
        %v3821 = vshrl.u32 %v3224, 16
        %v3823 = vrot.slane %v3821, 4
        %v3824 = vor.u32 %v3823, %v3819
        %v3825 = vrot.slane %v3824, 4
        %v3827 = vshll.u32 %v3225, 16
        %v3829 = vrot.slane %v3827, 5
        %v3830 = vsel %vm345, %v3825, %v3829
        %v3832 = vshrl.u32 %v3226, 16
        %v3834 = vrot.slane %v3832, 4
        %v3835 = vshll.u32 %v3226, 16
        %v3837 = vrot.slane %v3835, 5
        %v3838 = vor.u32 %v3834, %v3837
        %v3839 = vrot.slane %v3838, 4
        %v3841 = vshll.u32 %v3227, 16
        %v3843 = vrot.slane %v3841, 5
        %v3844 = vsel %vm345, %v3839, %v3843
        %v3845 = vshrl.u32 %v3227, 16
        %v3847 = vrot.slane %v3845, 4
        %v3848 = vor.u32 %v3847, %v3843
        %v3849 = vrot.slane %v3848, 4
        %v3851 = vshll.u32 %v3228, 16
        %v3853 = vrot.slane %v3851, 5
        %v3854 = vsel %vm345, %v3849, %v3853
        %v3856 = vshrl.u32 %v3229, 16
        %v3858 = vrot.slane %v3856, 4
        %v3859 = vshll.u32 %v3229, 16
        %v3861 = vrot.slane %v3859, 5
        %v3862 = vor.u32 %v3858, %v3861
        %v3863 = vrot.slane %v3862, 4
        %v3865 = vshll.u32 %v3230, 16
        %v3867 = vrot.slane %v3865, 5
        %v3868 = vsel %vm345, %v3863, %v3867
        %v3869 = vshrl.u32 %v3230, 16
        %v3871 = vrot.slane %v3869, 4
        %v3872 = vor.u32 %v3871, %v3867
        %v3873 = vrot.slane %v3872, 4
        %v3875 = vshll.u32 %v3231, 16
        %v3877 = vrot.slane %v3875, 5
        %v3878 = vsel %vm345, %v3873, %v3877
        %v3880 = vshrl.u32 %v3232, 16
        %v3882 = vrot.slane %v3880, 4
        %v3883 = vshll.u32 %v3232, 16
        %v3885 = vrot.slane %v3883, 5
        %v3886 = vor.u32 %v3882, %v3885
        %v3887 = vrot.slane %v3886, 4
        %v3889 = vshll.u32 %v3233, 16
        %v3891 = vrot.slane %v3889, 5
        %v3892 = vsel %vm345, %v3887, %v3891
        %v3893 = vshrl.u32 %v3233, 16
        %v3895 = vrot.slane %v3893, 4
        %v3896 = vor.u32 %v3895, %v3891
        %v3897 = vrot.slane %v3896, 4
        %v3899 = vshll.u32 %v3234, 16
        %v3901 = vrot.slane %v3899, 5
        %v3902 = vsel %vm345, %v3897, %v3901
        %v3904 = vshrl.u32 %v3235, 16
        %v3906 = vrot.slane %v3904, 4
        %v3907 = vshll.u32 %v3235, 16
        %v3909 = vrot.slane %v3907, 5
        %v3910 = vor.u32 %v3906, %v3909
        %v3911 = vrot.slane %v3910, 4
        %v3913 = vshll.u32 %v3236, 16
        %v3915 = vrot.slane %v3913, 5
        %v3916 = vsel %vm345, %v3911, %v3915
        %v3917 = vshrl.u32 %v3236, 16
        %v3919 = vrot.slane %v3917, 4
        %v3920 = vor.u32 %v3919, %v3915
        %v3921 = vrot.slane %v3920, 4
        %v3923 = vshll.u32 %v3237, 16
        %v3925 = vrot.slane %v3923, 5
        %v3926 = vsel %vm345, %v3921, %v3925
        %v3928 = vshrl.u32 %v3238, 16
        %v3930 = vrot.slane %v3928, 4
        %v3931 = vshll.u32 %v3238, 16
        %v3933 = vrot.slane %v3931, 5
        %v3934 = vor.u32 %v3930, %v3933
        %v3935 = vrot.slane %v3934, 4
        %v3937 = vshll.u32 %v3239, 16
        %v3939 = vrot.slane %v3937, 5
        %v3940 = vsel %vm345, %v3935, %v3939
        %v3941 = vshrl.u32 %v3239, 16
        %v3943 = vrot.slane %v3941, 4
        %v3944 = vor.u32 %v3943, %v3939
        %v3945 = vrot.slane %v3944, 4
        %v3947 = vshll.u32 %v3240, 16
        %v3949 = vrot.slane %v3947, 5
        %v3950 = vsel %vm345, %v3945, %v3949
        %s3951 = scalar_lea.vmem %s248, 14
        %v3952 = vld [vmem:[%s3951] sm:$0x3]
        %v3953 = vunpack.c.l.b16 %v3580
        %v3954 = vunpack.c.l.b16 %v3590
        %v3955 = vunpack.c.l.b16 %v3604
        %v3956 = vunpack.c.l.b16 %v3614
        %v3957 = vunpack.c.l.b16 %v3628
        %v3958 = vunpack.c.l.b16 %v3638
        %v3959 = vunpack.c.l.b16 %v3652
        %v3960 = vunpack.c.l.b16 %v3662
        %v3961 = vunpack.c.l.b16 %v3676
        %v3962 = vunpack.c.l.b16 %v3686
        %v3963 = vunpack.c.l.b16 %v3700
        %v3964 = vunpack.c.l.b16 %v3710
        %v3965 = vunpack.c.l.b16 %v3724
        %v3966 = vunpack.c.l.b16 %v3734
        %v3967 = vunpack.c.l.b16 %v3748
        %v3968 = vunpack.c.l.b16 %v3758
        %v3969 = vunpack.c.l.b16 %v3772
        %v3970 = vunpack.c.l.b16 %v3782
        %v3971 = vunpack.c.l.b16 %v3796
        %v3972 = vunpack.c.l.b16 %v3806
        %v3973 = vunpack.c.l.b16 %v3820
        %v3974 = vunpack.c.l.b16 %v3830
        %v3975 = vunpack.c.l.b16 %v3844
        %v3976 = vunpack.c.l.b16 %v3854
        %v3977 = vunpack.c.l.b16 %v3868
        %v3978 = vunpack.c.l.b16 %v3878
        %v3979 = vunpack.c.l.b16 %v3892
        %v3980 = vunpack.c.l.b16 %v3902
        %v3981 = vunpack.c.l.b16 %v3916
        %v3982 = vunpack.c.l.b16 %v3926
        %v3983 = vunpack.c.l.b16 %v3940
        %v3984 = vunpack.c.l.b16 %v3950
        %v3985 = vpack.c.b16 %v3954, %v3953
        %v3986 = vpack.c.b16 %v3956, %v3955
        %v3987 = vpack.c.b16 %v3958, %v3957
        %v3988 = vpack.c.b16 %v3960, %v3959
        %v3989 = vpack.c.b16 %v3962, %v3961
        %v3990 = vpack.c.b16 %v3964, %v3963
        %v3991 = vpack.c.b16 %v3966, %v3965
        %v3992 = vpack.c.b16 %v3968, %v3967
        %v3993 = vpack.c.b16 %v3970, %v3969
        %v3994 = vpack.c.b16 %v3972, %v3971
        %v3995 = vpack.c.b16 %v3974, %v3973
        %v3996 = vpack.c.b16 %v3976, %v3975
        %v3997 = vpack.c.b16 %v3978, %v3977
        %v3998 = vpack.c.b16 %v3980, %v3979
        %v3999 = vpack.c.b16 %v3982, %v3981
        %v4000 = vpack.c.b16 %v3984, %v3983
        %v4002 = vsel %vm780, %v3985, 0
        %v4005 = vsel %vm780, %v3986, 0
        %v4008 = vsel %vm780, %v3987, 0
        %v4011 = vsel %vm780, %v3988, 0
        %v4014 = vsel %vm780, %v3989, 0
        %v4017 = vsel %vm780, %v3990, 0
        %v4020 = vsel %vm780, %v3991, 0
        %v4023 = vsel %vm780, %v3992, 0
        %v4026 = vsel %vm780, %v3993, 0
        %v4029 = vsel %vm780, %v3994, 0
        %v4032 = vsel %vm780, %v3995, 0
        %v4035 = vsel %vm780, %v3996, 0
        %v4038 = vsel %vm780, %v3997, 0
        %v4041 = vsel %vm780, %v3998, 0
        %v4044 = vsel %vm780, %v3999, 0
        %v4047 = vsel %vm780, %v4000, 0
        %v4050 = vsel %vm829, %v3952, 0
        %4052 = vmatprep.subr.bf16.mxu0 0
        %4053 = vmatpush1.bf16.msra.mxu0 0
        %4054 = vmatprep.subr.bf16.mxu0 0
        %4055 = vmatpush1.bf16.msra.mxu0 0
        %4056 = vmatprep.subr.bf16.mxu0 0
        %4057 = vmatpush1.bf16.msra.mxu0 0
        %4058 = vmatprep.subr.bf16.mxu0 0
        %4059 = vmatpush1.bf16.msra.mxu0 0
        %4060 = vmatprep.subr.bf16.mxu0 0
        %4061 = vmatpush1.bf16.msra.mxu0 0
        %4062 = vmatprep.subr.bf16.mxu0 0
        %4063 = vmatpush1.bf16.msra.mxu0 0
        %4064 = vmatprep.subr.bf16.mxu0 0
        %4065 = vmatpush1.bf16.msra.mxu0 0
        %4066 = vmatprep.subr.bf16.mxu0 0
        %4067 = vmatpush1.bf16.msra.mxu0 %v4050
        %4068 = vmatprep.subr.bf16.mxu0 0
        %4069 = vmatpush2.bf16.msra.mxu0 0
        %4070 = vmatprep.subr.bf16.mxu0 0
        %4071 = vmatpush2.bf16.msra.mxu0 0
        %4072 = vmatprep.subr.bf16.mxu0 0
        %4073 = vmatpush2.bf16.msra.mxu0 0
        %4074 = vmatprep.subr.bf16.mxu0 0
        %4075 = vmatpush2.bf16.msra.mxu0 0
        %4076 = vmatprep.subr.bf16.mxu0 0
        %4077 = vmatpush2.bf16.msra.mxu0 0
        %4078 = vmatprep.subr.bf16.mxu0 0
        %4079 = vmatpush2.bf16.msra.mxu0 0
        %4080 = vmatprep.subr.bf16.mxu0 0
        %4081 = vmatpush2.bf16.msra.mxu0 0
        %4082 = vmatprep.subr.bf16.mxu0 0
        %4083 = vmatpush2.bf16.msra.mxu0 0
        %4084 = vmatprep.mubr.bf16.mxu0 0
        %4085 = vmatmul.mubr.bf16.gmra.mxu0 %v4002
        %v4086 = vpop.f32.mrf.mxu0
        %v4087 = vadd.f32 0.0, %v4086
        %v4088 = vpop.f32.mrf.mxu0
        %v4089 = vpop.f32.mrf.mxu0
        %v4090 = vadd.f32 0.0, %v4089
        %v4091 = vpop.f32.mrf.mxu0
        %4092 = vmatprep.mubr.bf16.mxu0 0
        %4093 = vmatmul.mubr.bf16.gmra.mxu0 %v4005
        %v4094 = vpop.f32.mrf.mxu0
        %v4095 = vadd.f32 0.0, %v4094
        %v4096 = vpop.f32.mrf.mxu0
        %v4097 = vpop.f32.mrf.mxu0
        %v4098 = vadd.f32 0.0, %v4097
        %v4099 = vpop.f32.mrf.mxu0
        %4100 = vmatprep.mubr.bf16.mxu0 0
        %4101 = vmatmul.mubr.bf16.gmra.mxu0 %v4008
        %v4102 = vpop.f32.mrf.mxu0
        %v4103 = vadd.f32 0.0, %v4102
        %v4104 = vpop.f32.mrf.mxu0
        %v4105 = vpop.f32.mrf.mxu0
        %v4106 = vadd.f32 0.0, %v4105
        %v4107 = vpop.f32.mrf.mxu0
        %4108 = vmatprep.mubr.bf16.mxu0 0
        %4109 = vmatmul.mubr.bf16.gmra.mxu0 %v4011
        %v4110 = vpop.f32.mrf.mxu0
        %v4111 = vadd.f32 0.0, %v4110
        %v4112 = vpop.f32.mrf.mxu0
        %v4113 = vpop.f32.mrf.mxu0
        %v4114 = vadd.f32 0.0, %v4113
        %v4115 = vpop.f32.mrf.mxu0
        %4116 = vmatprep.mubr.bf16.mxu0 0
        %4117 = vmatmul.mubr.bf16.gmra.mxu0 %v4014
        %v4118 = vpop.f32.mrf.mxu0
        %v4119 = vadd.f32 0.0, %v4118
        %v4120 = vpop.f32.mrf.mxu0
        %v4121 = vpop.f32.mrf.mxu0
        %v4122 = vadd.f32 0.0, %v4121
        %v4123 = vpop.f32.mrf.mxu0
        %4124 = vmatprep.mubr.bf16.mxu0 0
        %4125 = vmatmul.mubr.bf16.gmra.mxu0 %v4017
        %v4126 = vpop.f32.mrf.mxu0
        %v4127 = vadd.f32 0.0, %v4126
        %v4128 = vpop.f32.mrf.mxu0
        %v4129 = vpop.f32.mrf.mxu0
        %v4130 = vadd.f32 0.0, %v4129
        %v4131 = vpop.f32.mrf.mxu0
        %4132 = vmatprep.mubr.bf16.mxu0 0
        %4133 = vmatmul.mubr.bf16.gmra.mxu0 %v4020
        %v4134 = vpop.f32.mrf.mxu0
        %v4135 = vadd.f32 0.0, %v4134
        %v4136 = vpop.f32.mrf.mxu0
        %v4137 = vpop.f32.mrf.mxu0
        %v4138 = vadd.f32 0.0, %v4137
        %v4139 = vpop.f32.mrf.mxu0
        %4140 = vmatprep.mubr.bf16.mxu0 0
        %4141 = vmatmul.mubr.bf16.gmra.mxu0 %v4023
        %v4142 = vpop.f32.mrf.mxu0
        %v4143 = vadd.f32 0.0, %v4142
        %v4144 = vpop.f32.mrf.mxu0
        %v4145 = vpop.f32.mrf.mxu0
        %v4146 = vadd.f32 0.0, %v4145
        %v4147 = vpop.f32.mrf.mxu0
        %4148 = vmatprep.mubr.bf16.mxu0 0
        %4149 = vmatmul.mubr.bf16.gmra.mxu0 %v4026
        %v4150 = vpop.f32.mrf.mxu0
        %v4151 = vadd.f32 0.0, %v4150
        %v4152 = vpop.f32.mrf.mxu0
        %v4153 = vpop.f32.mrf.mxu0
        %v4154 = vadd.f32 0.0, %v4153
        %v4155 = vpop.f32.mrf.mxu0
        %4156 = vmatprep.mubr.bf16.mxu0 0
        %4157 = vmatmul.mubr.bf16.gmra.mxu0 %v4029
        %v4158 = vpop.f32.mrf.mxu0
        %v4159 = vadd.f32 0.0, %v4158
        %v4160 = vpop.f32.mrf.mxu0
        %v4161 = vpop.f32.mrf.mxu0
        %v4162 = vadd.f32 0.0, %v4161
        %v4163 = vpop.f32.mrf.mxu0
        %4164 = vmatprep.mubr.bf16.mxu0 0
        %4165 = vmatmul.mubr.bf16.gmra.mxu0 %v4032
        %v4166 = vpop.f32.mrf.mxu0
        %v4167 = vadd.f32 0.0, %v4166
        %v4168 = vpop.f32.mrf.mxu0
        %v4169 = vpop.f32.mrf.mxu0
        %v4170 = vadd.f32 0.0, %v4169
        %v4171 = vpop.f32.mrf.mxu0
        %4172 = vmatprep.mubr.bf16.mxu0 0
        %4173 = vmatmul.mubr.bf16.gmra.mxu0 %v4035
        %v4174 = vpop.f32.mrf.mxu0
        %v4175 = vadd.f32 0.0, %v4174
        %v4176 = vpop.f32.mrf.mxu0
        %v4177 = vpop.f32.mrf.mxu0
        %v4178 = vadd.f32 0.0, %v4177
        %v4179 = vpop.f32.mrf.mxu0
        %4180 = vmatprep.mubr.bf16.mxu0 0
        %4181 = vmatmul.mubr.bf16.gmra.mxu0 %v4038
        %v4182 = vpop.f32.mrf.mxu0
        %v4183 = vadd.f32 0.0, %v4182
        %v4184 = vpop.f32.mrf.mxu0
        %v4185 = vpop.f32.mrf.mxu0
        %v4186 = vadd.f32 0.0, %v4185
        %v4187 = vpop.f32.mrf.mxu0
        %4188 = vmatprep.mubr.bf16.mxu0 0
        %4189 = vmatmul.mubr.bf16.gmra.mxu0 %v4041
        %v4190 = vpop.f32.mrf.mxu0
        %v4191 = vadd.f32 0.0, %v4190
        %v4192 = vpop.f32.mrf.mxu0
        %v4193 = vpop.f32.mrf.mxu0
        %v4194 = vadd.f32 0.0, %v4193
        %v4195 = vpop.f32.mrf.mxu0
        %4196 = vmatprep.mubr.bf16.mxu0 0
        %4197 = vmatmul.mubr.bf16.gmra.mxu0 %v4044
        %v4198 = vpop.f32.mrf.mxu0
        %v4199 = vadd.f32 0.0, %v4198
        %v4200 = vpop.f32.mrf.mxu0
        %v4201 = vpop.f32.mrf.mxu0
        %v4202 = vadd.f32 0.0, %v4201
        %v4203 = vpop.f32.mrf.mxu0
        %4204 = vmatprep.mubr.bf16.mxu0 0
        %4205 = vmatmul.mubr.bf16.gmra.mxu0 %v4047
        %v4206 = vpop.f32.mrf.mxu0
        %v4207 = vadd.f32 0.0, %v4206
        %v4208 = vpop.f32.mrf.mxu0
        %v4209 = vpop.f32.mrf.mxu0
        %v4210 = vadd.f32 0.0, %v4209
        %v4211 = vpop.f32.mrf.mxu0
        %4212 = vdwg.mxu0
        %v4213 = vadd.f32 %v3535, %v4087
        %v4214 = vadd.f32 %v3536, %v4090
        %v4215 = vadd.f32 %v3537, %v4095
        %v4216 = vadd.f32 %v3538, %v4098
        %v4217 = vadd.f32 %v3539, %v4103
        %v4218 = vadd.f32 %v3540, %v4106
        %v4219 = vadd.f32 %v3541, %v4111
        %v4220 = vadd.f32 %v3542, %v4114
        %v4221 = vadd.f32 %v3543, %v4119
        %v4222 = vadd.f32 %v3544, %v4122
        %v4223 = vadd.f32 %v3545, %v4127
        %v4224 = vadd.f32 %v3546, %v4130
        %v4225 = vadd.f32 %v3547, %v4135
        %v4226 = vadd.f32 %v3548, %v4138
        %v4227 = vadd.f32 %v3549, %v4143
        %v4228 = vadd.f32 %v3550, %v4146
        %v4229 = vadd.f32 %v3551, %v4151
        %v4230 = vadd.f32 %v3552, %v4154
        %v4231 = vadd.f32 %v3553, %v4159
        %v4232 = vadd.f32 %v3554, %v4162
        %v4233 = vadd.f32 %v3555, %v4167
        %v4234 = vadd.f32 %v3556, %v4170
        %v4235 = vadd.f32 %v3557, %v4175
        %v4236 = vadd.f32 %v3558, %v4178
        %v4237 = vadd.f32 %v3559, %v4183
        %v4238 = vadd.f32 %v3560, %v4186
        %v4239 = vadd.f32 %v3561, %v4191
        %v4240 = vadd.f32 %v3562, %v4194
        %v4241 = vadd.f32 %v3563, %v4199
        %v4242 = vadd.f32 %v3564, %v4202
        %v4243 = vadd.f32 %v3565, %v4207
        %v4244 = vadd.f32 %v3566, %v4210
        %v4261 = vrot.slane %v3193, 5
        %v4262 = vrot.slane %v4261, 4
        %v4263 = vrot.slane %v3194, 5
        %v4264 = vsel %vm1304, %v4262, %v4263
        %v4265 = vrot.slane %v4263, 4
        %v4266 = vrot.slane %v3195, 5
        %v4267 = vsel %vm1304, %v4265, %v4266
        %v4268 = vrot.slane %v3196, 5
        %v4269 = vrot.slane %v4268, 4
        %v4270 = vrot.slane %v3197, 5
        %v4271 = vsel %vm1304, %v4269, %v4270
        %v4272 = vrot.slane %v4270, 4
        %v4273 = vrot.slane %v3198, 5
        %v4274 = vsel %vm1304, %v4272, %v4273
        %v4275 = vrot.slane %v3199, 5
        %v4276 = vrot.slane %v4275, 4
        %v4277 = vrot.slane %v3200, 5
        %v4278 = vsel %vm1304, %v4276, %v4277
        %v4279 = vrot.slane %v4277, 4
        %v4280 = vrot.slane %v3201, 5
        %v4281 = vsel %vm1304, %v4279, %v4280
        %v4282 = vrot.slane %v3202, 5
        %v4283 = vrot.slane %v4282, 4
        %v4284 = vrot.slane %v3203, 5
        %v4285 = vsel %vm1304, %v4283, %v4284
        %v4286 = vrot.slane %v4284, 4
        %v4287 = vrot.slane %v3204, 5
        %v4288 = vsel %vm1304, %v4286, %v4287
        %v4289 = vrot.slane %v3205, 5
        %v4290 = vrot.slane %v4289, 4
        %v4291 = vrot.slane %v3206, 5
        %v4292 = vsel %vm1304, %v4290, %v4291
        %v4293 = vrot.slane %v4291, 4
        %v4294 = vrot.slane %v3207, 5
        %v4295 = vsel %vm1304, %v4293, %v4294
        %v4296 = vrot.slane %v3208, 5
        %v4297 = vrot.slane %v4296, 4
        %v4298 = vrot.slane %v3209, 5
        %v4299 = vsel %vm1304, %v4297, %v4298
        %v4300 = vrot.slane %v4298, 4
        %v4301 = vrot.slane %v3210, 5
        %v4302 = vsel %vm1304, %v4300, %v4301
        %v4303 = vrot.slane %v3211, 5
        %v4304 = vrot.slane %v4303, 4
        %v4305 = vrot.slane %v3212, 5
        %v4306 = vsel %vm1304, %v4304, %v4305
        %v4307 = vrot.slane %v4305, 4
        %v4308 = vrot.slane %v3213, 5
        %v4309 = vsel %vm1304, %v4307, %v4308
        %v4310 = vrot.slane %v3214, 5
        %v4311 = vrot.slane %v4310, 4
        %v4312 = vrot.slane %v3215, 5
        %v4313 = vsel %vm1304, %v4311, %v4312
        %v4314 = vrot.slane %v4312, 4
        %v4315 = vrot.slane %v3216, 5
        %v4316 = vsel %vm1304, %v4314, %v4315
        %v4317 = vrot.slane %v3217, 5
        %v4318 = vrot.slane %v4317, 4
        %v4319 = vrot.slane %v3218, 5
        %v4320 = vsel %vm1304, %v4318, %v4319
        %v4321 = vrot.slane %v4319, 4
        %v4322 = vrot.slane %v3219, 5
        %v4323 = vsel %vm1304, %v4321, %v4322
        %v4324 = vrot.slane %v3220, 5
        %v4325 = vrot.slane %v4324, 4
        %v4326 = vrot.slane %v3221, 5
        %v4327 = vsel %vm1304, %v4325, %v4326
        %v4328 = vrot.slane %v4326, 4
        %v4329 = vrot.slane %v3222, 5
        %v4330 = vsel %vm1304, %v4328, %v4329
        %v4331 = vrot.slane %v3223, 5
        %v4332 = vrot.slane %v4331, 4
        %v4333 = vrot.slane %v3224, 5
        %v4334 = vsel %vm1304, %v4332, %v4333
        %v4335 = vrot.slane %v4333, 4
        %v4336 = vrot.slane %v3225, 5
        %v4337 = vsel %vm1304, %v4335, %v4336
        %v4338 = vrot.slane %v3226, 5
        %v4339 = vrot.slane %v4338, 4
        %v4340 = vrot.slane %v3227, 5
        %v4341 = vsel %vm1304, %v4339, %v4340
        %v4342 = vrot.slane %v4340, 4
        %v4343 = vrot.slane %v3228, 5
        %v4344 = vsel %vm1304, %v4342, %v4343
        %v4345 = vrot.slane %v3229, 5
        %v4346 = vrot.slane %v4345, 4
        %v4347 = vrot.slane %v3230, 5
        %v4348 = vsel %vm1304, %v4346, %v4347
        %v4349 = vrot.slane %v4347, 4
        %v4350 = vrot.slane %v3231, 5
        %v4351 = vsel %vm1304, %v4349, %v4350
        %v4352 = vrot.slane %v3232, 5
        %v4353 = vrot.slane %v4352, 4
        %v4354 = vrot.slane %v3233, 5
        %v4355 = vsel %vm1304, %v4353, %v4354
        %v4356 = vrot.slane %v4354, 4
        %v4357 = vrot.slane %v3234, 5
        %v4358 = vsel %vm1304, %v4356, %v4357
        %v4359 = vrot.slane %v3235, 5
        %v4360 = vrot.slane %v4359, 4
        %v4361 = vrot.slane %v3236, 5
        %v4362 = vsel %vm1304, %v4360, %v4361
        %v4363 = vrot.slane %v4361, 4
        %v4364 = vrot.slane %v3237, 5
        %v4365 = vsel %vm1304, %v4363, %v4364
        %v4366 = vrot.slane %v3238, 5
        %v4367 = vrot.slane %v4366, 4
        %v4368 = vrot.slane %v3239, 5
        %v4369 = vsel %vm1304, %v4367, %v4368
        %v4370 = vrot.slane %v4368, 4
        %v4371 = vrot.slane %v3240, 5
        %v4372 = vsel %vm1304, %v4370, %v4371
        %s4373 = scalar_lea.vmem %s248, 16
        %v4374 = vld [vmem:[%s4373] sm:$0x3]
        %v4375 = vunpack.c.l.b16 %v4264
        %v4376 = vunpack.c.l.b16 %v4267
        %v4377 = vunpack.c.l.b16 %v4271
        %v4378 = vunpack.c.l.b16 %v4274
        %v4379 = vunpack.c.l.b16 %v4278
        %v4380 = vunpack.c.l.b16 %v4281
        %v4381 = vunpack.c.l.b16 %v4285
        %v4382 = vunpack.c.l.b16 %v4288
        %v4383 = vunpack.c.l.b16 %v4292
        %v4384 = vunpack.c.l.b16 %v4295
        %v4385 = vunpack.c.l.b16 %v4299
        %v4386 = vunpack.c.l.b16 %v4302
        %v4387 = vunpack.c.l.b16 %v4306
        %v4388 = vunpack.c.l.b16 %v4309
        %v4389 = vunpack.c.l.b16 %v4313
        %v4390 = vunpack.c.l.b16 %v4316
        %v4391 = vunpack.c.l.b16 %v4320
        %v4392 = vunpack.c.l.b16 %v4323
        %v4393 = vunpack.c.l.b16 %v4327
        %v4394 = vunpack.c.l.b16 %v4330
        %v4395 = vunpack.c.l.b16 %v4334
        %v4396 = vunpack.c.l.b16 %v4337
        %v4397 = vunpack.c.l.b16 %v4341
        %v4398 = vunpack.c.l.b16 %v4344
        %v4399 = vunpack.c.l.b16 %v4348
        %v4400 = vunpack.c.l.b16 %v4351
        %v4401 = vunpack.c.l.b16 %v4355
        %v4402 = vunpack.c.l.b16 %v4358
        %v4403 = vunpack.c.l.b16 %v4362
        %v4404 = vunpack.c.l.b16 %v4365
        %v4405 = vunpack.c.l.b16 %v4369
        %v4406 = vunpack.c.l.b16 %v4372
        %v4407 = vpack.c.b16 %v4376, %v4375
        %v4408 = vpack.c.b16 %v4378, %v4377
        %v4409 = vpack.c.b16 %v4380, %v4379
        %v4410 = vpack.c.b16 %v4382, %v4381
        %v4411 = vpack.c.b16 %v4384, %v4383
        %v4412 = vpack.c.b16 %v4386, %v4385
        %v4413 = vpack.c.b16 %v4388, %v4387
        %v4414 = vpack.c.b16 %v4390, %v4389
        %v4415 = vpack.c.b16 %v4392, %v4391
        %v4416 = vpack.c.b16 %v4394, %v4393
        %v4417 = vpack.c.b16 %v4396, %v4395
        %v4418 = vpack.c.b16 %v4398, %v4397
        %v4419 = vpack.c.b16 %v4400, %v4399
        %v4420 = vpack.c.b16 %v4402, %v4401
        %v4421 = vpack.c.b16 %v4404, %v4403
        %v4422 = vpack.c.b16 %v4406, %v4405
        %v4424 = vsel %vm780, %v4407, 0
        %v4427 = vsel %vm780, %v4408, 0
        %v4430 = vsel %vm780, %v4409, 0
        %v4433 = vsel %vm780, %v4410, 0
        %v4436 = vsel %vm780, %v4411, 0
        %v4439 = vsel %vm780, %v4412, 0
        %v4442 = vsel %vm780, %v4413, 0
        %v4445 = vsel %vm780, %v4414, 0
        %v4448 = vsel %vm780, %v4415, 0
        %v4451 = vsel %vm780, %v4416, 0
        %v4454 = vsel %vm780, %v4417, 0
        %v4457 = vsel %vm780, %v4418, 0
        %v4460 = vsel %vm780, %v4419, 0
        %v4463 = vsel %vm780, %v4420, 0
        %v4466 = vsel %vm780, %v4421, 0
        %v4469 = vsel %vm780, %v4422, 0
        %v4472 = vsel %vm829, %v4374, 0
        %4474 = vmatprep.subr.bf16.mxu0 0
        %4475 = vmatpush1.bf16.msra.mxu0 0
        %4476 = vmatprep.subr.bf16.mxu0 0
        %4477 = vmatpush1.bf16.msra.mxu0 0
        %4478 = vmatprep.subr.bf16.mxu0 0
        %4479 = vmatpush1.bf16.msra.mxu0 0
        %4480 = vmatprep.subr.bf16.mxu0 0
        %4481 = vmatpush1.bf16.msra.mxu0 0
        %4482 = vmatprep.subr.bf16.mxu0 0
        %4483 = vmatpush1.bf16.msra.mxu0 0
        %4484 = vmatprep.subr.bf16.mxu0 0
        %4485 = vmatpush1.bf16.msra.mxu0 0
        %4486 = vmatprep.subr.bf16.mxu0 0
        %4487 = vmatpush1.bf16.msra.mxu0 0
        %4488 = vmatprep.subr.bf16.mxu0 0
        %4489 = vmatpush1.bf16.msra.mxu0 %v4472
        %4490 = vmatprep.subr.bf16.mxu0 0
        %4491 = vmatpush2.bf16.msra.mxu0 0
        %4492 = vmatprep.subr.bf16.mxu0 0
        %4493 = vmatpush2.bf16.msra.mxu0 0
        %4494 = vmatprep.subr.bf16.mxu0 0
        %4495 = vmatpush2.bf16.msra.mxu0 0
        %4496 = vmatprep.subr.bf16.mxu0 0
        %4497 = vmatpush2.bf16.msra.mxu0 0
        %4498 = vmatprep.subr.bf16.mxu0 0
        %4499 = vmatpush2.bf16.msra.mxu0 0
        %4500 = vmatprep.subr.bf16.mxu0 0
        %4501 = vmatpush2.bf16.msra.mxu0 0
        %4502 = vmatprep.subr.bf16.mxu0 0
        %4503 = vmatpush2.bf16.msra.mxu0 0
        %4504 = vmatprep.subr.bf16.mxu0 0
        %4505 = vmatpush2.bf16.msra.mxu0 0
        %4506 = vmatprep.mubr.bf16.mxu0 0
        %4507 = vmatmul.mubr.bf16.gmra.mxu0 %v4424
        %v4508 = vpop.f32.mrf.mxu0
        %v4509 = vadd.f32 0.0, %v4508
        %v4510 = vpop.f32.mrf.mxu0
        %v4511 = vpop.f32.mrf.mxu0
        %v4512 = vadd.f32 0.0, %v4511
        %v4513 = vpop.f32.mrf.mxu0
        %4514 = vmatprep.mubr.bf16.mxu0 0
        %4515 = vmatmul.mubr.bf16.gmra.mxu0 %v4427
        %v4516 = vpop.f32.mrf.mxu0
        %v4517 = vadd.f32 0.0, %v4516
        %v4518 = vpop.f32.mrf.mxu0
        %v4519 = vpop.f32.mrf.mxu0
        %v4520 = vadd.f32 0.0, %v4519
        %v4521 = vpop.f32.mrf.mxu0
        %4522 = vmatprep.mubr.bf16.mxu0 0
        %4523 = vmatmul.mubr.bf16.gmra.mxu0 %v4430
        %v4524 = vpop.f32.mrf.mxu0
        %v4525 = vadd.f32 0.0, %v4524
        %v4526 = vpop.f32.mrf.mxu0
        %v4527 = vpop.f32.mrf.mxu0
        %v4528 = vadd.f32 0.0, %v4527
        %v4529 = vpop.f32.mrf.mxu0
        %4530 = vmatprep.mubr.bf16.mxu0 0
        %4531 = vmatmul.mubr.bf16.gmra.mxu0 %v4433
        %v4532 = vpop.f32.mrf.mxu0
        %v4533 = vadd.f32 0.0, %v4532
        %v4534 = vpop.f32.mrf.mxu0
        %v4535 = vpop.f32.mrf.mxu0
        %v4536 = vadd.f32 0.0, %v4535
        %v4537 = vpop.f32.mrf.mxu0
        %4538 = vmatprep.mubr.bf16.mxu0 0
        %4539 = vmatmul.mubr.bf16.gmra.mxu0 %v4436
        %v4540 = vpop.f32.mrf.mxu0
        %v4541 = vadd.f32 0.0, %v4540
        %v4542 = vpop.f32.mrf.mxu0
        %v4543 = vpop.f32.mrf.mxu0
        %v4544 = vadd.f32 0.0, %v4543
        %v4545 = vpop.f32.mrf.mxu0
        %4546 = vmatprep.mubr.bf16.mxu0 0
        %4547 = vmatmul.mubr.bf16.gmra.mxu0 %v4439
        %v4548 = vpop.f32.mrf.mxu0
        %v4549 = vadd.f32 0.0, %v4548
        %v4550 = vpop.f32.mrf.mxu0
        %v4551 = vpop.f32.mrf.mxu0
        %v4552 = vadd.f32 0.0, %v4551
        %v4553 = vpop.f32.mrf.mxu0
        %4554 = vmatprep.mubr.bf16.mxu0 0
        %4555 = vmatmul.mubr.bf16.gmra.mxu0 %v4442
        %v4556 = vpop.f32.mrf.mxu0
        %v4557 = vadd.f32 0.0, %v4556
        %v4558 = vpop.f32.mrf.mxu0
        %v4559 = vpop.f32.mrf.mxu0
        %v4560 = vadd.f32 0.0, %v4559
        %v4561 = vpop.f32.mrf.mxu0
        %4562 = vmatprep.mubr.bf16.mxu0 0
        %4563 = vmatmul.mubr.bf16.gmra.mxu0 %v4445
        %v4564 = vpop.f32.mrf.mxu0
        %v4565 = vadd.f32 0.0, %v4564
        %v4566 = vpop.f32.mrf.mxu0
        %v4567 = vpop.f32.mrf.mxu0
        %v4568 = vadd.f32 0.0, %v4567
        %v4569 = vpop.f32.mrf.mxu0
        %4570 = vmatprep.mubr.bf16.mxu0 0
        %4571 = vmatmul.mubr.bf16.gmra.mxu0 %v4448
        %v4572 = vpop.f32.mrf.mxu0
        %v4573 = vadd.f32 0.0, %v4572
        %v4574 = vpop.f32.mrf.mxu0
        %v4575 = vpop.f32.mrf.mxu0
        %v4576 = vadd.f32 0.0, %v4575
        %v4577 = vpop.f32.mrf.mxu0
        %4578 = vmatprep.mubr.bf16.mxu0 0
        %4579 = vmatmul.mubr.bf16.gmra.mxu0 %v4451
        %v4580 = vpop.f32.mrf.mxu0
        %v4581 = vadd.f32 0.0, %v4580
        %v4582 = vpop.f32.mrf.mxu0
        %v4583 = vpop.f32.mrf.mxu0
        %v4584 = vadd.f32 0.0, %v4583
        %v4585 = vpop.f32.mrf.mxu0
        %4586 = vmatprep.mubr.bf16.mxu0 0
        %4587 = vmatmul.mubr.bf16.gmra.mxu0 %v4454
        %v4588 = vpop.f32.mrf.mxu0
        %v4589 = vadd.f32 0.0, %v4588
        %v4590 = vpop.f32.mrf.mxu0
        %v4591 = vpop.f32.mrf.mxu0
        %v4592 = vadd.f32 0.0, %v4591
        %v4593 = vpop.f32.mrf.mxu0
        %4594 = vmatprep.mubr.bf16.mxu0 0
        %4595 = vmatmul.mubr.bf16.gmra.mxu0 %v4457
        %v4596 = vpop.f32.mrf.mxu0
        %v4597 = vadd.f32 0.0, %v4596
        %v4598 = vpop.f32.mrf.mxu0
        %v4599 = vpop.f32.mrf.mxu0
        %v4600 = vadd.f32 0.0, %v4599
        %v4601 = vpop.f32.mrf.mxu0
        %4602 = vmatprep.mubr.bf16.mxu0 0
        %4603 = vmatmul.mubr.bf16.gmra.mxu0 %v4460
        %v4604 = vpop.f32.mrf.mxu0
        %v4605 = vadd.f32 0.0, %v4604
        %v4606 = vpop.f32.mrf.mxu0
        %v4607 = vpop.f32.mrf.mxu0
        %v4608 = vadd.f32 0.0, %v4607
        %v4609 = vpop.f32.mrf.mxu0
        %4610 = vmatprep.mubr.bf16.mxu0 0
        %4611 = vmatmul.mubr.bf16.gmra.mxu0 %v4463
        %v4612 = vpop.f32.mrf.mxu0
        %v4613 = vadd.f32 0.0, %v4612
        %v4614 = vpop.f32.mrf.mxu0
        %v4615 = vpop.f32.mrf.mxu0
        %v4616 = vadd.f32 0.0, %v4615
        %v4617 = vpop.f32.mrf.mxu0
        %4618 = vmatprep.mubr.bf16.mxu0 0
        %4619 = vmatmul.mubr.bf16.gmra.mxu0 %v4466
        %v4620 = vpop.f32.mrf.mxu0
        %v4621 = vadd.f32 0.0, %v4620
        %v4622 = vpop.f32.mrf.mxu0
        %v4623 = vpop.f32.mrf.mxu0
        %v4624 = vadd.f32 0.0, %v4623
        %v4625 = vpop.f32.mrf.mxu0
        %4626 = vmatprep.mubr.bf16.mxu0 0
        %4627 = vmatmul.mubr.bf16.gmra.mxu0 %v4469
        %v4628 = vpop.f32.mrf.mxu0
        %v4629 = vadd.f32 0.0, %v4628
        %v4630 = vpop.f32.mrf.mxu0
        %v4631 = vpop.f32.mrf.mxu0
        %v4632 = vadd.f32 0.0, %v4631
        %v4633 = vpop.f32.mrf.mxu0
        %4634 = vdwg.mxu0
        %v4635 = vadd.f32 %v4213, %v4509
        %v4636 = vadd.f32 %v4214, %v4512
        %v4637 = vadd.f32 %v4215, %v4517
        %v4638 = vadd.f32 %v4216, %v4520
        %v4639 = vadd.f32 %v4217, %v4525
        %v4640 = vadd.f32 %v4218, %v4528
        %v4641 = vadd.f32 %v4219, %v4533
        %v4642 = vadd.f32 %v4220, %v4536
        %v4643 = vadd.f32 %v4221, %v4541
        %v4644 = vadd.f32 %v4222, %v4544
        %v4645 = vadd.f32 %v4223, %v4549
        %v4646 = vadd.f32 %v4224, %v4552
        %v4647 = vadd.f32 %v4225, %v4557
        %v4648 = vadd.f32 %v4226, %v4560
        %v4649 = vadd.f32 %v4227, %v4565
        %v4650 = vadd.f32 %v4228, %v4568
        %v4651 = vadd.f32 %v4229, %v4573
        %v4652 = vadd.f32 %v4230, %v4576
        %v4653 = vadd.f32 %v4231, %v4581
        %v4654 = vadd.f32 %v4232, %v4584
        %v4655 = vadd.f32 %v4233, %v4589
        %v4656 = vadd.f32 %v4234, %v4592
        %v4657 = vadd.f32 %v4235, %v4597
        %v4658 = vadd.f32 %v4236, %v4600
        %v4659 = vadd.f32 %v4237, %v4605
        %v4660 = vadd.f32 %v4238, %v4608
        %v4661 = vadd.f32 %v4239, %v4613
        %v4662 = vadd.f32 %v4240, %v4616
        %v4663 = vadd.f32 %v4241, %v4621
        %v4664 = vadd.f32 %v4242, %v4624
        %v4665 = vadd.f32 %v4243, %v4629
        %v4666 = vadd.f32 %v4244, %v4632
        %v4667 = vld [vmem:[#allocation2] sm:$0xff]
        %v4668 = vld [vmem:[#allocation2 + $0x8] sm:$0xff]
        %v4669 = vld [vmem:[#allocation2 + $0x10] sm:$0xff]
        %v4670 = vld [vmem:[#allocation2 + $0x18] sm:$0xff]
        %v4671 = vld [vmem:[#allocation2 + $0x20] sm:$0xff]
        %v4672 = vld [vmem:[#allocation2 + $0x28] sm:$0xff]
        %v4673 = vld [vmem:[#allocation2 + $0x30] sm:$0xff]
        %v4674 = vld [vmem:[#allocation2 + $0x38] sm:$0xff]
        %v4675 = vld [vmem:[#allocation2 + $0x40] sm:$0xff]
        %v4676 = vld [vmem:[#allocation2 + $0x48] sm:$0xff]
        %v4677 = vld [vmem:[#allocation2 + $0x50] sm:$0xff]
        %v4678 = vld [vmem:[#allocation2 + $0x58] sm:$0xff]
        %v4679 = vld [vmem:[#allocation2 + $0x60] sm:$0xff]
        %v4680 = vld [vmem:[#allocation2 + $0x68] sm:$0xff]
        %v4681 = vld [vmem:[#allocation2 + $0x70] sm:$0xff]
        %v4682 = vld [vmem:[#allocation2 + $0x78] sm:$0xff]
        %v4683 = vld [vmem:[#allocation2 + $0x80] sm:$0xff]
        %v4684 = vld [vmem:[#allocation2 + $0x88] sm:$0xff]
        %v4685 = vld [vmem:[#allocation2 + $0x90] sm:$0xff]
        %v4686 = vld [vmem:[#allocation2 + $0x98] sm:$0xff]
        %v4687 = vld [vmem:[#allocation2 + $0xa0] sm:$0xff]
        %v4688 = vld [vmem:[#allocation2 + $0xa8] sm:$0xff]
        %v4689 = vld [vmem:[#allocation2 + $0xb0] sm:$0xff]
        %v4690 = vld [vmem:[#allocation2 + $0xb8] sm:$0xff]
        %v4691 = vld [vmem:[#allocation2 + $0xc0] sm:$0xff]
        %v4692 = vld [vmem:[#allocation2 + $0xc8] sm:$0xff]
        %v4693 = vld [vmem:[#allocation2 + $0xd0] sm:$0xff]
        %v4694 = vld [vmem:[#allocation2 + $0xd8] sm:$0xff]
        %v4695 = vld [vmem:[#allocation2 + $0xe0] sm:$0xff]
        %v4696 = vld [vmem:[#allocation2 + $0xe8] sm:$0xff]
        %v4697 = vld [vmem:[#allocation2 + $0xf0] sm:$0xff]
        %v4698 = vld [vmem:[#allocation2 + $0xf8] sm:$0xff]
        %v4699 = vadd.f32 %v4667, %v4635
        %v4700 = vadd.f32 %v4668, %v4636
        %v4701 = vadd.f32 %v4669, %v4637
        %v4702 = vadd.f32 %v4670, %v4638
        %v4703 = vadd.f32 %v4671, %v4639
        %v4704 = vadd.f32 %v4672, %v4640
        %v4705 = vadd.f32 %v4673, %v4641
        %v4706 = vadd.f32 %v4674, %v4642
        %v4707 = vadd.f32 %v4675, %v4643
        %v4708 = vadd.f32 %v4676, %v4644
        %v4709 = vadd.f32 %v4677, %v4645
        %v4710 = vadd.f32 %v4678, %v4646
        %v4711 = vadd.f32 %v4679, %v4647
        %v4712 = vadd.f32 %v4680, %v4648
        %v4713 = vadd.f32 %v4681, %v4649
        %v4714 = vadd.f32 %v4682, %v4650
        %v4715 = vadd.f32 %v4683, %v4651
        %v4716 = vadd.f32 %v4684, %v4652
        %v4717 = vadd.f32 %v4685, %v4653
        %v4718 = vadd.f32 %v4686, %v4654
        %v4719 = vadd.f32 %v4687, %v4655
        %v4720 = vadd.f32 %v4688, %v4656
        %v4721 = vadd.f32 %v4689, %v4657
        %v4722 = vadd.f32 %v4690, %v4658
        %v4723 = vadd.f32 %v4691, %v4659
        %v4724 = vadd.f32 %v4692, %v4660
        %v4725 = vadd.f32 %v4693, %v4661
        %v4726 = vadd.f32 %v4694, %v4662
        %v4727 = vadd.f32 %v4695, %v4663
        %v4728 = vadd.f32 %v4696, %v4664
        %v4729 = vadd.f32 %v4697, %v4665
        %v4730 = vadd.f32 %v4698, %v4666
        %4731 = vst [vmem:[#allocation2] sm:$0xff] %v4699
        %4732 = vst [vmem:[#allocation2 + $0x8] sm:$0xff] %v4700
        %4733 = vst [vmem:[#allocation2 + $0x10] sm:$0xff] %v4701
        %4734 = vst [vmem:[#allocation2 + $0x18] sm:$0xff] %v4702
        %4735 = vst [vmem:[#allocation2 + $0x20] sm:$0xff] %v4703
        %4736 = vst [vmem:[#allocation2 + $0x28] sm:$0xff] %v4704
        %4737 = vst [vmem:[#allocation2 + $0x30] sm:$0xff] %v4705
        %4738 = vst [vmem:[#allocation2 + $0x38] sm:$0xff] %v4706
        %4739 = vst [vmem:[#allocation2 + $0x40] sm:$0xff] %v4707
        %4740 = vst [vmem:[#allocation2 + $0x48] sm:$0xff] %v4708
        %4741 = vst [vmem:[#allocation2 + $0x50] sm:$0xff] %v4709
        %4742 = vst [vmem:[#allocation2 + $0x58] sm:$0xff] %v4710
        %4743 = vst [vmem:[#allocation2 + $0x60] sm:$0xff] %v4711
        %4744 = vst [vmem:[#allocation2 + $0x68] sm:$0xff] %v4712
        %4745 = vst [vmem:[#allocation2 + $0x70] sm:$0xff] %v4713
        %4746 = vst [vmem:[#allocation2 + $0x78] sm:$0xff] %v4714
        %4747 = vst [vmem:[#allocation2 + $0x80] sm:$0xff] %v4715
        %4748 = vst [vmem:[#allocation2 + $0x88] sm:$0xff] %v4716
        %4749 = vst [vmem:[#allocation2 + $0x90] sm:$0xff] %v4717
        %4750 = vst [vmem:[#allocation2 + $0x98] sm:$0xff] %v4718
        %4751 = vst [vmem:[#allocation2 + $0xa0] sm:$0xff] %v4719
        %4752 = vst [vmem:[#allocation2 + $0xa8] sm:$0xff] %v4720
        %4753 = vst [vmem:[#allocation2 + $0xb0] sm:$0xff] %v4721
        %4754 = vst [vmem:[#allocation2 + $0xb8] sm:$0xff] %v4722
        %4755 = vst [vmem:[#allocation2 + $0xc0] sm:$0xff] %v4723
        %4756 = vst [vmem:[#allocation2 + $0xc8] sm:$0xff] %v4724
        %4757 = vst [vmem:[#allocation2 + $0xd0] sm:$0xff] %v4725
        %4758 = vst [vmem:[#allocation2 + $0xd8] sm:$0xff] %v4726
        %4759 = vst [vmem:[#allocation2 + $0xe0] sm:$0xff] %v4727
        %4760 = vst [vmem:[#allocation2 + $0xe8] sm:$0xff] %v4728
        %4761 = vst [vmem:[#allocation2 + $0xf0] sm:$0xff] %v4729
        %4762 = vst [vmem:[#allocation2 + $0xf8] sm:$0xff] %v4730
        // Predicated region
        $region37: #{tpu_custom_call.1} parent=31 // pred_check
          %p4763 = pneg %p254
        $region38: #{tpu_custom_call.1} parent=31 // pred_check_branch
          %4765 = sbr.rel (%p4763) target = $region40
        $region39: #{tpu_custom_call.1} parent=31 // pred_region
          %v4766 = vld [vmem:[#allocation2] sm:$0xff]
          %v4767 = vld [vmem:[#allocation2 + $0x8] sm:$0xff]
          %v4768 = vld [vmem:[#allocation2 + $0x10] sm:$0xff]
          %v4769 = vld [vmem:[#allocation2 + $0x18] sm:$0xff]
          %v4770 = vld [vmem:[#allocation2 + $0x20] sm:$0xff]
          %v4771 = vld [vmem:[#allocation2 + $0x28] sm:$0xff]
          %v4772 = vld [vmem:[#allocation2 + $0x30] sm:$0xff]
          %v4773 = vld [vmem:[#allocation2 + $0x38] sm:$0xff]
          %v4774 = vld [vmem:[#allocation2 + $0x40] sm:$0xff]
          %v4775 = vld [vmem:[#allocation2 + $0x48] sm:$0xff]
          %v4776 = vld [vmem:[#allocation2 + $0x50] sm:$0xff]
          %v4777 = vld [vmem:[#allocation2 + $0x58] sm:$0xff]
          %v4778 = vld [vmem:[#allocation2 + $0x60] sm:$0xff]
          %v4779 = vld [vmem:[#allocation2 + $0x68] sm:$0xff]
          %v4780 = vld [vmem:[#allocation2 + $0x70] sm:$0xff]
          %v4781 = vld [vmem:[#allocation2 + $0x78] sm:$0xff]
          %v4782 = vld [vmem:[#allocation2 + $0x80] sm:$0xff]
          %v4783 = vld [vmem:[#allocation2 + $0x88] sm:$0xff]
          %v4784 = vld [vmem:[#allocation2 + $0x90] sm:$0xff]
          %v4785 = vld [vmem:[#allocation2 + $0x98] sm:$0xff]
          %v4786 = vld [vmem:[#allocation2 + $0xa0] sm:$0xff]
          %v4787 = vld [vmem:[#allocation2 + $0xa8] sm:$0xff]
          %v4788 = vld [vmem:[#allocation2 + $0xb0] sm:$0xff]
          %v4789 = vld [vmem:[#allocation2 + $0xb8] sm:$0xff]
          %v4790 = vld [vmem:[#allocation2 + $0xc0] sm:$0xff]
          %v4791 = vld [vmem:[#allocation2 + $0xc8] sm:$0xff]
          %v4792 = vld [vmem:[#allocation2 + $0xd0] sm:$0xff]
          %v4793 = vld [vmem:[#allocation2 + $0xd8] sm:$0xff]
          %v4794 = vld [vmem:[#allocation2 + $0xe0] sm:$0xff]
          %v4795 = vld [vmem:[#allocation2 + $0xe8] sm:$0xff]
          %v4796 = vld [vmem:[#allocation2 + $0xf0] sm:$0xff]
          %v4797 = vld [vmem:[#allocation2 + $0xf8] sm:$0xff]
          %v4798 = vld [vmem:[%s251] sm:$0x1]
          %v4800 = vlaneseq
          %v4801 = vshrl.u32 %v4800, 7
          %v4802 = vsub.s32 0, %v4801
          %v4803 = vrot.slane %v4798, %v4802
          %v4805 = vadd.f32 %v4766, %v4803
          %v4806 = vadd.f32 %v4767, %v4803
          %v4807 = vadd.f32 %v4768, %v4803
          %v4808 = vadd.f32 %v4769, %v4803
          %v4809 = vadd.f32 %v4770, %v4803
          %v4810 = vadd.f32 %v4771, %v4803
          %v4811 = vadd.f32 %v4772, %v4803
          %v4812 = vadd.f32 %v4773, %v4803
          %v4813 = vadd.f32 %v4774, %v4803
          %v4814 = vadd.f32 %v4775, %v4803
          %v4815 = vadd.f32 %v4776, %v4803
          %v4816 = vadd.f32 %v4777, %v4803
          %v4817 = vadd.f32 %v4778, %v4803
          %v4818 = vadd.f32 %v4779, %v4803
          %v4819 = vadd.f32 %v4780, %v4803
          %v4820 = vadd.f32 %v4781, %v4803
          %v4821 = vadd.f32 %v4782, %v4803
          %v4822 = vadd.f32 %v4783, %v4803
          %v4823 = vadd.f32 %v4784, %v4803
          %v4824 = vadd.f32 %v4785, %v4803
          %v4825 = vadd.f32 %v4786, %v4803
          %v4826 = vadd.f32 %v4787, %v4803
          %v4827 = vadd.f32 %v4788, %v4803
          %v4828 = vadd.f32 %v4789, %v4803
          %v4829 = vadd.f32 %v4790, %v4803
          %v4830 = vadd.f32 %v4791, %v4803
          %v4831 = vadd.f32 %v4792, %v4803
          %v4832 = vadd.f32 %v4793, %v4803
          %v4833 = vadd.f32 %v4794, %v4803
          %v4834 = vadd.f32 %v4795, %v4803
          %v4835 = vadd.f32 %v4796, %v4803
          %v4836 = vadd.f32 %v4797, %v4803
          %v4837 = vadd.f32 %v4805, 3.0
          %v4838 = vadd.f32 %v4806, 3.0
          %v4839 = vadd.f32 %v4807, 3.0
          %v4840 = vadd.f32 %v4808, 3.0
          %v4841 = vadd.f32 %v4809, 3.0
          %v4842 = vadd.f32 %v4810, 3.0
          %v4843 = vadd.f32 %v4811, 3.0
          %v4844 = vadd.f32 %v4812, 3.0
          %v4845 = vadd.f32 %v4813, 3.0
          %v4846 = vadd.f32 %v4814, 3.0
          %v4847 = vadd.f32 %v4815, 3.0
          %v4848 = vadd.f32 %v4816, 3.0
          %v4849 = vadd.f32 %v4817, 3.0
          %v4850 = vadd.f32 %v4818, 3.0
          %v4851 = vadd.f32 %v4819, 3.0
          %v4852 = vadd.f32 %v4820, 3.0
          %v4853 = vadd.f32 %v4821, 3.0
          %v4854 = vadd.f32 %v4822, 3.0
          %v4855 = vadd.f32 %v4823, 3.0
          %v4856 = vadd.f32 %v4824, 3.0
          %v4857 = vadd.f32 %v4825, 3.0
          %v4858 = vadd.f32 %v4826, 3.0
          %v4859 = vadd.f32 %v4827, 3.0
          %v4860 = vadd.f32 %v4828, 3.0
          %v4861 = vadd.f32 %v4829, 3.0
          %v4862 = vadd.f32 %v4830, 3.0
          %v4863 = vadd.f32 %v4831, 3.0
          %v4864 = vadd.f32 %v4832, 3.0
          %v4865 = vadd.f32 %v4833, 3.0
          %v4866 = vadd.f32 %v4834, 3.0
          %v4867 = vadd.f32 %v4835, 3.0
          %v4868 = vadd.f32 %v4836, 3.0
          %v4869 = vmax.f32 %v4837, 0.0
          %v4870 = vmax.f32 %v4838, 0.0
          %v4871 = vmax.f32 %v4839, 0.0
          %v4872 = vmax.f32 %v4840, 0.0
          %v4873 = vmax.f32 %v4841, 0.0
          %v4874 = vmax.f32 %v4842, 0.0
          %v4875 = vmax.f32 %v4843, 0.0
          %v4876 = vmax.f32 %v4844, 0.0
          %v4877 = vmax.f32 %v4845, 0.0
          %v4878 = vmax.f32 %v4846, 0.0
          %v4879 = vmax.f32 %v4847, 0.0
          %v4880 = vmax.f32 %v4848, 0.0
          %v4881 = vmax.f32 %v4849, 0.0
          %v4882 = vmax.f32 %v4850, 0.0
          %v4883 = vmax.f32 %v4851, 0.0
          %v4884 = vmax.f32 %v4852, 0.0
          %v4885 = vmax.f32 %v4853, 0.0
          %v4886 = vmax.f32 %v4854, 0.0
          %v4887 = vmax.f32 %v4855, 0.0
          %v4888 = vmax.f32 %v4856, 0.0
          %v4889 = vmax.f32 %v4857, 0.0
          %v4890 = vmax.f32 %v4858, 0.0
          %v4891 = vmax.f32 %v4859, 0.0
          %v4892 = vmax.f32 %v4860, 0.0
          %v4893 = vmax.f32 %v4861, 0.0
          %v4894 = vmax.f32 %v4862, 0.0
          %v4895 = vmax.f32 %v4863, 0.0
          %v4896 = vmax.f32 %v4864, 0.0
          %v4897 = vmax.f32 %v4865, 0.0
          %v4898 = vmax.f32 %v4866, 0.0
          %v4899 = vmax.f32 %v4867, 0.0
          %v4900 = vmax.f32 %v4868, 0.0
          %v4901 = vmin.f32 %v4869, 6.0
          %v4902 = vmin.f32 %v4870, 6.0
          %v4903 = vmin.f32 %v4871, 6.0
          %v4904 = vmin.f32 %v4872, 6.0
          %v4905 = vmin.f32 %v4873, 6.0
          %v4906 = vmin.f32 %v4874, 6.0
          %v4907 = vmin.f32 %v4875, 6.0
          %v4908 = vmin.f32 %v4876, 6.0
          %v4909 = vmin.f32 %v4877, 6.0
          %v4910 = vmin.f32 %v4878, 6.0
          %v4911 = vmin.f32 %v4879, 6.0
          %v4912 = vmin.f32 %v4880, 6.0
          %v4913 = vmin.f32 %v4881, 6.0
          %v4914 = vmin.f32 %v4882, 6.0
          %v4915 = vmin.f32 %v4883, 6.0
          %v4916 = vmin.f32 %v4884, 6.0
          %v4917 = vmin.f32 %v4885, 6.0
          %v4918 = vmin.f32 %v4886, 6.0
          %v4919 = vmin.f32 %v4887, 6.0
          %v4920 = vmin.f32 %v4888, 6.0
          %v4921 = vmin.f32 %v4889, 6.0
          %v4922 = vmin.f32 %v4890, 6.0
          %v4923 = vmin.f32 %v4891, 6.0
          %v4924 = vmin.f32 %v4892, 6.0
          %v4925 = vmin.f32 %v4893, 6.0
          %v4926 = vmin.f32 %v4894, 6.0
          %v4927 = vmin.f32 %v4895, 6.0
          %v4928 = vmin.f32 %v4896, 6.0
          %v4929 = vmin.f32 %v4897, 6.0
          %v4930 = vmin.f32 %v4898, 6.0
          %v4931 = vmin.f32 %v4899, 6.0
          %v4932 = vmin.f32 %v4900, 6.0
          %v4933 = vmul.f32 %v4805, %v4901
          %v4934 = vmul.f32 %v4806, %v4902
          %v4935 = vmul.f32 %v4807, %v4903
          %v4936 = vmul.f32 %v4808, %v4904
          %v4937 = vmul.f32 %v4809, %v4905
          %v4938 = vmul.f32 %v4810, %v4906
          %v4939 = vmul.f32 %v4811, %v4907
          %v4940 = vmul.f32 %v4812, %v4908
          %v4941 = vmul.f32 %v4813, %v4909
          %v4942 = vmul.f32 %v4814, %v4910
          %v4943 = vmul.f32 %v4815, %v4911
          %v4944 = vmul.f32 %v4816, %v4912
          %v4945 = vmul.f32 %v4817, %v4913
          %v4946 = vmul.f32 %v4818, %v4914
          %v4947 = vmul.f32 %v4819, %v4915
          %v4948 = vmul.f32 %v4820, %v4916
          %v4949 = vmul.f32 %v4821, %v4917
          %v4950 = vmul.f32 %v4822, %v4918
          %v4951 = vmul.f32 %v4823, %v4919
          %v4952 = vmul.f32 %v4824, %v4920
          %v4953 = vmul.f32 %v4825, %v4921
          %v4954 = vmul.f32 %v4826, %v4922
          %v4955 = vmul.f32 %v4827, %v4923
          %v4956 = vmul.f32 %v4828, %v4924
          %v4957 = vmul.f32 %v4829, %v4925
          %v4958 = vmul.f32 %v4830, %v4926
          %v4959 = vmul.f32 %v4831, %v4927
          %v4960 = vmul.f32 %v4832, %v4928
          %v4961 = vmul.f32 %v4833, %v4929
          %v4962 = vmul.f32 %v4834, %v4930
          %v4963 = vmul.f32 %v4835, %v4931
          %v4964 = vmul.f32 %v4836, %v4932
          %v4965 = vmul.f32 %v4933, 0.16666667
          %v4966 = vmul.f32 %v4934, 0.16666667
          %v4967 = vmul.f32 %v4935, 0.16666667
          %v4968 = vmul.f32 %v4936, 0.16666667
          %v4969 = vmul.f32 %v4937, 0.16666667
          %v4970 = vmul.f32 %v4938, 0.16666667
          %v4971 = vmul.f32 %v4939, 0.16666667
          %v4972 = vmul.f32 %v4940, 0.16666667
          %v4973 = vmul.f32 %v4941, 0.16666667
          %v4974 = vmul.f32 %v4942, 0.16666667
          %v4975 = vmul.f32 %v4943, 0.16666667
          %v4976 = vmul.f32 %v4944, 0.16666667
          %v4977 = vmul.f32 %v4945, 0.16666667
          %v4978 = vmul.f32 %v4946, 0.16666667
          %v4979 = vmul.f32 %v4947, 0.16666667
          %v4980 = vmul.f32 %v4948, 0.16666667
          %v4981 = vmul.f32 %v4949, 0.16666667
          %v4982 = vmul.f32 %v4950, 0.16666667
          %v4983 = vmul.f32 %v4951, 0.16666667
          %v4984 = vmul.f32 %v4952, 0.16666667
          %v4985 = vmul.f32 %v4953, 0.16666667
          %v4986 = vmul.f32 %v4954, 0.16666667
          %v4987 = vmul.f32 %v4955, 0.16666667
          %v4988 = vmul.f32 %v4956, 0.16666667
          %v4989 = vmul.f32 %v4957, 0.16666667
          %v4990 = vmul.f32 %v4958, 0.16666667
          %v4991 = vmul.f32 %v4959, 0.16666667
          %v4992 = vmul.f32 %v4960, 0.16666667
          %v4993 = vmul.f32 %v4961, 0.16666667
          %v4994 = vmul.f32 %v4962, 0.16666667
          %v4995 = vmul.f32 %v4963, 0.16666667
          %v4996 = vmul.f32 %v4964, 0.16666667
          %4997 = vst [vmem:[%s233] sm:$0xff] %v4965
          %4998 = vst [vmem:[%s233 + $0x8] sm:$0xff] %v4966
          %4999 = vst [vmem:[%s233 + $0x10] sm:$0xff] %v4967
          %5000 = vst [vmem:[%s233 + $0x18] sm:$0xff] %v4968
          %5001 = vst [vmem:[%s233 + $0x20] sm:$0xff] %v4969
          %5002 = vst [vmem:[%s233 + $0x28] sm:$0xff] %v4970
          %5003 = vst [vmem:[%s233 + $0x30] sm:$0xff] %v4971
          %5004 = vst [vmem:[%s233 + $0x38] sm:$0xff] %v4972
          %5005 = vst [vmem:[%s233 + $0x40] sm:$0xff] %v4973
          %5006 = vst [vmem:[%s233 + $0x48] sm:$0xff] %v4974
          %5007 = vst [vmem:[%s233 + $0x50] sm:$0xff] %v4975
          %5008 = vst [vmem:[%s233 + $0x58] sm:$0xff] %v4976
          %5009 = vst [vmem:[%s233 + $0x60] sm:$0xff] %v4977
          %5010 = vst [vmem:[%s233 + $0x68] sm:$0xff] %v4978
          %5011 = vst [vmem:[%s233 + $0x70] sm:$0xff] %v4979
          %5012 = vst [vmem:[%s233 + $0x78] sm:$0xff] %v4980
          %5013 = vst [vmem:[%s233 + $0x80] sm:$0xff] %v4981
          %5014 = vst [vmem:[%s233 + $0x88] sm:$0xff] %v4982
          %5015 = vst [vmem:[%s233 + $0x90] sm:$0xff] %v4983
          %5016 = vst [vmem:[%s233 + $0x98] sm:$0xff] %v4984
          %5017 = vst [vmem:[%s233 + $0xa0] sm:$0xff] %v4985
          %5018 = vst [vmem:[%s233 + $0xa8] sm:$0xff] %v4986
          %5019 = vst [vmem:[%s233 + $0xb0] sm:$0xff] %v4987
          %5020 = vst [vmem:[%s233 + $0xb8] sm:$0xff] %v4988
          %5021 = vst [vmem:[%s233 + $0xc0] sm:$0xff] %v4989
          %5022 = vst [vmem:[%s233 + $0xc8] sm:$0xff] %v4990
          %5023 = vst [vmem:[%s233 + $0xd0] sm:$0xff] %v4991
          %5024 = vst [vmem:[%s233 + $0xd8] sm:$0xff] %v4992
          %5025 = vst [vmem:[%s233 + $0xe0] sm:$0xff] %v4993
          %5026 = vst [vmem:[%s233 + $0xe8] sm:$0xff] %v4994
          %5027 = vst [vmem:[%s233 + $0xf0] sm:$0xff] %v4995
          %5028 = vst [vmem:[%s233 + $0xf8] sm:$0xff] %v4996
        $region40: #{tpu_custom_call.1} parent=31 // pred_fallthru
          _
        %s5029 = sand.u32 %s137, 1
        %s5030 = scalar_lea.sflag [#allocation4], %s5029
        %s5031 = sand.u32 %s137, 1
        %s5032 = smul.addr %s5031, 256
        %s5033 = scalar_lea.vmem [#allocation3], %s5032
        // Predicated region
        $region41: #{tpu_custom_call.1} parent=31 // pred_check
          %p5034 = pneg %p147
        $region42: #{tpu_custom_call.1} parent=31 // pred_check_branch
          %5036 = sbr.rel (%p5034) target = $region44
        $region43: #{tpu_custom_call.1} parent=31 // pred_region
          %s5037 = smul.u32 16, %s24
          %s5039 = ssub.s32 4096, 4096
          %5040 = vsyncadd %s5030, %s5039
          %s5041 = smul.addr %s5037, 2
          %s5042 = sadd.s32 %s25, %s5041
          %s5043 = smul.addr %s23, 32
          %s5044 = sadd.s32 %s5042, %s5043
          %s5045 = smul.addr %s5044, 128
          %s5046 = scalar_lea.hbm %s3, %s5045
          %s5047 = sshll.u32 %s5033, 4
          %s5048 = int_to_ptr.vmem [resolvable:$true] %s5047
          %5053 = dma.vmem_to_hbm [thread:$0]  %s5048, 4096, %s5046, %s5030, 128, 128, 8
        $region44: #{tpu_custom_call.1} parent=31 // pred_fallthru
          _
      $region32: #{tpu_custom_call.1} parent=5 // pred_fallthru
        _
      %p5054 = scmp.le.s32.totalorder 2, %s12
      // Predicated region
      $region45: #{tpu_custom_call.1} parent=5 // pred_check
        %p5055 = pneg %p5054
      $region46: #{tpu_custom_call.1} parent=5 // pred_check_branch
        %5057 = sbr.rel (%p5055) target = $region48
      $region47: #{tpu_custom_call.1} parent=5 // pred_region
        %s5058 = ssub.s32 %s12, 2
        // Predicated region
        $region49: #{tpu_custom_call.1} parent=47 // pred_check
          %p5059 = pneg %p153
        $region50: #{tpu_custom_call.1} parent=47 // pred_check_branch
          %5061 = sbr.rel (%p5059) target = $region52
        $region51: #{tpu_custom_call.1} parent=47 // pred_region
          %s5062 = sand.u32 %s138, 1
          %s5063 = scalar_lea.sflag [#allocation4], %s5062
          %s5064 = sand.u32 %s138, 1
          %s5065 = smul.addr %s5064, 256
          %s5066 = scalar_lea.vmem [#allocation3], %s5065
          %5067 = dma.done %s5063, 4096
        $region52: #{tpu_custom_call.1} parent=47 // pred_fallthru
          _
      $region48: #{tpu_custom_call.1} parent=5 // pred_fallthru
        _
    $region6: #{tpu_custom_call.1} parent=1 // loop_footer
      %s16 = sadd.s32 1, %s12
    $region7: #{tpu_custom_call.1} parent=1 // loop_footer_branch
      %11 = sbr.rel target = $region3
    $region8: #{tpu_custom_call.1} parent=1 // loop_exit
      _
    %5068 = vsyncpa [#allocation4], 1
    %s5069 = scalar_lea.sflag [#allocation4], 1
    %5070 = vsyncpa %s5069, 1

</llo_original>
